<compile_context>
chip_gen: v6e
topology: v6e:2x2x1
jax: 0.10.0
libtpu: 0.0.40
codegen_flags: <defaults>
</compile_context>

<pallas_src>
import math

import jax
import jax.numpy as jnp
from jax.experimental import pallas as pl
from jax.experimental.pallas import tpu as pltpu

# ---------------- model dimensions (small, lane-dense, consistent with the module) -----
SEQ = 8
HIDDEN = 128            # 768 in the real model; 128 keeps the lane axis dense
NUM_HEADS = 2
HEAD_DIM = HIDDEN // NUM_HEADS   # 64, same head_dim as real BERT
FFN = 4 * HIDDEN        # 512
NUM_LAYERS = 2          # stands in for BERT's 12 layers; last layer's output is used
VOCAB = 128
CLS_HIDDEN = 128        # 200 in the real model
NUM_CLASSES = 2
CLS_OUT_PAD = 128       # classifier logits padded to a full 128-lane store
LN_EPS = 1e-12


# ---------------------------- in-kernel helpers ---------------------------------------
def _layer_norm(x, gamma, beta, eps=LN_EPS):
    mu = jnp.mean(x, axis=-1, keepdims=True)
    var = jnp.mean((x - mu) ** 2, axis=-1, keepdims=True)
    return (x - mu) * jax.lax.rsqrt(var + eps) * gamma + beta


def _gelu(x):
    # TODO(synk): HF BertIntermediate default is erf-based gelu; tanh approximation used here.
    c = math.sqrt(2.0 / math.pi)
    return 0.5 * x * (1.0 + jnp.tanh(c * (x + 0.044715 * x * x * x)))


# ---------------------------- fused encoder + classifier kernel ------------------------
def encoder_classifier_kernel(
    x_ref,
    wq_ref, bq_ref, wk_ref, bk_ref, wv_ref, bv_ref,
    wo_ref, bo_ref, ln1_g_ref, ln1_b_ref,
    w1_ref, bf1_ref, w2_ref, bf2_ref, ln2_g_ref, ln2_b_ref,
    cw1a_ref, cw1b_ref, cb1_ref, cw2_ref, cb2_ref,
    logits_ref,
    h_scr,
):
    """grid axis 0 = encoder layer; activation lives in h_scr (VMEM) across layers.

    Layer l's weights are streamed in via the BlockSpec index maps; the classifier head
    (pair concat expressed as split-W1 matmuls + DropoutClassifier) runs on the last layer.
    """
    l = pl.program_id(0)

    @pl.when(l == 0)
    def _():
        h_scr[...] = x_ref[...]

    x = h_scr[...]                                    # [S, H]

    # ---- multi-head self-attention (batched over heads, no transposes / concats) ----
    wq = wq_ref[0]; bq = bq_ref[0]                    # [NH, H, HD], [NH, 1, HD]
    wk = wk_ref[0]; bk = bk_ref[0]
    wv = wv_ref[0]; bv = bv_ref[0]
    wo = wo_ref[0]                                    # [NH, HD, H]

    xb = jnp.broadcast_to(x[None, :, :], (NUM_HEADS, SEQ, HIDDEN))
    q = jnp.einsum("nsh,nhd->nsd", xb, wq, preferred_element_type=jnp.float32) + bq
    k = jnp.einsum("nsh,nhd->nsd", xb, wk, preferred_element_type=jnp.float32) + bk
    v = jnp.einsum("nsh,nhd->nsd", xb, wv, preferred_element_type=jnp.float32) + bv

    scale = 1.0 / math.sqrt(HEAD_DIM)
    s = jnp.einsum("nqd,nkd->nqk", q, k, preferred_element_type=jnp.float32) * scale
    s = s - jnp.max(s, axis=-1, keepdims=True)
    p = jnp.exp(s)
    p = p * pl.reciprocal(jnp.sum(p, axis=-1, keepdims=True), approx=True)
    ctx = jnp.einsum("nqk,nkd->nqd", p, v, preferred_element_type=jnp.float32)  # [NH, S, HD]

    # output projection per head, summed over heads == concat(ctx) @ Wo
    attn = jnp.sum(
        jnp.einsum("nqd,ndh->nqh", ctx, wo, preferred_element_type=jnp.float32), axis=0
    ) + bo_ref[0]

    h1 = _layer_norm(x + attn, ln1_g_ref[0], ln1_b_ref[0])

    # ---- feed-forward ----
    ff = _gelu(jnp.dot(h1, w1_ref[0], preferred_element_type=jnp.float32) + bf1_ref[0])
    ff = jnp.dot(ff, w2_ref[0], preferred_element_type=jnp.float32) + bf2_ref[0]
    h2 = _layer_norm(h1 + ff, ln2_g_ref[0], ln2_b_ref[0])

    h_scr[...] = h2

    # ---- classifier head (DropoutClassifier) on the last layer's output ----
    @pl.when(l == pl.num_programs(0) - 1)
    def _():
        # concat(h[i], h[i+1]) @ W1 == h[i] @ W1a + h[i+1] @ W1b  (no lane concatenate)
        t1 = h2[:-1, :]                               # [S-1, H]
        t2 = h2[1:, :]                                # [S-1, H]
        # TODO(synk): dropout1 (p=0.2) / dropout2 (p=0.5) treated as identity (inference).
        z = (jnp.dot(t1, cw1a_ref[...], preferred_element_type=jnp.float32)
             + jnp.dot(t2, cw1b_ref[...], preferred_element_type=jnp.float32)
             + cb1_ref[...])
        z = jnp.maximum(z, 0.0)                       # .clamp(min=0)
        logits_ref[...] = (
            jnp.dot(z, cw2_ref[...], preferred_element_type=jnp.float32) + cb2_ref[...]
        )


# ---------------------------- pallas_call wrapper ---------------------------------------
def _idx_l4(l):
    return (l, 0, 0, 0)


def _idx_l3(l):
    return (l, 0, 0)


def _idx_c2(l):
    return (0, 0)


def encoder_and_classifier(x_emb, params):
    lp = params["layers"]
    cp = params["cls"]
    in_arrays = (
        x_emb,
        lp["wq"], lp["bq"], lp["wk"], lp["bk"], lp["wv"], lp["bv"],
        lp["wo"], lp["bo"], lp["ln1_g"], lp["ln1_b"],
        lp["w1"], lp["bf1"], lp["w2"], lp["bf2"], lp["ln2_g"], lp["ln2_b"],
        cp["w1a"], cp["w1b"], cp["b1"], cp["w2"], cp["b2"],
    )
    in_specs = [
        pl.BlockSpec((SEQ, HIDDEN), _idx_c2),                        # x (resident)
        pl.BlockSpec((1, NUM_HEADS, HIDDEN, HEAD_DIM), _idx_l4),     # wq   (streamed per layer)
        pl.BlockSpec((1, NUM_HEADS, 1, HEAD_DIM), _idx_l4),          # bq
        pl.BlockSpec((1, NUM_HEADS, HIDDEN, HEAD_DIM), _idx_l4),     # wk
        pl.BlockSpec((1, NUM_HEADS, 1, HEAD_DIM), _idx_l4),          # bk
        pl.BlockSpec((1, NUM_HEADS, HIDDEN, HEAD_DIM), _idx_l4),     # wv
        pl.BlockSpec((1, NUM_HEADS, 1, HEAD_DIM), _idx_l4),          # bv
        pl.BlockSpec((1, NUM_HEADS, HEAD_DIM, HIDDEN), _idx_l4),     # wo
        pl.BlockSpec((1, 1, HIDDEN), _idx_l3),                       # bo
        pl.BlockSpec((1, 1, HIDDEN), _idx_l3),                       # ln1_g
        pl.BlockSpec((1, 1, HIDDEN), _idx_l3),                       # ln1_b
        pl.BlockSpec((1, HIDDEN, FFN), _idx_l3),                     # w1
        pl.BlockSpec((1, 1, FFN), _idx_l3),                          # bf1
        pl.BlockSpec((1, FFN, HIDDEN), _idx_l3),                     # w2
        pl.BlockSpec((1, 1, HIDDEN), _idx_l3),                       # bf2
        pl.BlockSpec((1, 1, HIDDEN), _idx_l3),                       # ln2_g
        pl.BlockSpec((1, 1, HIDDEN), _idx_l3),                       # ln2_b
        pl.BlockSpec((HIDDEN, CLS_HIDDEN), _idx_c2),                 # cls w1a (resident)
        pl.BlockSpec((HIDDEN, CLS_HIDDEN), _idx_c2),                 # cls w1b
        pl.BlockSpec((1, CLS_HIDDEN), _idx_c2),                      # cls b1
        pl.BlockSpec((CLS_HIDDEN, CLS_OUT_PAD), _idx_c2),            # cls w2 (lane-padded)
        pl.BlockSpec((1, CLS_OUT_PAD), _idx_c2),                     # cls b2 (lane-padded)
    ]
    return pl.pallas_call(
        encoder_classifier_kernel,
        out_shape=jax.ShapeDtypeStruct((SEQ - 1, CLS_OUT_PAD), jnp.float32),
        grid=(NUM_LAYERS,),
        in_specs=in_specs,
        out_specs=pl.BlockSpec((SEQ - 1, CLS_OUT_PAD), _idx_c2),
        scratch_shapes=[pltpu.VMEM((SEQ, HIDDEN), jnp.float32)],
        compiler_params=pltpu.CompilerParams(
            # layer axis carries a sequential dependency; a batch-of-sequences axis marked
            # "parallel" would engage the 2nd TensorCore on v7x (batch=1 here).
            dimension_semantics=("arbitrary",),
        ),
    )(*in_arrays)


# ---------------------------- parameter init (deterministic) ---------------------------
def init_params(key):
    def nrm(k, shape, scale=0.02):
        return scale * jax.random.normal(k, shape, jnp.float32)

    keys = iter(jax.random.split(key, 12))
    L, H, NH, HD, F = NUM_LAYERS, HIDDEN, NUM_HEADS, HEAD_DIM, FFN

    params = {
        "word_emb": nrm(next(keys), (VOCAB, H)),
        "pos_emb": nrm(next(keys), (SEQ, H)),
        "type_emb": nrm(next(keys), (2, H)),
        "emb_ln_g": jnp.ones((1, H), jnp.float32),
        "emb_ln_b": jnp.zeros((1, H), jnp.float32),
    }
    # stacked per-layer weights, streamed over the layer grid axis
    params["layers"] = {
        "wq": nrm(next(keys), (L, NH, H, HD)), "bq": jnp.zeros((L, NH, 1, HD), jnp.float32),
        "wk": nrm(next(keys), (L, NH, H, HD)), "bk": jnp.zeros((L, NH, 1, HD), jnp.float32),
        "wv": nrm(next(keys), (L, NH, H, HD)), "bv": jnp.zeros((L, NH, 1, HD), jnp.float32),
        "wo": nrm(next(keys), (L, NH, HD, H)), "bo": jnp.zeros((L, 1, H), jnp.float32),
        "ln1_g": jnp.ones((L, 1, H), jnp.float32), "ln1_b": jnp.zeros((L, 1, H), jnp.float32),
        "w1": nrm(next(keys), (L, H, F)), "bf1": jnp.zeros((L, 1, F), jnp.float32),
        "w2": nrm(next(keys), (L, F, H)), "bf2": jnp.zeros((L, 1, H), jnp.float32),
        "ln2_g": jnp.ones((L, 1, H), jnp.float32), "ln2_b": jnp.zeros((L, 1, H), jnp.float32),
    }
    # classifier: W1 pre-split into halves (pair concat), output Linear lane-padded to 128
    w2_core = nrm(next(keys), (CLS_HIDDEN, NUM_CLASSES))
    params["cls"] = {
        "w1a": nrm(next(keys), (H, CLS_HIDDEN)),
        "w1b": nrm(next(keys), (H, CLS_HIDDEN)),
        "b1": jnp.zeros((1, CLS_HIDDEN), jnp.float32),
        "w2": jnp.zeros((CLS_HIDDEN, CLS_OUT_PAD), jnp.float32).at[:, :NUM_CLASSES].set(w2_core),
        "b2": jnp.zeros((1, CLS_OUT_PAD), jnp.float32),
    }
    return params


# ---------------------------- full forward (glue + fused kernel) ------------------------
def bert_word_seg_forward(token_ids, params, labels=None):
    # TODO(synk): BertTokenizer.convert_tokens_to_ids has no Pallas/JAX equivalent;
    #             the wrapper consumes integer token ids directly.
    S = token_ids.shape[0]
    emb = (params["word_emb"][token_ids]
           + params["pos_emb"][:S]
           + params["type_emb"][0][None, :])
    mu = jnp.mean(emb, axis=-1, keepdims=True)
    var = jnp.mean((emb - mu) ** 2, axis=-1, keepdims=True)
    h = (emb - mu) * jax.lax.rsqrt(var + LN_EPS) * params["emb_ln_g"] + params["emb_ln_b"]

    # ONE fused pallas_call: encoder stack (layer-streamed weights) + pair classifier.
    logits_padded = encoder_and_classifier(h, params)        # [S-1, CLS_OUT_PAD]
    logits = logits_padded[:, :NUM_CLASSES]                  # [S-1, 2]

    loss = None
    if labels is not None:
        y = labels[: S - 1]
        logp = jax.nn.log_softmax(logits, axis=-1)
        loss = -jnp.mean(jnp.take_along_axis(logp, y[:, None], axis=-1))
    return logits, loss


# ---------------------------- main ------------------------------------------------------
if __name__ == "__main__":
    key = jax.random.PRNGKey(0)
    k_params, k_tok, k_lab = jax.random.split(key, 3)

    params = init_params(k_params)
    token_ids = jax.random.randint(k_tok, (SEQ,), 0, VOCAB, dtype=jnp.int32)
    labels = jax.random.randint(k_lab, (SEQ,), 0, NUM_CLASSES, dtype=jnp.int32)

    logits, loss = bert_word_seg_forward(token_ids, params, labels=labels)
    jax.block_until_ready(logits)
    jax.block_until_ready(loss)
    assert logits.shape == (SEQ - 1, NUM_CLASSES)
    assert bool(jnp.isfinite(logits).all())
    assert bool(jnp.isfinite(loss))
    print("KERNEL_OK")
</pallas_src>

<mosaic_0001>
module attributes {stable_mosaic.version = 11 : i64} {
  func.func @encoder_classifier_kernel(%arg0: i32, %arg1: memref<8x128xf32, #tpu.memory_space<vmem>>, %arg2: memref<1x2x128x64xf32, #tpu.memory_space<vmem>>, %arg3: memref<1x2x1x64xf32, #tpu.memory_space<vmem>>, %arg4: memref<1x2x128x64xf32, #tpu.memory_space<vmem>>, %arg5: memref<1x2x1x64xf32, #tpu.memory_space<vmem>>, %arg6: memref<1x2x128x64xf32, #tpu.memory_space<vmem>>, %arg7: memref<1x2x1x64xf32, #tpu.memory_space<vmem>>, %arg8: memref<1x2x64x128xf32, #tpu.memory_space<vmem>>, %arg9: memref<1x1x128xf32, #tpu.memory_space<vmem>>, %arg10: memref<1x1x128xf32, #tpu.memory_space<vmem>>, %arg11: memref<1x1x128xf32, #tpu.memory_space<vmem>>, %arg12: memref<1x128x512xf32, #tpu.memory_space<vmem>>, %arg13: memref<1x1x512xf32, #tpu.memory_space<vmem>>, %arg14: memref<1x512x128xf32, #tpu.memory_space<vmem>>, %arg15: memref<1x1x128xf32, #tpu.memory_space<vmem>>, %arg16: memref<1x1x128xf32, #tpu.memory_space<vmem>>, %arg17: memref<1x1x128xf32, #tpu.memory_space<vmem>>, %arg18: memref<128x128xf32, #tpu.memory_space<vmem>>, %arg19: memref<128x128xf32, #tpu.memory_space<vmem>>, %arg20: memref<1x128xf32, #tpu.memory_space<vmem>>, %arg21: memref<128x128xf32, #tpu.memory_space<vmem>>, %arg22: memref<1x128xf32, #tpu.memory_space<vmem>>, %arg23: memref<7x128xf32, #tpu.memory_space<vmem>>, %arg24: memref<8x128xf32, #tpu.memory_space<vmem>>) attributes {dimension_semantics = [#tpu.dimension_semantics<arbitrary>], iteration_bounds = array<i64: 2>, scalar_prefetch = 0 : i64, scratch_operands = 1 : i64, tpu.core_type = #tpu.core_type<tc>, window_params = [{pipeline_mode = #tpu.pipeline_mode<synchronous>, transform_indices = @transform_0, window_bounds = array<i64: 8, 128>}, {transform_indices = @transform_1, window_bounds = array<i64: 1, 2, 128, 64>}, {transform_indices = @transform_2, window_bounds = array<i64: 1, 2, 1, 64>}, {transform_indices = @transform_3, window_bounds = array<i64: 1, 2, 128, 64>}, {transform_indices = @transform_4, window_bounds = array<i64: 1, 2, 1, 64>}, {transform_indices = @transform_5, window_bounds = array<i64: 1, 2, 128, 64>}, {transform_indices = @transform_6, window_bounds = array<i64: 1, 2, 1, 64>}, {transform_indices = @transform_7, window_bounds = array<i64: 1, 2, 64, 128>}, {transform_indices = @transform_8, window_bounds = array<i64: 1, 1, 128>}, {transform_indices = @transform_9, window_bounds = array<i64: 1, 1, 128>}, {transform_indices = @transform_10, window_bounds = array<i64: 1, 1, 128>}, {transform_indices = @transform_11, window_bounds = array<i64: 1, 128, 512>}, {transform_indices = @transform_12, window_bounds = array<i64: 1, 1, 512>}, {transform_indices = @transform_13, window_bounds = array<i64: 1, 512, 128>}, {transform_indices = @transform_14, window_bounds = array<i64: 1, 1, 128>}, {transform_indices = @transform_15, window_bounds = array<i64: 1, 1, 128>}, {transform_indices = @transform_16, window_bounds = array<i64: 1, 1, 128>}, {pipeline_mode = #tpu.pipeline_mode<synchronous>, transform_indices = @transform_17, window_bounds = array<i64: 128, 128>}, {pipeline_mode = #tpu.pipeline_mode<synchronous>, transform_indices = @transform_18, window_bounds = array<i64: 128, 128>}, {pipeline_mode = #tpu.pipeline_mode<synchronous>, transform_indices = @transform_19, window_bounds = array<i64: 1, 128>}, {pipeline_mode = #tpu.pipeline_mode<synchronous>, transform_indices = @transform_20, window_bounds = array<i64: 128, 128>}, {pipeline_mode = #tpu.pipeline_mode<synchronous>, transform_indices = @transform_21, window_bounds = array<i64: 1, 128>}, {pipeline_mode = #tpu.pipeline_mode<synchronous>, transform_indices = @transform_22, window_bounds = array<i64: 7, 128>}]} {
    %c0_i32 = arith.constant 0 : i32
    %0 = arith.cmpi eq, %arg0, %c0_i32 : i32
    %1 = arith.extui %0 : i1 to i32
    %c0_i32_0 = arith.constant 0 : i32
    %2 = arith.cmpi ne, %1, %c0_i32_0 : i32
    scf.if %2 {
      %c0_85 = arith.constant 0 : index
      %c0_86 = arith.constant 0 : index
      %135 = vector.load %arg1[%c0_85, %c0_86] : memref<8x128xf32, #tpu.memory_space<vmem>>, vector<8x128xf32>
      %c0_87 = arith.constant 0 : index
      %c0_88 = arith.constant 0 : index
      %136 = vector.load %arg24[%c0_87, %c0_88] : memref<8x128xf32, #tpu.memory_space<vmem>>, vector<8x128xf32>
      tpu.vector_store %arg24[%c0_87, %c0_88], %135 {strides = array<i32>} : memref<8x128xf32, #tpu.memory_space<vmem>>, vector<8x128xf32>,
    } else {
    }
    %c0 = arith.constant 0 : index
    %c0_1 = arith.constant 0 : index
    %3 = vector.load %arg24[%c0, %c0_1] : memref<8x128xf32, #tpu.memory_space<vmem>>, vector<8x128xf32>
    %c0_2 = arith.constant 0 : index
    %c0_3 = arith.constant 0 : index
    %c0_4 = arith.constant 0 : index
    %c0_5 = arith.constant 0 : index
    %4 = vector.load %arg2[%c0_2, %c0_3, %c0_4, %c0_5] : memref<1x2x128x64xf32, #tpu.memory_space<vmem>>, vector<1x2x128x64xf32>
    %5 = vector.shape_cast %4 : vector<1x2x128x64xf32> to vector<2x128x64xf32>
    %c0_6 = arith.constant 0 : index
    %c0_7 = arith.constant 0 : index
    %c0_8 = arith.constant 0 : index
    %c0_9 = arith.constant 0 : index
    %6 = vector.load %arg3[%c0_6, %c0_7, %c0_8, %c0_9] : memref<1x2x1x64xf32, #tpu.memory_space<vmem>>, vector<1x2x1x64xf32>
    %7 = vector.shape_cast %6 : vector<1x2x1x64xf32> to vector<2x1x64xf32>
    %c0_10 = arith.constant 0 : index
    %c0_11 = arith.constant 0 : index
    %c0_12 = arith.constant 0 : index
    %c0_13 = arith.constant 0 : index
    %8 = vector.load %arg4[%c0_10, %c0_11, %c0_12, %c0_13] : memref<1x2x128x64xf32, #tpu.memory_space<vmem>>, vector<1x2x128x64xf32>
    %9 = vector.shape_cast %8 : vector<1x2x128x64xf32> to vector<2x128x64xf32>
    %c0_14 = arith.constant 0 : index
    %c0_15 = arith.constant 0 : index
    %c0_16 = arith.constant 0 : index
    %c0_17 = arith.constant 0 : index
    %10 = vector.load %arg5[%c0_14, %c0_15, %c0_16, %c0_17] : memref<1x2x1x64xf32, #tpu.memory_space<vmem>>, vector<1x2x1x64xf32>
    %11 = vector.shape_cast %10 : vector<1x2x1x64xf32> to vector<2x1x64xf32>
    %c0_18 = arith.constant 0 : index
    %c0_19 = arith.constant 0 : index
    %c0_20 = arith.constant 0 : index
    %c0_21 = arith.constant 0 : index
    %12 = vector.load %arg6[%c0_18, %c0_19, %c0_20, %c0_21] : memref<1x2x128x64xf32, #tpu.memory_space<vmem>>, vector<1x2x128x64xf32>
    %13 = vector.shape_cast %12 : vector<1x2x128x64xf32> to vector<2x128x64xf32>
    %c0_22 = arith.constant 0 : index
    %c0_23 = arith.constant 0 : index
    %c0_24 = arith.constant 0 : index
    %c0_25 = arith.constant 0 : index
    %14 = vector.load %arg7[%c0_22, %c0_23, %c0_24, %c0_25] : memref<1x2x1x64xf32, #tpu.memory_space<vmem>>, vector<1x2x1x64xf32>
    %15 = vector.shape_cast %14 : vector<1x2x1x64xf32> to vector<2x1x64xf32>
    %c0_26 = arith.constant 0 : index
    %c0_27 = arith.constant 0 : index
    %c0_28 = arith.constant 0 : index
    %c0_29 = arith.constant 0 : index
    %16 = vector.load %arg8[%c0_26, %c0_27, %c0_28, %c0_29] : memref<1x2x64x128xf32, #tpu.memory_space<vmem>>, vector<1x2x64x128xf32>
    %17 = vector.shape_cast %16 : vector<1x2x64x128xf32> to vector<2x64x128xf32>
    %18 = vector.shape_cast %3 : vector<8x128xf32> to vector<1x8x128xf32>
    %19 = vector.shape_cast %18 : vector<1x8x128xf32> to vector<1x8x128xf32>
    %20 = vector.broadcast %19 : vector<1x8x128xf32> to vector<2x8x128xf32>
    "tpu.trace_start"() <{level = 10 : i32, message = "nsh,nhd->nsd"}> : () -> ()
    %cst = arith.constant dense<0.000000e+00> : vector<2x8x64xf32>
    %21 = tpu.matmul %20, %5, %cst {dimension_numbers = #tpu.dot_dimension_numbers<[2], [1], [1], [2], [0, 0, 0, 1, 1, 2], [0], [0]>} : vector<2x8x128xf32>, vector<2x128x64xf32>, vector<2x8x64xf32> -> vector<2x8x64xf32>
    "tpu.trace_stop"() : () -> ()
    %22 = vector.broadcast %7 : vector<2x1x64xf32> to vector<2x8x64xf32>
    %23 = arith.addf %21, %22 : vector<2x8x64xf32>
    "tpu.trace_start"() <{level = 10 : i32, message = "nsh,nhd->nsd"}> : () -> ()
    %cst_30 = arith.constant dense<0.000000e+00> : vector<2x8x64xf32>
    %24 = tpu.matmul %20, %9, %cst_30 {dimension_numbers = #tpu.dot_dimension_numbers<[2], [1], [1], [2], [0, 0, 0, 1, 1, 2], [0], [0]>} : vector<2x8x128xf32>, vector<2x128x64xf32>, vector<2x8x64xf32> -> vector<2x8x64xf32>
    "tpu.trace_stop"() : () -> ()
    %25 = vector.broadcast %11 : vector<2x1x64xf32> to vector<2x8x64xf32>
    %26 = arith.addf %24, %25 : vector<2x8x64xf32>
    "tpu.trace_start"() <{level = 10 : i32, message = "nsh,nhd->nsd"}> : () -> ()
    %cst_31 = arith.constant dense<0.000000e+00> : vector<2x8x64xf32>
    %27 = tpu.matmul %20, %13, %cst_31 {dimension_numbers = #tpu.dot_dimension_numbers<[2], [1], [1], [2], [0, 0, 0, 1, 1, 2], [0], [0]>} : vector<2x8x128xf32>, vector<2x128x64xf32>, vector<2x8x64xf32> -> vector<2x8x64xf32>
    "tpu.trace_stop"() : () -> ()
    %28 = vector.broadcast %15 : vector<2x1x64xf32> to vector<2x8x64xf32>
    %29 = arith.addf %27, %28 : vector<2x8x64xf32>
    "tpu.trace_start"() <{level = 10 : i32, message = "nqd,nkd->nqk"}> : () -> ()
    %cst_32 = arith.constant dense<0.000000e+00> : vector<2x8x8xf32>
    %30 = tpu.matmul %23, %26, %cst_32 {dimension_numbers = #tpu.dot_dimension_numbers<[2], [2], [1], [1], [0, 0, 0, 1, 1, 1], [0], [0]>} : vector<2x8x64xf32>, vector<2x8x64xf32>, vector<2x8x8xf32> -> vector<2x8x8xf32>
    "tpu.trace_stop"() : () -> ()
    %cst_33 = arith.constant 1.250000e-01 : f32
    %31 = vector.broadcast %cst_33 : f32 to vector<2x8x8xf32>
    %32 = arith.mulf %30, %31 : vector<2x8x8xf32>
    %cst_34 = arith.constant dense<0xFF800000> : vector<2x8xf32>
    %33 = vector.multi_reduction <maximumf>, %32, %cst_34 [2] : vector<2x8x8xf32> to vector<2x8xf32>
    %34 = vector.shape_cast %33 : vector<2x8xf32> to vector<2x8x1xf32>
    %35 = vector.broadcast %34 : vector<2x8x1xf32> to vector<2x8x8xf32>
    %36 = arith.subf %32, %35 : vector<2x8x8xf32>
    %37 = math.exp %36 : vector<2x8x8xf32>
    %cst_35 = arith.constant dense<0.000000e+00> : vector<2x8xf32>
    %38 = vector.multi_reduction <add>, %37, %cst_35 [2] : vector<2x8x8xf32> to vector<2x8xf32>
    %39 = vector.shape_cast %38 : vector<2x8xf32> to vector<2x8x1xf32>
    %40 = tpu.reciprocal %39 {approx = true} : vector<2x8x1xf32> -> vector<2x8x1xf32>
    %41 = vector.broadcast %40 : vector<2x8x1xf32> to vector<2x8x8xf32>
    %42 = arith.mulf %37, %41 : vector<2x8x8xf32>
    "tpu.trace_start"() <{level = 10 : i32, message = "nqk,nkd->nqd"}> : () -> ()
    %cst_36 = arith.constant dense<0.000000e+00> : vector<2x8x64xf32>
    %43 = tpu.matmul %42, %29, %cst_36 {dimension_numbers = #tpu.dot_dimension_numbers<[2], [1], [1], [2], [0, 0, 0, 1, 1, 2], [0], [0]>} : vector<2x8x8xf32>, vector<2x8x64xf32>, vector<2x8x64xf32> -> vector<2x8x64xf32>
    "tpu.trace_stop"() : () -> ()
    "tpu.trace_start"() <{level = 10 : i32, message = "nqd,ndh->nqh"}> : () -> ()
    %cst_37 = arith.constant dense<0.000000e+00> : vector<2x8x128xf32>
    %44 = tpu.matmul %43, %17, %cst_37 {dimension_numbers = #tpu.dot_dimension_numbers<[2], [1], [1], [2], [0, 0, 0, 1, 1, 2], [0], [0]>} : vector<2x8x64xf32>, vector<2x64x128xf32>, vector<2x8x128xf32> -> vector<2x8x128xf32>
    "tpu.trace_stop"() : () -> ()
    %cst_38 = arith.constant dense<0.000000e+00> : vector<8x128xf32>
    %45 = vector.multi_reduction <add>, %44, %cst_38 [0] : vector<2x8x128xf32> to vector<8x128xf32>
    %c0_39 = arith.constant 0 : index
    %c0_40 = arith.constant 0 : index
    %c0_41 = arith.constant 0 : index
    %46 = vector.load %arg9[%c0_39, %c0_40, %c0_41] : memref<1x1x128xf32, #tpu.memory_space<vmem>>, vector<1x1x128xf32>
    %47 = vector.shape_cast %46 : vector<1x1x128xf32> to vector<1x128xf32>
    %48 = vector.broadcast %47 : vector<1x128xf32> to vector<8x128xf32>
    %49 = arith.addf %45, %48 : vector<8x128xf32>
    %50 = arith.addf %3, %49 : vector<8x128xf32>
    %c0_42 = arith.constant 0 : index
    %c0_43 = arith.constant 0 : index
    %c0_44 = arith.constant 0 : index
    %51 = vector.load %arg10[%c0_42, %c0_43, %c0_44] : memref<1x1x128xf32, #tpu.memory_space<vmem>>, vector<1x1x128xf32>
    %52 = vector.shape_cast %51 : vector<1x1x128xf32> to vector<1x128xf32>
    %c0_45 = arith.constant 0 : index
    %c0_46 = arith.constant 0 : index
    %c0_47 = arith.constant 0 : index
    %53 = vector.load %arg11[%c0_45, %c0_46, %c0_47] : memref<1x1x128xf32, #tpu.memory_space<vmem>>, vector<1x1x128xf32>
    %54 = vector.shape_cast %53 : vector<1x1x128xf32> to vector<1x128xf32>
    %cst_48 = arith.constant dense<0.000000e+00> : vector<8xf32>
    %55 = vector.multi_reduction <add>, %50, %cst_48 [1] : vector<8x128xf32> to vector<8xf32>
    %56 = vector.shape_cast %55 : vector<8xf32> to vector<8x1xf32>
    %cst_49 = arith.constant 1.280000e+02 : f32
    %57 = vector.broadcast %cst_49 : f32 to vector<8x1xf32>
    %58 = arith.divf %56, %57 : vector<8x1xf32>
    %59 = vector.broadcast %58 : vector<8x1xf32> to vector<8x128xf32>
    %60 = arith.subf %50, %59 : vector<8x128xf32>
    %61 = arith.mulf %60, %60 : vector<8x128xf32>
    %cst_50 = arith.constant dense<0.000000e+00> : vector<8xf32>
    %62 = vector.multi_reduction <add>, %61, %cst_50 [1] : vector<8x128xf32> to vector<8xf32>
    %63 = vector.shape_cast %62 : vector<8xf32> to vector<8x1xf32>
    %cst_51 = arith.constant 1.280000e+02 : f32
    %64 = vector.broadcast %cst_51 : f32 to vector<8x1xf32>
    %65 = arith.divf %63, %64 : vector<8x1xf32>
    %66 = vector.broadcast %58 : vector<8x1xf32> to vector<8x128xf32>
    %67 = arith.subf %50, %66 : vector<8x128xf32>
    %cst_52 = arith.constant 9.99999996E-13 : f32
    %68 = vector.broadcast %cst_52 : f32 to vector<8x1xf32>
    %69 = arith.addf %65, %68 : vector<8x1xf32>
    %70 = math.rsqrt %69 : vector<8x1xf32>
    %71 = vector.broadcast %70 : vector<8x1xf32> to vector<8x128xf32>
    %72 = arith.mulf %67, %71 : vector<8x128xf32>
    %73 = vector.broadcast %52 : vector<1x128xf32> to vector<8x128xf32>
    %74 = arith.mulf %72, %73 : vector<8x128xf32>
    %75 = vector.broadcast %54 : vector<1x128xf32> to vector<8x128xf32>
    %76 = arith.addf %74, %75 : vector<8x128xf32>
    %c0_53 = arith.constant 0 : index
    %c0_54 = arith.constant 0 : index
    %c0_55 = arith.constant 0 : index
    %77 = vector.load %arg12[%c0_53, %c0_54, %c0_55] : memref<1x128x512xf32, #tpu.memory_space<vmem>>, vector<1x128x512xf32>
    %78 = vector.shape_cast %77 : vector<1x128x512xf32> to vector<128x512xf32>
    %cst_56 = arith.constant dense<0.000000e+00> : vector<8x512xf32>
    %79 = tpu.matmul %76, %78, %cst_56 {dimension_numbers = #tpu.dot_dimension_numbers<[1], [0], [0], [1], [0, 0, 1, 1], [], []>} : vector<8x128xf32>, vector<128x512xf32>, vector<8x512xf32> -> vector<8x512xf32>
    %c0_57 = arith.constant 0 : index
    %c0_58 = arith.constant 0 : index
    %c0_59 = arith.constant 0 : index
    %80 = vector.load %arg13[%c0_57, %c0_58, %c0_59] : memref<1x1x512xf32, #tpu.memory_space<vmem>>, vector<1x1x512xf32>
    %81 = vector.shape_cast %80 : vector<1x1x512xf32> to vector<1x512xf32>
    %82 = vector.broadcast %81 : vector<1x512xf32> to vector<8x512xf32>
    %83 = arith.addf %79, %82 : vector<8x512xf32>
    %cst_60 = arith.constant 5.000000e-01 : f32
    %84 = vector.broadcast %cst_60 : f32 to vector<8x512xf32>
    %85 = arith.mulf %84, %83 : vector<8x512xf32>
    %cst_61 = arith.constant 4.471500e-02 : f32
    %86 = vector.broadcast %cst_61 : f32 to vector<8x512xf32>
    %87 = arith.mulf %86, %83 : vector<8x512xf32>
    %88 = arith.mulf %87, %83 : vector<8x512xf32>
    %89 = arith.mulf %88, %83 : vector<8x512xf32>
    %90 = arith.addf %83, %89 : vector<8x512xf32>
    %cst_62 = arith.constant 0.797884583 : f32
    %91 = vector.broadcast %cst_62 : f32 to vector<8x512xf32>
    %92 = arith.mulf %91, %90 : vector<8x512xf32>
    %93 = math.tanh %92 : vector<8x512xf32>
    %cst_63 = arith.constant 1.000000e+00 : f32
    %94 = vector.broadcast %cst_63 : f32 to vector<8x512xf32>
    %95 = arith.addf %94, %93 : vector<8x512xf32>
    %96 = arith.mulf %85, %95 : vector<8x512xf32>
    %c0_64 = arith.constant 0 : index
    %c0_65 = arith.constant 0 : index
    %c0_66 = arith.constant 0 : index
    %97 = vector.load %arg14[%c0_64, %c0_65, %c0_66] : memref<1x512x128xf32, #tpu.memory_space<vmem>>, vector<1x512x128xf32>
    %98 = vector.shape_cast %97 : vector<1x512x128xf32> to vector<512x128xf32>
    %cst_67 = arith.constant dense<0.000000e+00> : vector<8x128xf32>
    %99 = tpu.matmul %96, %98, %cst_67 {dimension_numbers = #tpu.dot_dimension_numbers<[1], [0], [0], [1], [0, 0, 1, 1], [], []>} : vector<8x512xf32>, vector<512x128xf32>, vector<8x128xf32> -> vector<8x128xf32>
    %c0_68 = arith.constant 0 : index
    %c0_69 = arith.constant 0 : index
    %c0_70 = arith.constant 0 : index
    %100 = vector.load %arg15[%c0_68, %c0_69, %c0_70] : memref<1x1x128xf32, #tpu.memory_space<vmem>>, vector<1x1x128xf32>
    %101 = vector.shape_cast %100 : vector<1x1x128xf32> to vector<1x128xf32>
    %102 = vector.broadcast %101 : vector<1x128xf32> to vector<8x128xf32>
    %103 = arith.addf %99, %102 : vector<8x128xf32>
    %104 = arith.addf %76, %103 : vector<8x128xf32>
    %c0_71 = arith.constant 0 : index
    %c0_72 = arith.constant 0 : index
    %c0_73 = arith.constant 0 : index
    %105 = vector.load %arg16[%c0_71, %c0_72, %c0_73] : memref<1x1x128xf32, #tpu.memory_space<vmem>>, vector<1x1x128xf32>
    %106 = vector.shape_cast %105 : vector<1x1x128xf32> to vector<1x128xf32>
    %c0_74 = arith.constant 0 : index
    %c0_75 = arith.constant 0 : index
    %c0_76 = arith.constant 0 : index
    %107 = vector.load %arg17[%c0_74, %c0_75, %c0_76] : memref<1x1x128xf32, #tpu.memory_space<vmem>>, vector<1x1x128xf32>
    %108 = vector.shape_cast %107 : vector<1x1x128xf32> to vector<1x128xf32>
    %cst_77 = arith.constant dense<0.000000e+00> : vector<8xf32>
    %109 = vector.multi_reduction <add>, %104, %cst_77 [1] : vector<8x128xf32> to vector<8xf32>
    %110 = vector.shape_cast %109 : vector<8xf32> to vector<8x1xf32>
    %cst_78 = arith.constant 1.280000e+02 : f32
    %111 = vector.broadcast %cst_78 : f32 to vector<8x1xf32>
    %112 = arith.divf %110, %111 : vector<8x1xf32>
    %113 = vector.broadcast %112 : vector<8x1xf32> to vector<8x128xf32>
    %114 = arith.subf %104, %113 : vector<8x128xf32>
    %115 = arith.mulf %114, %114 : vector<8x128xf32>
    %cst_79 = arith.constant dense<0.000000e+00> : vector<8xf32>
    %116 = vector.multi_reduction <add>, %115, %cst_79 [1] : vector<8x128xf32> to vector<8xf32>
    %117 = vector.shape_cast %116 : vector<8xf32> to vector<8x1xf32>
    %cst_80 = arith.constant 1.280000e+02 : f32
    %118 = vector.broadcast %cst_80 : f32 to vector<8x1xf32>
    %119 = arith.divf %117, %118 : vector<8x1xf32>
    %120 = vector.broadcast %112 : vector<8x1xf32> to vector<8x128xf32>
    %121 = arith.subf %104, %120 : vector<8x128xf32>
    %cst_81 = arith.constant 9.99999996E-13 : f32
    %122 = vector.broadcast %cst_81 : f32 to vector<8x1xf32>
    %123 = arith.addf %119, %122 : vector<8x1xf32>
    %124 = math.rsqrt %123 : vector<8x1xf32>
    %125 = vector.broadcast %124 : vector<8x1xf32> to vector<8x128xf32>
    %126 = arith.mulf %121, %125 : vector<8x128xf32>
    %127 = vector.broadcast %106 : vector<1x128xf32> to vector<8x128xf32>
    %128 = arith.mulf %126, %127 : vector<8x128xf32>
    %129 = vector.broadcast %108 : vector<1x128xf32> to vector<8x128xf32>
    %130 = arith.addf %128, %129 : vector<8x128xf32>
    %c0_82 = arith.constant 0 : index
    %c0_83 = arith.constant 0 : index
    %131 = vector.load %arg24[%c0_82, %c0_83] : memref<8x128xf32, #tpu.memory_space<vmem>>, vector<8x128xf32>
    tpu.vector_store %arg24[%c0_82, %c0_83], %130 {strides = array<i32>} : memref<8x128xf32, #tpu.memory_space<vmem>>, vector<8x128xf32>,
    %c1_i32 = arith.constant 1 : i32
    %132 = arith.cmpi eq, %arg0, %c1_i32 : i32
    %133 = arith.extui %132 : i1 to i32
    %c0_i32_84 = arith.constant 0 : i32
    %134 = arith.cmpi ne, %133, %c0_i32_84 : i32
    scf.if %134 {
      %135 = vector.extract_strided_slice %130 {offsets = [0, 0], sizes = [7, 128], strides = [1, 1]} : vector<8x128xf32> to vector<7x128xf32>
      %136 = vector.extract_strided_slice %130 {offsets = [1, 0], sizes = [7, 128], strides = [1, 1]} : vector<8x128xf32> to vector<7x128xf32>
      %c0_85 = arith.constant 0 : index
      %c0_86 = arith.constant 0 : index
      %137 = vector.load %arg18[%c0_85, %c0_86] : memref<128x128xf32, #tpu.memory_space<vmem>>, vector<128x128xf32>
      %cst_87 = arith.constant dense<0.000000e+00> : vector<7x128xf32>
      %138 = tpu.matmul %135, %137, %cst_87 {dimension_numbers = #tpu.dot_dimension_numbers<[1], [0], [0], [1], [0, 0, 1, 1], [], []>} : vector<7x128xf32>, vector<128x128xf32>, vector<7x128xf32> -> vector<7x128xf32>
      %c0_88 = arith.constant 0 : index
      %c0_89 = arith.constant 0 : index
      %139 = vector.load %arg19[%c0_88, %c0_89] : memref<128x128xf32, #tpu.memory_space<vmem>>, vector<128x128xf32>
      %cst_90 = arith.constant dense<0.000000e+00> : vector<7x128xf32>
      %140 = tpu.matmul %136, %139, %cst_90 {dimension_numbers = #tpu.dot_dimension_numbers<[1], [0], [0], [1], [0, 0, 1, 1], [], []>} : vector<7x128xf32>, vector<128x128xf32>, vector<7x128xf32> -> vector<7x128xf32>
      %141 = arith.addf %138, %140 : vector<7x128xf32>
      %c0_91 = arith.constant 0 : index
      %c0_92 = arith.constant 0 : index
      %142 = vector.load %arg20[%c0_91, %c0_92] : memref<1x128xf32, #tpu.memory_space<vmem>>, vector<1x128xf32>
      %143 = vector.broadcast %142 : vector<1x128xf32> to vector<7x128xf32>
      %144 = arith.addf %141, %143 : vector<7x128xf32>
      %cst_93 = arith.constant 0.000000e+00 : f32
      %145 = vector.broadcast %cst_93 : f32 to vector<7x128xf32>
      %146 = arith.maximumf %144, %145 : vector<7x128xf32>
      %c0_94 = arith.constant 0 : index
      %c0_95 = arith.constant 0 : index
      %147 = vector.load %arg21[%c0_94, %c0_95] : memref<128x128xf32, #tpu.memory_space<vmem>>, vector<128x128xf32>
      %cst_96 = arith.constant dense<0.000000e+00> : vector<7x128xf32>
      %148 = tpu.matmul %146, %147, %cst_96 {dimension_numbers = #tpu.dot_dimension_numbers<[1], [0], [0], [1], [0, 0, 1, 1], [], []>} : vector<7x128xf32>, vector<128x128xf32>, vector<7x128xf32> -> vector<7x128xf32>
      %c0_97 = arith.constant 0 : index
      %c0_98 = arith.constant 0 : index
      %149 = vector.load %arg22[%c0_97, %c0_98] : memref<1x128xf32, #tpu.memory_space<vmem>>, vector<1x128xf32>
      %150 = vector.broadcast %149 : vector<1x128xf32> to vector<7x128xf32>
      %151 = arith.addf %148, %150 : vector<7x128xf32>
      %c0_99 = arith.constant 0 : index
      %c0_100 = arith.constant 0 : index
      %152 = vector.load %arg23[%c0_99, %c0_100] : memref<7x128xf32, #tpu.memory_space<vmem>>, vector<7x128xf32>
      tpu.vector_store %arg23[%c0_99, %c0_100], %151 {strides = array<i32>} : memref<7x128xf32, #tpu.memory_space<vmem>>, vector<7x128xf32>,
    } else {
    }
    return
  }
  func.func @transform_0(%arg0: i32) -> (i32, i32) {
    %c0_i32 = arith.constant 0 : i32
    %c0_i32_0 = arith.constant 0 : i32
    %c0_i32_1 = arith.constant 0 : i32
    return %c0_i32, %c0_i32_0 : i32, i32
  }
  func.func @transform_1(%arg0: i32) -> (i32, i32, i32, i32) {
    %c0_i32 = arith.constant 0 : i32
    %c0_i32_0 = arith.constant 0 : i32
    %c0_i32_1 = arith.constant 0 : i32
    %c0_i32_2 = arith.constant 0 : i32
    return %arg0, %c0_i32, %c0_i32_0, %c0_i32_1 : i32, i32, i32, i32
  }
  func.func @transform_2(%arg0: i32) -> (i32, i32, i32, i32) {
    %c0_i32 = arith.constant 0 : i32
    %c0_i32_0 = arith.constant 0 : i32
    %c0_i32_1 = arith.constant 0 : i32
    %c0_i32_2 = arith.constant 0 : i32
    return %arg0, %c0_i32, %c0_i32_0, %c0_i32_1 : i32, i32, i32, i32
  }
  func.func @transform_3(%arg0: i32) -> (i32, i32, i32, i32) {
    %c0_i32 = arith.constant 0 : i32
    %c0_i32_0 = arith.constant 0 : i32
    %c0_i32_1 = arith.constant 0 : i32
    %c0_i32_2 = arith.constant 0 : i32
    return %arg0, %c0_i32, %c0_i32_0, %c0_i32_1 : i32, i32, i32, i32
  }
  func.func @transform_4(%arg0: i32) -> (i32, i32, i32, i32) {
    %c0_i32 = arith.constant 0 : i32
    %c0_i32_0 = arith.constant 0 : i32
    %c0_i32_1 = arith.constant 0 : i32
    %c0_i32_2 = arith.constant 0 : i32
    return %arg0, %c0_i32, %c0_i32_0, %c0_i32_1 : i32, i32, i32, i32
  }
  func.func @transform_5(%arg0: i32) -> (i32, i32, i32, i32) {
    %c0_i32 = arith.constant 0 : i32
    %c0_i32_0 = arith.constant 0 : i32
    %c0_i32_1 = arith.constant 0 : i32
    %c0_i32_2 = arith.constant 0 : i32
    return %arg0, %c0_i32, %c0_i32_0, %c0_i32_1 : i32, i32, i32, i32
  }
  func.func @transform_6(%arg0: i32) -> (i32, i32, i32, i32) {
    %c0_i32 = arith.constant 0 : i32
    %c0_i32_0 = arith.constant 0 : i32
    %c0_i32_1 = arith.constant 0 : i32
    %c0_i32_2 = arith.constant 0 : i32
    return %arg0, %c0_i32, %c0_i32_0, %c0_i32_1 : i32, i32, i32, i32
  }
  func.func @transform_7(%arg0: i32) -> (i32, i32, i32, i32) {
    %c0_i32 = arith.constant 0 : i32
    %c0_i32_0 = arith.constant 0 : i32
    %c0_i32_1 = arith.constant 0 : i32
    %c0_i32_2 = arith.constant 0 : i32
    return %arg0, %c0_i32, %c0_i32_0, %c0_i32_1 : i32, i32, i32, i32
  }
  func.func @transform_8(%arg0: i32) -> (i32, i32, i32) {
    %c0_i32 = arith.constant 0 : i32
    %c0_i32_0 = arith.constant 0 : i32
    %c0_i32_1 = arith.constant 0 : i32
    return %arg0, %c0_i32, %c0_i32_0 : i32, i32, i32
  }
  func.func @transform_9(%arg0: i32) -> (i32, i32, i32) {
    %c0_i32 = arith.constant 0 : i32
    %c0_i32_0 = arith.constant 0 : i32
    %c0_i32_1 = arith.constant 0 : i32
    return %arg0, %c0_i32, %c0_i32_0 : i32, i32, i32
  }
  func.func @transform_10(%arg0: i32) -> (i32, i32, i32) {
    %c0_i32 = arith.constant 0 : i32
    %c0_i32_0 = arith.constant 0 : i32
    %c0_i32_1 = arith.constant 0 : i32
    return %arg0, %c0_i32, %c0_i32_0 : i32, i32, i32
  }
  func.func @transform_11(%arg0: i32) -> (i32, i32, i32) {
    %c0_i32 = arith.constant 0 : i32
    %c0_i32_0 = arith.constant 0 : i32
    %c0_i32_1 = arith.constant 0 : i32
    return %arg0, %c0_i32, %c0_i32_0 : i32, i32, i32
  }
  func.func @transform_12(%arg0: i32) -> (i32, i32, i32) {
    %c0_i32 = arith.constant 0 : i32
    %c0_i32_0 = arith.constant 0 : i32
    %c0_i32_1 = arith.constant 0 : i32
    return %arg0, %c0_i32, %c0_i32_0 : i32, i32, i32
  }
  func.func @transform_13(%arg0: i32) -> (i32, i32, i32) {
    %c0_i32 = arith.constant 0 : i32
    %c0_i32_0 = arith.constant 0 : i32
    %c0_i32_1 = arith.constant 0 : i32
    return %arg0, %c0_i32, %c0_i32_0 : i32, i32, i32
  }
  func.func @transform_14(%arg0: i32) -> (i32, i32, i32) {
    %c0_i32 = arith.constant 0 : i32
    %c0_i32_0 = arith.constant 0 : i32
    %c0_i32_1 = arith.constant 0 : i32
    return %arg0, %c0_i32, %c0_i32_0 : i32, i32, i32
  }
  func.func @transform_15(%arg0: i32) -> (i32, i32, i32) {
    %c0_i32 = arith.constant 0 : i32
    %c0_i32_0 = arith.constant 0 : i32
    %c0_i32_1 = arith.constant 0 : i32
    return %arg0, %c0_i32, %c0_i32_0 : i32, i32, i32
  }
  func.func @transform_16(%arg0: i32) -> (i32, i32, i32) {
    %c0_i32 = arith.constant 0 : i32
    %c0_i32_0 = arith.constant 0 : i32
    %c0_i32_1 = arith.constant 0 : i32
    return %arg0, %c0_i32, %c0_i32_0 : i32, i32, i32
  }
  func.func @transform_17(%arg0: i32) -> (i32, i32) {
    %c0_i32 = arith.constant 0 : i32
    %c0_i32_0 = arith.constant 0 : i32
    %c0_i32_1 = arith.constant 0 : i32
    return %c0_i32, %c0_i32_0 : i32, i32
  }
  func.func @transform_18(%arg0: i32) -> (i32, i32) {
    %c0_i32 = arith.constant 0 : i32
    %c0_i32_0 = arith.constant 0 : i32
    %c0_i32_1 = arith.constant 0 : i32
    return %c0_i32, %c0_i32_0 : i32, i32
  }
  func.func @transform_19(%arg0: i32) -> (i32, i32) {
    %c0_i32 = arith.constant 0 : i32
    %c0_i32_0 = arith.constant 0 : i32
    %c0_i32_1 = arith.constant 0 : i32
    return %c0_i32, %c0_i32_0 : i32, i32
  }
  func.func @transform_20(%arg0: i32) -> (i32, i32) {
    %c0_i32 = arith.constant 0 : i32
    %c0_i32_0 = arith.constant 0 : i32
    %c0_i32_1 = arith.constant 0 : i32
    return %c0_i32, %c0_i32_0 : i32, i32
  }
  func.func @transform_21(%arg0: i32) -> (i32, i32) {
    %c0_i32 = arith.constant 0 : i32
    %c0_i32_0 = arith.constant 0 : i32
    %c0_i32_1 = arith.constant 0 : i32
    return %c0_i32, %c0_i32_0 : i32, i32
  }
  func.func @transform_22(%arg0: i32) -> (i32, i32) {
    %c0_i32 = arith.constant 0 : i32
    %c0_i32_0 = arith.constant 0 : i32
    %c0_i32_1 = arith.constant 0 : i32
    return %c0_i32, %c0_i32_0 : i32, i32
  }
}

</mosaic_0001>

<llo_original>
// kernel: tpu_custom_call.1
$region0: #{tpu_custom_call.1}
  #allocation0 [shape = 'u32[]', space=smem, size = 0x4, offset = 0x4, fixed_abs, tag = 'smem constant byte address 0x4 - core index']
  #allocation1 [shape = 'u32[144,128]{1,0:T(1,128)}', space=vmem, size = 0x12000, scoped, tag = 'internal scratch']
  #allocation2 [shape = 'f32[8,128]{1,0:T(8,128)}', space=vmem, size = 0x1000, scoped, tag = 'scratch operand']
  %s0 = inlined_call_operand.hbm [shape: f32[8,128], index: 0, kind: input, shape index: {}]
  %s1 = inlined_call_operand.vmem [shape: f32[2,2,128,64], index: 1, kind: input, shape index: {}]
  %s2 = inlined_call_operand.hbm [shape: f32[2,2,1,64], index: 2, kind: input, shape index: {}]
  %s3 = inlined_call_operand.vmem [shape: f32[2,2,128,64], index: 3, kind: input, shape index: {}]
  %s4 = inlined_call_operand.hbm [shape: f32[2,2,1,64], index: 4, kind: input, shape index: {}]
  %s5 = inlined_call_operand.vmem [shape: f32[2,2,128,64], index: 5, kind: input, shape index: {}]
  %s6 = inlined_call_operand.hbm [shape: f32[2,2,1,64], index: 6, kind: input, shape index: {}]
  %s7 = inlined_call_operand.vmem [shape: f32[2,2,64,128], index: 7, kind: input, shape index: {}]
  %s8 = inlined_call_operand.hbm [shape: f32[2,1,128], index: 8, kind: input, shape index: {}]
  %s9 = inlined_call_operand.hbm [shape: f32[2,1,128], index: 9, kind: input, shape index: {}]
  %s10 = inlined_call_operand.hbm [shape: f32[2,1,128], index: 10, kind: input, shape index: {}]
  %s11 = inlined_call_operand.vmem [shape: f32[2,128,512], index: 11, kind: input, shape index: {}]
  %s12 = inlined_call_operand.hbm [shape: f32[2,1,512], index: 12, kind: input, shape index: {}]
  %s13 = inlined_call_operand.vmem [shape: f32[2,512,128], index: 13, kind: input, shape index: {}]
  %s14 = inlined_call_operand.vmem [shape: f32[2,1,128], index: 14, kind: input, shape index: {}]
  %s15 = inlined_call_operand.vmem [shape: f32[2,1,128], index: 15, kind: input, shape index: {}]
  %s16 = inlined_call_operand.vmem [shape: f32[2,1,128], index: 16, kind: input, shape index: {}]
  %s17 = inlined_call_operand.hbm [shape: f32[128,128], index: 17, kind: input, shape index: {}]
  %s18 = inlined_call_operand.hbm [shape: f32[128,128], index: 18, kind: input, shape index: {}]
  %s19 = inlined_call_operand.vmem [shape: f32[1,128], index: 19, kind: input, shape index: {}]
  %s20 = inlined_call_operand.hbm [shape: f32[128,128], index: 20, kind: input, shape index: {}]
  %s21 = inlined_call_operand.vmem [shape: f32[1,128], index: 21, kind: input, shape index: {}]
  %s22 = inlined_call_operand.hbm [shape: f32[7,128], index: 22, kind: output, shape index: {}]
  %s23 = sld [smem:[#allocation0]]
  $region173: #{tpu_custom_call.1} parent=0
    _
  %s25 = ssub.s32 1, %s23
  %s26 = scalar_select 0, %s25, %s23
  $region1: #{tpu_custom_call.1} parent=0
    #allocation3 [shape = 'u8[4096]{0}', space=vmem, size = 0x1000, scoped, tag = 'input window, operand 0, single buffered']
    #allocation4 [shape = 's32[2]{0}', space=sflag, size = 0x8, scoped, tag = 'scoped memory for tpu_custom_call.1']
    #allocation5 [shape = 's32[2]{0}', space=sflag, size = 0x8, scoped, tag = 'scoped memory for tpu_custom_call.1']
    #allocation6 [shape = 'u8[2048]{0}', space=vmem, size = 0x800, scoped, tag = 'input window, operand 2']
    #allocation7 [shape = 's32[2]{0}', space=sflag, size = 0x8, scoped, tag = 'scoped memory for tpu_custom_call.1']
    #allocation8 [shape = 'u8[2048]{0}', space=vmem, size = 0x800, scoped, tag = 'input window, operand 4']
    #allocation9 [shape = 'u8[2048]{0}', space=vmem, size = 0x800, scoped, tag = 'input window, operand 6']
    #allocation10 [shape = 's32[2]{0}', space=sflag, size = 0x8, scoped, tag = 'scoped memory for tpu_custom_call.1']
    #allocation11 [shape = 'u8[1024]{0}', space=vmem, size = 0x400, scoped, tag = 'input window, operand 8']
    #allocation12 [shape = 'u8[1024]{0}', space=vmem, size = 0x400, scoped, tag = 'input window, operand 9']
    #allocation13 [shape = 's32[2]{0}', space=sflag, size = 0x8, scoped, tag = 'scoped memory for tpu_custom_call.1']
    #allocation14 [shape = 'u8[1024]{0}', space=vmem, size = 0x400, scoped, tag = 'input window, operand 10']
    #allocation15 [shape = 'u8[4096]{0}', space=vmem, size = 0x1000, scoped, tag = 'input window, operand 12']
    #allocation16 [shape = 's32[2]{0}', space=sflag, size = 0x8, scoped, tag = 'scoped memory for tpu_custom_call.1']
    #allocation17 [shape = 'u8[65536]{0}', space=vmem, size = 0x10000, scoped, tag = 'input window, operand 17, single buffered']
    #allocation18 [shape = 'u8[65536]{0}', space=vmem, size = 0x10000, scoped, tag = 'input window, operand 18, single buffered']
    #allocation19 [shape = 's32[1]{0}', space=sflag, size = 0x4, scoped, tag = 'scoped memory for tpu_custom_call.1']
    #allocation20 [shape = 'u8[65536]{0}', space=vmem, size = 0x10000, scoped, tag = 'input window, operand 20, single buffered']
    #allocation21 [shape = 'u8[4096]{0}', space=vmem, size = 0x1000, scoped, tag = 'output window, operand 0, single buffered']
    %27 = vsyncpa [#allocation4], 0
    %28 = vsyncpa [#allocation7], 0
    %s29 = scalar_lea.sflag [#allocation7], 1
    %30 = vsyncpa %s29, 0
    %31 = vsyncpa [#allocation10], 0
    %s32 = scalar_lea.sflag [#allocation10], 1
    %33 = vsyncpa %s32, 0
    %34 = vsyncpa [#allocation13], 0
    %s35 = scalar_lea.sflag [#allocation13], 1
    %36 = vsyncpa %s35, 0
    %37 = vsyncpa [#allocation16], 0
    %s38 = scalar_lea.sflag [#allocation16], 1
    %39 = vsyncpa %s38, 0
    %40 = vsyncpa [#allocation19], 0
    %41 = vsyncpa [#allocation5], 0
    loop: start=0, step=1, limit=4
    $region2: #{tpu_custom_call.1} parent=1 // loop_pre_header
      _
    $region3: #{tpu_custom_call.1} parent=1 // loop_header
      %s43 = sphi 0, %s47
      %p44 = scmp.ge.s32.totalorder %s43, 4
      %s51 = sphi 0, %s51
      %s53 = sphi 0, %s51
      %s54 = sphi 0, %s53
      %s68 = sphi 0, %s54
      %s74 = sphi 0, %s76
      %s77 = sphi 0, %s74
      %s78 = sphi 0, %s77
      %s94 = sphi 0, %s78
      %s100 = sphi 0, %s102
      %s103 = sphi 0, %s100
      %s104 = sphi 0, %s103
      %s120 = sphi 0, %s104
      %s126 = sphi 0, %s128
      %s129 = sphi 0, %s126
      %s130 = sphi 0, %s129
      %s146 = sphi 0, %s130
      %s152 = sphi 0, %s154
      %s155 = sphi 0, %s152
      %s156 = sphi 0, %s155
      %s172 = sphi 0, %s156
      %s178 = sphi 0, %s180
      %s181 = sphi 0, %s178
      %s182 = sphi 0, %s181
      %s198 = sphi 0, %s182
      %s204 = sphi 0, %s206
      %s207 = sphi 0, %s204
      %s208 = sphi 0, %s207
      %s224 = sphi 0, %s208
      %s230 = sphi 0, %s232
      %s233 = sphi 0, %s230
      %s234 = sphi 0, %s233
      %s250 = sphi 0, %s234
      %s256 = sphi 0, %s258
      %s259 = sphi 0, %s256
      %s260 = sphi 0, %s259
      %s276 = sphi 0, %s260
      %s282 = sphi 0, %s284
      %s285 = sphi 0, %s282
      %s286 = sphi 0, %s285
      %s302 = sphi 0, %s286
      %s308 = sphi 0, %s310
      %s311 = sphi 0, %s308
      %s312 = sphi 0, %s311
      %s328 = sphi 0, %s312
      %s334 = sphi 0, %s336
      %s337 = sphi 0, %s334
      %s338 = sphi 0, %s337
      %s354 = sphi 0, %s338
      %s360 = sphi 0, %s362
      %s363 = sphi 0, %s360
      %s364 = sphi 0, %s363
      %s380 = sphi 0, %s364
      %s386 = sphi 0, %s388
      %s389 = sphi 0, %s386
      %s390 = sphi 0, %s389
      %s406 = sphi 0, %s390
      %s412 = sphi 0, %s414
      %s415 = sphi 0, %s412
      %s416 = sphi 0, %s415
      %s432 = sphi 0, %s416
      %s438 = sphi 0, %s440
      %s441 = sphi 0, %s438
      %s442 = sphi 0, %s441
      %s458 = sphi 0, %s442
      %s464 = sphi 0, %s466
      %s467 = sphi 0, %s464
      %s468 = sphi 0, %s467
      %s484 = sphi 0, %s468
      %s488 = sphi 0, %s488
      %s490 = sphi 0, %s488
      %s491 = sphi 0, %s490
      %s505 = sphi 0, %s491
      %s509 = sphi 0, %s509
      %s511 = sphi 0, %s509
      %s512 = sphi 0, %s511
      %s526 = sphi 0, %s512
      %s530 = sphi 0, %s530
      %s532 = sphi 0, %s530
      %s533 = sphi 0, %s532
      %s547 = sphi 0, %s533
      %s551 = sphi 0, %s551
      %s553 = sphi 0, %s551
      %s554 = sphi 0, %s553
      %s568 = sphi 0, %s554
      %s572 = sphi 0, %s572
      %s574 = sphi 0, %s572
      %s575 = sphi 0, %s574
      %s589 = sphi 0, %s575
      %s593 = sphi 0, %s593
      %s595 = sphi 0, %s593
      %s596 = sphi 0, %s595
      %s610 = sphi 0, %s596
    $region4: #{tpu_custom_call.1} parent=1 // loop_header_branch
      %46 = sbr.rel (%p44) target = $region8
    $region5: #{tpu_custom_call.1} parent=1 // loop_body
      %s48 = ssub.s32 %s43, 1
      %s49 = ssub.s32 %s43, 2
      %s50 = sadd.s32 %s43, 1
      %s52 = sadd.s32 %s51, 1
      %p55 = scmp.eq.s32.totalorder %s43, 1
      %p56 = scmp.ne.s32.totalorder %s51, %s53
      %p57 = scmp.eq.s32.totalorder %s43, 0
      %p58 = por %p56, %p57
      %p59 = scmp.ne.s32.totalorder %s51, %s53
      %p60 = scmp.eq.s32.totalorder %s48, 1
      %p61 = por %p59, %p60
      %p62 = scmp.ne.s32.totalorder %s53, %s54
      %p63 = scmp.eq.s32.totalorder %s48, 0
      %p64 = por %p62, %p63
      %p65 = scmp.ne.s32.totalorder %s53, %s54
      %p66 = scmp.eq.s32.totalorder %s49, 1
      %p67 = por %p65, %p66
      %p69 = scmp.ne.s32.totalorder %s54, %s68
      %p70 = scmp.eq.s32.totalorder %s49, 0
      %p71 = por %p69, %p70
      %s72 = ssub.s32 %s43, %s50
      %p73 = scmp.eq.s32.totalorder %s72, 0
      %s75 = sadd.s32 %s74, 1
      %s76 = scalar_select %p73, %s74, %s75
      %p79 = pneg %p73
      %p80 = scmp.eq.s32.totalorder %s43, 1
      %p81 = por %p79, %p80
      %p82 = scmp.ne.s32.totalorder %s74, %s77
      %p83 = scmp.eq.s32.totalorder %s43, 0
      %p84 = por %p82, %p83
      %p85 = scmp.ne.s32.totalorder %s74, %s77
      %p86 = scmp.eq.s32.totalorder %s48, 1
      %p87 = por %p85, %p86
      %p88 = scmp.ne.s32.totalorder %s77, %s78
      %p89 = scmp.eq.s32.totalorder %s48, 0
      %p90 = por %p88, %p89
      %p91 = scmp.ne.s32.totalorder %s77, %s78
      %p92 = scmp.eq.s32.totalorder %s49, 1
      %p93 = por %p91, %p92
      %p95 = scmp.ne.s32.totalorder %s78, %s94
      %p96 = scmp.eq.s32.totalorder %s49, 0
      %p97 = por %p95, %p96
      %s98 = ssub.s32 %s43, %s50
      %p99 = scmp.eq.s32.totalorder %s98, 0
      %s101 = sadd.s32 %s100, 1
      %s102 = scalar_select %p99, %s100, %s101
      %p105 = pneg %p99
      %p106 = scmp.eq.s32.totalorder %s43, 1
      %p107 = por %p105, %p106
      %p108 = scmp.ne.s32.totalorder %s100, %s103
      %p109 = scmp.eq.s32.totalorder %s43, 0
      %p110 = por %p108, %p109
      %p111 = scmp.ne.s32.totalorder %s100, %s103
      %p112 = scmp.eq.s32.totalorder %s48, 1
      %p113 = por %p111, %p112
      %p114 = scmp.ne.s32.totalorder %s103, %s104
      %p115 = scmp.eq.s32.totalorder %s48, 0
      %p116 = por %p114, %p115
      %p117 = scmp.ne.s32.totalorder %s103, %s104
      %p118 = scmp.eq.s32.totalorder %s49, 1
      %p119 = por %p117, %p118
      %p121 = scmp.ne.s32.totalorder %s104, %s120
      %p122 = scmp.eq.s32.totalorder %s49, 0
      %p123 = por %p121, %p122
      %s124 = ssub.s32 %s43, %s50
      %p125 = scmp.eq.s32.totalorder %s124, 0
      %s127 = sadd.s32 %s126, 1
      %s128 = scalar_select %p125, %s126, %s127
      %p131 = pneg %p125
      %p132 = scmp.eq.s32.totalorder %s43, 1
      %p133 = por %p131, %p132
      %p134 = scmp.ne.s32.totalorder %s126, %s129
      %p135 = scmp.eq.s32.totalorder %s43, 0
      %p136 = por %p134, %p135
      %p137 = scmp.ne.s32.totalorder %s126, %s129
      %p138 = scmp.eq.s32.totalorder %s48, 1
      %p139 = por %p137, %p138
      %p140 = scmp.ne.s32.totalorder %s129, %s130
      %p141 = scmp.eq.s32.totalorder %s48, 0
      %p142 = por %p140, %p141
      %p143 = scmp.ne.s32.totalorder %s129, %s130
      %p144 = scmp.eq.s32.totalorder %s49, 1
      %p145 = por %p143, %p144
      %p147 = scmp.ne.s32.totalorder %s130, %s146
      %p148 = scmp.eq.s32.totalorder %s49, 0
      %p149 = por %p147, %p148
      %s150 = ssub.s32 %s43, %s50
      %p151 = scmp.eq.s32.totalorder %s150, 0
      %s153 = sadd.s32 %s152, 1
      %s154 = scalar_select %p151, %s152, %s153
      %p157 = pneg %p151
      %p158 = scmp.eq.s32.totalorder %s43, 1
      %p159 = por %p157, %p158
      %p160 = scmp.ne.s32.totalorder %s152, %s155
      %p161 = scmp.eq.s32.totalorder %s43, 0
      %p162 = por %p160, %p161
      %p163 = scmp.ne.s32.totalorder %s152, %s155
      %p164 = scmp.eq.s32.totalorder %s48, 1
      %p165 = por %p163, %p164
      %p166 = scmp.ne.s32.totalorder %s155, %s156
      %p167 = scmp.eq.s32.totalorder %s48, 0
      %p168 = por %p166, %p167
      %p169 = scmp.ne.s32.totalorder %s155, %s156
      %p170 = scmp.eq.s32.totalorder %s49, 1
      %p171 = por %p169, %p170
      %p173 = scmp.ne.s32.totalorder %s156, %s172
      %p174 = scmp.eq.s32.totalorder %s49, 0
      %p175 = por %p173, %p174
      %s176 = ssub.s32 %s43, %s50
      %p177 = scmp.eq.s32.totalorder %s176, 0
      %s179 = sadd.s32 %s178, 1
      %s180 = scalar_select %p177, %s178, %s179
      %p183 = pneg %p177
      %p184 = scmp.eq.s32.totalorder %s43, 1
      %p185 = por %p183, %p184
      %p186 = scmp.ne.s32.totalorder %s178, %s181
      %p187 = scmp.eq.s32.totalorder %s43, 0
      %p188 = por %p186, %p187
      %p189 = scmp.ne.s32.totalorder %s178, %s181
      %p190 = scmp.eq.s32.totalorder %s48, 1
      %p191 = por %p189, %p190
      %p192 = scmp.ne.s32.totalorder %s181, %s182
      %p193 = scmp.eq.s32.totalorder %s48, 0
      %p194 = por %p192, %p193
      %p195 = scmp.ne.s32.totalorder %s181, %s182
      %p196 = scmp.eq.s32.totalorder %s49, 1
      %p197 = por %p195, %p196
      %p199 = scmp.ne.s32.totalorder %s182, %s198
      %p200 = scmp.eq.s32.totalorder %s49, 0
      %p201 = por %p199, %p200
      %s202 = ssub.s32 %s43, %s50
      %p203 = scmp.eq.s32.totalorder %s202, 0
      %s205 = sadd.s32 %s204, 1
      %s206 = scalar_select %p203, %s204, %s205
      %p209 = pneg %p203
      %p210 = scmp.eq.s32.totalorder %s43, 1
      %p211 = por %p209, %p210
      %p212 = scmp.ne.s32.totalorder %s204, %s207
      %p213 = scmp.eq.s32.totalorder %s43, 0
      %p214 = por %p212, %p213
      %p215 = scmp.ne.s32.totalorder %s204, %s207
      %p216 = scmp.eq.s32.totalorder %s48, 1
      %p217 = por %p215, %p216
      %p218 = scmp.ne.s32.totalorder %s207, %s208
      %p219 = scmp.eq.s32.totalorder %s48, 0
      %p220 = por %p218, %p219
      %p221 = scmp.ne.s32.totalorder %s207, %s208
      %p222 = scmp.eq.s32.totalorder %s49, 1
      %p223 = por %p221, %p222
      %p225 = scmp.ne.s32.totalorder %s208, %s224
      %p226 = scmp.eq.s32.totalorder %s49, 0
      %p227 = por %p225, %p226
      %s228 = ssub.s32 %s43, %s50
      %p229 = scmp.eq.s32.totalorder %s228, 0
      %s231 = sadd.s32 %s230, 1
      %s232 = scalar_select %p229, %s230, %s231
      %p235 = pneg %p229
      %p236 = scmp.eq.s32.totalorder %s43, 1
      %p237 = por %p235, %p236
      %p238 = scmp.ne.s32.totalorder %s230, %s233
      %p239 = scmp.eq.s32.totalorder %s43, 0
      %p240 = por %p238, %p239
      %p241 = scmp.ne.s32.totalorder %s230, %s233
      %p242 = scmp.eq.s32.totalorder %s48, 1
      %p243 = por %p241, %p242
      %p244 = scmp.ne.s32.totalorder %s233, %s234
      %p245 = scmp.eq.s32.totalorder %s48, 0
      %p246 = por %p244, %p245
      %p247 = scmp.ne.s32.totalorder %s233, %s234
      %p248 = scmp.eq.s32.totalorder %s49, 1
      %p249 = por %p247, %p248
      %p251 = scmp.ne.s32.totalorder %s234, %s250
      %p252 = scmp.eq.s32.totalorder %s49, 0
      %p253 = por %p251, %p252
      %s254 = ssub.s32 %s43, %s50
      %p255 = scmp.eq.s32.totalorder %s254, 0
      %s257 = sadd.s32 %s256, 1
      %s258 = scalar_select %p255, %s256, %s257
      %p261 = pneg %p255
      %p262 = scmp.eq.s32.totalorder %s43, 1
      %p263 = por %p261, %p262
      %p264 = scmp.ne.s32.totalorder %s256, %s259
      %p265 = scmp.eq.s32.totalorder %s43, 0
      %p266 = por %p264, %p265
      %p267 = scmp.ne.s32.totalorder %s256, %s259
      %p268 = scmp.eq.s32.totalorder %s48, 1
      %p269 = por %p267, %p268
      %p270 = scmp.ne.s32.totalorder %s259, %s260
      %p271 = scmp.eq.s32.totalorder %s48, 0
      %p272 = por %p270, %p271
      %p273 = scmp.ne.s32.totalorder %s259, %s260
      %p274 = scmp.eq.s32.totalorder %s49, 1
      %p275 = por %p273, %p274
      %p277 = scmp.ne.s32.totalorder %s260, %s276
      %p278 = scmp.eq.s32.totalorder %s49, 0
      %p279 = por %p277, %p278
      %s280 = ssub.s32 %s43, %s50
      %p281 = scmp.eq.s32.totalorder %s280, 0
      %s283 = sadd.s32 %s282, 1
      %s284 = scalar_select %p281, %s282, %s283
      %p287 = pneg %p281
      %p288 = scmp.eq.s32.totalorder %s43, 1
      %p289 = por %p287, %p288
      %p290 = scmp.ne.s32.totalorder %s282, %s285
      %p291 = scmp.eq.s32.totalorder %s43, 0
      %p292 = por %p290, %p291
      %p293 = scmp.ne.s32.totalorder %s282, %s285
      %p294 = scmp.eq.s32.totalorder %s48, 1
      %p295 = por %p293, %p294
      %p296 = scmp.ne.s32.totalorder %s285, %s286
      %p297 = scmp.eq.s32.totalorder %s48, 0
      %p298 = por %p296, %p297
      %p299 = scmp.ne.s32.totalorder %s285, %s286
      %p300 = scmp.eq.s32.totalorder %s49, 1
      %p301 = por %p299, %p300
      %p303 = scmp.ne.s32.totalorder %s286, %s302
      %p304 = scmp.eq.s32.totalorder %s49, 0
      %p305 = por %p303, %p304
      %s306 = ssub.s32 %s43, %s50
      %p307 = scmp.eq.s32.totalorder %s306, 0
      %s309 = sadd.s32 %s308, 1
      %s310 = scalar_select %p307, %s308, %s309
      %p313 = pneg %p307
      %p314 = scmp.eq.s32.totalorder %s43, 1
      %p315 = por %p313, %p314
      %p316 = scmp.ne.s32.totalorder %s308, %s311
      %p317 = scmp.eq.s32.totalorder %s43, 0
      %p318 = por %p316, %p317
      %p319 = scmp.ne.s32.totalorder %s308, %s311
      %p320 = scmp.eq.s32.totalorder %s48, 1
      %p321 = por %p319, %p320
      %p322 = scmp.ne.s32.totalorder %s311, %s312
      %p323 = scmp.eq.s32.totalorder %s48, 0
      %p324 = por %p322, %p323
      %p325 = scmp.ne.s32.totalorder %s311, %s312
      %p326 = scmp.eq.s32.totalorder %s49, 1
      %p327 = por %p325, %p326
      %p329 = scmp.ne.s32.totalorder %s312, %s328
      %p330 = scmp.eq.s32.totalorder %s49, 0
      %p331 = por %p329, %p330
      %s332 = ssub.s32 %s43, %s50
      %p333 = scmp.eq.s32.totalorder %s332, 0
      %s335 = sadd.s32 %s334, 1
      %s336 = scalar_select %p333, %s334, %s335
      %p339 = pneg %p333
      %p340 = scmp.eq.s32.totalorder %s43, 1
      %p341 = por %p339, %p340
      %p342 = scmp.ne.s32.totalorder %s334, %s337
      %p343 = scmp.eq.s32.totalorder %s43, 0
      %p344 = por %p342, %p343
      %p345 = scmp.ne.s32.totalorder %s334, %s337
      %p346 = scmp.eq.s32.totalorder %s48, 1
      %p347 = por %p345, %p346
      %p348 = scmp.ne.s32.totalorder %s337, %s338
      %p349 = scmp.eq.s32.totalorder %s48, 0
      %p350 = por %p348, %p349
      %p351 = scmp.ne.s32.totalorder %s337, %s338
      %p352 = scmp.eq.s32.totalorder %s49, 1
      %p353 = por %p351, %p352
      %p355 = scmp.ne.s32.totalorder %s338, %s354
      %p356 = scmp.eq.s32.totalorder %s49, 0
      %p357 = por %p355, %p356
      %s358 = ssub.s32 %s43, %s50
      %p359 = scmp.eq.s32.totalorder %s358, 0
      %s361 = sadd.s32 %s360, 1
      %s362 = scalar_select %p359, %s360, %s361
      %p365 = pneg %p359
      %p366 = scmp.eq.s32.totalorder %s43, 1
      %p367 = por %p365, %p366
      %p368 = scmp.ne.s32.totalorder %s360, %s363
      %p369 = scmp.eq.s32.totalorder %s43, 0
      %p370 = por %p368, %p369
      %p371 = scmp.ne.s32.totalorder %s360, %s363
      %p372 = scmp.eq.s32.totalorder %s48, 1
      %p373 = por %p371, %p372
      %p374 = scmp.ne.s32.totalorder %s363, %s364
      %p375 = scmp.eq.s32.totalorder %s48, 0
      %p376 = por %p374, %p375
      %p377 = scmp.ne.s32.totalorder %s363, %s364
      %p378 = scmp.eq.s32.totalorder %s49, 1
      %p379 = por %p377, %p378
      %p381 = scmp.ne.s32.totalorder %s364, %s380
      %p382 = scmp.eq.s32.totalorder %s49, 0
      %p383 = por %p381, %p382
      %s384 = ssub.s32 %s43, %s50
      %p385 = scmp.eq.s32.totalorder %s384, 0
      %s387 = sadd.s32 %s386, 1
      %s388 = scalar_select %p385, %s386, %s387
      %p391 = pneg %p385
      %p392 = scmp.eq.s32.totalorder %s43, 1
      %p393 = por %p391, %p392
      %p394 = scmp.ne.s32.totalorder %s386, %s389
      %p395 = scmp.eq.s32.totalorder %s43, 0
      %p396 = por %p394, %p395
      %p397 = scmp.ne.s32.totalorder %s386, %s389
      %p398 = scmp.eq.s32.totalorder %s48, 1
      %p399 = por %p397, %p398
      %p400 = scmp.ne.s32.totalorder %s389, %s390
      %p401 = scmp.eq.s32.totalorder %s48, 0
      %p402 = por %p400, %p401
      %p403 = scmp.ne.s32.totalorder %s389, %s390
      %p404 = scmp.eq.s32.totalorder %s49, 1
      %p405 = por %p403, %p404
      %p407 = scmp.ne.s32.totalorder %s390, %s406
      %p408 = scmp.eq.s32.totalorder %s49, 0
      %p409 = por %p407, %p408
      %s410 = ssub.s32 %s43, %s50
      %p411 = scmp.eq.s32.totalorder %s410, 0
      %s413 = sadd.s32 %s412, 1
      %s414 = scalar_select %p411, %s412, %s413
      %p417 = pneg %p411
      %p418 = scmp.eq.s32.totalorder %s43, 1
      %p419 = por %p417, %p418
      %p420 = scmp.ne.s32.totalorder %s412, %s415
      %p421 = scmp.eq.s32.totalorder %s43, 0
      %p422 = por %p420, %p421
      %p423 = scmp.ne.s32.totalorder %s412, %s415
      %p424 = scmp.eq.s32.totalorder %s48, 1
      %p425 = por %p423, %p424
      %p426 = scmp.ne.s32.totalorder %s415, %s416
      %p427 = scmp.eq.s32.totalorder %s48, 0
      %p428 = por %p426, %p427
      %p429 = scmp.ne.s32.totalorder %s415, %s416
      %p430 = scmp.eq.s32.totalorder %s49, 1
      %p431 = por %p429, %p430
      %p433 = scmp.ne.s32.totalorder %s416, %s432
      %p434 = scmp.eq.s32.totalorder %s49, 0
      %p435 = por %p433, %p434
      %s436 = ssub.s32 %s43, %s50
      %p437 = scmp.eq.s32.totalorder %s436, 0
      %s439 = sadd.s32 %s438, 1
      %s440 = scalar_select %p437, %s438, %s439
      %p443 = pneg %p437
      %p444 = scmp.eq.s32.totalorder %s43, 1
      %p445 = por %p443, %p444
      %p446 = scmp.ne.s32.totalorder %s438, %s441
      %p447 = scmp.eq.s32.totalorder %s43, 0
      %p448 = por %p446, %p447
      %p449 = scmp.ne.s32.totalorder %s438, %s441
      %p450 = scmp.eq.s32.totalorder %s48, 1
      %p451 = por %p449, %p450
      %p452 = scmp.ne.s32.totalorder %s441, %s442
      %p453 = scmp.eq.s32.totalorder %s48, 0
      %p454 = por %p452, %p453
      %p455 = scmp.ne.s32.totalorder %s441, %s442
      %p456 = scmp.eq.s32.totalorder %s49, 1
      %p457 = por %p455, %p456
      %p459 = scmp.ne.s32.totalorder %s442, %s458
      %p460 = scmp.eq.s32.totalorder %s49, 0
      %p461 = por %p459, %p460
      %s462 = ssub.s32 %s43, %s50
      %p463 = scmp.eq.s32.totalorder %s462, 0
      %s465 = sadd.s32 %s464, 1
      %s466 = scalar_select %p463, %s464, %s465
      %p469 = pneg %p463
      %p470 = scmp.eq.s32.totalorder %s43, 1
      %p471 = por %p469, %p470
      %p472 = scmp.ne.s32.totalorder %s464, %s467
      %p473 = scmp.eq.s32.totalorder %s43, 0
      %p474 = por %p472, %p473
      %p475 = scmp.ne.s32.totalorder %s464, %s467
      %p476 = scmp.eq.s32.totalorder %s48, 1
      %p477 = por %p475, %p476
      %p478 = scmp.ne.s32.totalorder %s467, %s468
      %p479 = scmp.eq.s32.totalorder %s48, 0
      %p480 = por %p478, %p479
      %p481 = scmp.ne.s32.totalorder %s467, %s468
      %p482 = scmp.eq.s32.totalorder %s49, 1
      %p483 = por %p481, %p482
      %p485 = scmp.ne.s32.totalorder %s468, %s484
      %p486 = scmp.eq.s32.totalorder %s49, 0
      %p487 = por %p485, %p486
      %s489 = sadd.s32 %s488, 1
      %p492 = scmp.eq.s32.totalorder %s43, 1
      %p493 = scmp.ne.s32.totalorder %s488, %s490
      %p494 = scmp.eq.s32.totalorder %s43, 0
      %p495 = por %p493, %p494
      %p496 = scmp.ne.s32.totalorder %s488, %s490
      %p497 = scmp.eq.s32.totalorder %s48, 1
      %p498 = por %p496, %p497
      %p499 = scmp.ne.s32.totalorder %s490, %s491
      %p500 = scmp.eq.s32.totalorder %s48, 0
      %p501 = por %p499, %p500
      %p502 = scmp.ne.s32.totalorder %s490, %s491
      %p503 = scmp.eq.s32.totalorder %s49, 1
      %p504 = por %p502, %p503
      %p506 = scmp.ne.s32.totalorder %s491, %s505
      %p507 = scmp.eq.s32.totalorder %s49, 0
      %p508 = por %p506, %p507
      %s510 = sadd.s32 %s509, 1
      %p513 = scmp.eq.s32.totalorder %s43, 1
      %p514 = scmp.ne.s32.totalorder %s509, %s511
      %p515 = scmp.eq.s32.totalorder %s43, 0
      %p516 = por %p514, %p515
      %p517 = scmp.ne.s32.totalorder %s509, %s511
      %p518 = scmp.eq.s32.totalorder %s48, 1
      %p519 = por %p517, %p518
      %p520 = scmp.ne.s32.totalorder %s511, %s512
      %p521 = scmp.eq.s32.totalorder %s48, 0
      %p522 = por %p520, %p521
      %p523 = scmp.ne.s32.totalorder %s511, %s512
      %p524 = scmp.eq.s32.totalorder %s49, 1
      %p525 = por %p523, %p524
      %p527 = scmp.ne.s32.totalorder %s512, %s526
      %p528 = scmp.eq.s32.totalorder %s49, 0
      %p529 = por %p527, %p528
      %s531 = sadd.s32 %s530, 1
      %p534 = scmp.eq.s32.totalorder %s43, 1
      %p535 = scmp.ne.s32.totalorder %s530, %s532
      %p536 = scmp.eq.s32.totalorder %s43, 0
      %p537 = por %p535, %p536
      %p538 = scmp.ne.s32.totalorder %s530, %s532
      %p539 = scmp.eq.s32.totalorder %s48, 1
      %p540 = por %p538, %p539
      %p541 = scmp.ne.s32.totalorder %s532, %s533
      %p542 = scmp.eq.s32.totalorder %s48, 0
      %p543 = por %p541, %p542
      %p544 = scmp.ne.s32.totalorder %s532, %s533
      %p545 = scmp.eq.s32.totalorder %s49, 1
      %p546 = por %p544, %p545
      %p548 = scmp.ne.s32.totalorder %s533, %s547
      %p549 = scmp.eq.s32.totalorder %s49, 0
      %p550 = por %p548, %p549
      %s552 = sadd.s32 %s551, 1
      %p555 = scmp.eq.s32.totalorder %s43, 1
      %p556 = scmp.ne.s32.totalorder %s551, %s553
      %p557 = scmp.eq.s32.totalorder %s43, 0
      %p558 = por %p556, %p557
      %p559 = scmp.ne.s32.totalorder %s551, %s553
      %p560 = scmp.eq.s32.totalorder %s48, 1
      %p561 = por %p559, %p560
      %p562 = scmp.ne.s32.totalorder %s553, %s554
      %p563 = scmp.eq.s32.totalorder %s48, 0
      %p564 = por %p562, %p563
      %p565 = scmp.ne.s32.totalorder %s553, %s554
      %p566 = scmp.eq.s32.totalorder %s49, 1
      %p567 = por %p565, %p566
      %p569 = scmp.ne.s32.totalorder %s554, %s568
      %p570 = scmp.eq.s32.totalorder %s49, 0
      %p571 = por %p569, %p570
      %s573 = sadd.s32 %s572, 1
      %p576 = scmp.eq.s32.totalorder %s43, 1
      %p577 = scmp.ne.s32.totalorder %s572, %s574
      %p578 = scmp.eq.s32.totalorder %s43, 0
      %p579 = por %p577, %p578
      %p580 = scmp.ne.s32.totalorder %s572, %s574
      %p581 = scmp.eq.s32.totalorder %s48, 1
      %p582 = por %p580, %p581
      %p583 = scmp.ne.s32.totalorder %s574, %s575
      %p584 = scmp.eq.s32.totalorder %s48, 0
      %p585 = por %p583, %p584
      %p586 = scmp.ne.s32.totalorder %s574, %s575
      %p587 = scmp.eq.s32.totalorder %s49, 1
      %p588 = por %p586, %p587
      %p590 = scmp.ne.s32.totalorder %s575, %s589
      %p591 = scmp.eq.s32.totalorder %s49, 0
      %p592 = por %p590, %p591
      %s594 = sadd.s32 %s593, 1
      %p597 = scmp.eq.s32.totalorder %s43, 1
      %p598 = scmp.ne.s32.totalorder %s593, %s595
      %p599 = scmp.eq.s32.totalorder %s43, 0
      %p600 = por %p598, %p599
      %p601 = scmp.ne.s32.totalorder %s593, %s595
      %p602 = scmp.eq.s32.totalorder %s48, 1
      %p603 = por %p601, %p602
      %p604 = scmp.ne.s32.totalorder %s595, %s596
      %p605 = scmp.eq.s32.totalorder %s48, 0
      %p606 = por %p604, %p605
      %p607 = scmp.ne.s32.totalorder %s595, %s596
      %p608 = scmp.eq.s32.totalorder %s49, 1
      %p609 = por %p607, %p608
      %p611 = scmp.ne.s32.totalorder %s596, %s610
      %p612 = scmp.eq.s32.totalorder %s49, 0
      %p613 = por %p611, %p612
      %p614 = scmp.le.s32.totalorder 1, %s43
      %p615 = scmp.lt.s32.totalorder %s43, 3
      %p616 = pnand %p614, %p615
      %p617 = pneg %p616
      // Predicated region
      $region9: #{tpu_custom_call.1} parent=5 // pred_check
        _
      $region10: #{tpu_custom_call.1} parent=5 // pred_check_branch
        %619 = sbr.rel (%p616) target = $region12
      $region11: #{tpu_custom_call.1} parent=5 // pred_region
        %s620 = ssub.s32 %s43, 1
        // Predicated region
        $region13: #{tpu_custom_call.1} parent=11 // pred_check
          %p621 = pneg %p64
        $region14: #{tpu_custom_call.1} parent=11 // pred_check_branch
          %623 = sbr.rel (%p621) target = $region16
        $region15: #{tpu_custom_call.1} parent=11 // pred_region
          %s625 = ssub.s32 128, 128
          %626 = vsyncadd [#allocation4], %s625
          %s628 = sshll.u32 [#allocation3], 4
          %s629 = int_to_ptr.vmem [resolvable:$true] %s628
          %631 = dma.hbm_to_vmem [thread:$0]  %s0, 128, %s629, [#allocation4]
        $region16: #{tpu_custom_call.1} parent=11 // pred_fallthru
          _
        // Predicated region
        $region17: #{tpu_custom_call.1} parent=11 // pred_check
          %p632 = pneg %p501
        $region18: #{tpu_custom_call.1} parent=11 // pred_check_branch
          %634 = sbr.rel (%p632) target = $region20
        $region19: #{tpu_custom_call.1} parent=11 // pred_region
          %s636 = ssub.s32 2048, 2048
          %637 = vsyncadd [#allocation16], %s636
          %s638 = sshll.u32 [#allocation17], 4
          %s639 = int_to_ptr.vmem [resolvable:$true] %s638
          %644 = dma.hbm_to_vmem [thread:$0]  %s17, 2048, %s639, [#allocation16], 128, 128, 8
        $region20: #{tpu_custom_call.1} parent=11 // pred_fallthru
          _
        // Predicated region
        $region21: #{tpu_custom_call.1} parent=11 // pred_check
          %p645 = pneg %p522
        $region22: #{tpu_custom_call.1} parent=11 // pred_check_branch
          %647 = sbr.rel (%p645) target = $region24
        $region23: #{tpu_custom_call.1} parent=11 // pred_region
          %s649 = ssub.s32 2048, 2048
          %650 = vsyncadd [#allocation19], %s649
          %s651 = sshll.u32 [#allocation18], 4
          %s652 = int_to_ptr.vmem [resolvable:$true] %s651
          %657 = dma.hbm_to_vmem [thread:$0]  %s18, 2048, %s652, [#allocation19], 128, 128, 8
        $region24: #{tpu_custom_call.1} parent=11 // pred_fallthru
          _
        // Predicated region
        $region25: #{tpu_custom_call.1} parent=11 // pred_check
          %p658 = pneg %p543
        $region26: #{tpu_custom_call.1} parent=11 // pred_check_branch
          %660 = sbr.rel (%p658) target = $region28
        $region27: #{tpu_custom_call.1} parent=11 // pred_region
          _
        $region28: #{tpu_custom_call.1} parent=11 // pred_fallthru
          _
        // Predicated region
        $region29: #{tpu_custom_call.1} parent=11 // pred_check
          %p661 = pneg %p564
        $region30: #{tpu_custom_call.1} parent=11 // pred_check_branch
          %663 = sbr.rel (%p661) target = $region32
        $region31: #{tpu_custom_call.1} parent=11 // pred_region
          %s665 = ssub.s32 2048, 2048
          %666 = vsyncadd [#allocation19], %s665
          %s667 = sshll.u32 [#allocation20], 4
          %s668 = int_to_ptr.vmem [resolvable:$true] %s667
          %673 = dma.hbm_to_vmem [thread:$0]  %s20, 2048, %s668, [#allocation19], 128, 128, 8
        $region32: #{tpu_custom_call.1} parent=11 // pred_fallthru
          _
        // Predicated region
        $region33: #{tpu_custom_call.1} parent=11 // pred_check
          %p674 = pneg %p585
        $region34: #{tpu_custom_call.1} parent=11 // pred_check_branch
          %676 = sbr.rel (%p674) target = $region36
        $region35: #{tpu_custom_call.1} parent=11 // pred_region
          _
        $region36: #{tpu_custom_call.1} parent=11 // pred_fallthru
          _
      $region12: #{tpu_custom_call.1} parent=5 // pred_fallthru
        _
      %p677 = scmp.lt.s32.totalorder %s43, 2
      // Predicated region
      $region37: #{tpu_custom_call.1} parent=5 // pred_check
        %p678 = pneg %p677
      $region38: #{tpu_custom_call.1} parent=5 // pred_check_branch
        %680 = sbr.rel (%p678) target = $region40
      $region39: #{tpu_custom_call.1} parent=5 // pred_region
        // Predicated region
        $region41: #{tpu_custom_call.1} parent=39 // pred_check
          %p681 = pneg %p84
        $region42: #{tpu_custom_call.1} parent=39 // pred_check_branch
          %683 = sbr.rel (%p681) target = $region44
        $region43: #{tpu_custom_call.1} parent=39 // pred_region
          %p684 = scmp.lt.s32.totalorder %s43, 1
          %s685 = scalar_select %p684, %s43, 1
          %s686 = smul.addr %s685, 32
          %s687 = smul.addr %s686, 8
          %s688 = scalar_lea.vmem %s1, %s687
        $region44: #{tpu_custom_call.1} parent=39 // pred_fallthru
          _
        // Predicated region
        $region45: #{tpu_custom_call.1} parent=39 // pred_check
          %p689 = pneg %p110
        $region46: #{tpu_custom_call.1} parent=39 // pred_check_branch
          %691 = sbr.rel (%p689) target = $region48
        $region47: #{tpu_custom_call.1} parent=39 // pred_region
          %s692 = sand.u32 %s43, 1
          %s693 = scalar_lea.sflag [#allocation7], %s692
          %s694 = sand.u32 %s100, 1
          %s695 = smul.addr %s694, 2
          %s696 = scalar_lea.vmem [#allocation6], %s695
          %s698 = ssub.s32 32, 32
          %699 = vsyncadd %s693, %s698
          %s700 = smul.addr %s43, 2
          %s701 = smul.addr %s700, 16
          %s702 = scalar_lea.hbm %s2, %s701
          %s703 = sshll.u32 %s696, 4
          %s704 = int_to_ptr.vmem [resolvable:$true] %s703
          %709 = dma.hbm_to_vmem [thread:$0]  %s702, 32, %s704, %s693, 16, 16, 1
        $region48: #{tpu_custom_call.1} parent=39 // pred_fallthru
          _
        // Predicated region
        $region49: #{tpu_custom_call.1} parent=39 // pred_check
          %p710 = pneg %p136
        $region50: #{tpu_custom_call.1} parent=39 // pred_check_branch
          %712 = sbr.rel (%p710) target = $region52
        $region51: #{tpu_custom_call.1} parent=39 // pred_region
          %p713 = scmp.lt.s32.totalorder %s43, 1
          %s714 = scalar_select %p713, %s43, 1
          %s715 = smul.addr %s714, 32
          %s716 = smul.addr %s715, 8
          %s717 = scalar_lea.vmem %s3, %s716
        $region52: #{tpu_custom_call.1} parent=39 // pred_fallthru
          _
        // Predicated region
        $region53: #{tpu_custom_call.1} parent=39 // pred_check
          %p718 = pneg %p162
        $region54: #{tpu_custom_call.1} parent=39 // pred_check_branch
          %720 = sbr.rel (%p718) target = $region56
        $region55: #{tpu_custom_call.1} parent=39 // pred_region
          %s721 = sand.u32 %s43, 1
          %s722 = scalar_lea.sflag [#allocation7], %s721
          %s723 = sand.u32 %s152, 1
          %s724 = smul.addr %s723, 2
          %s725 = scalar_lea.vmem [#allocation8], %s724
          %s727 = ssub.s32 32, 32
          %728 = vsyncadd %s722, %s727
          %s729 = smul.addr %s43, 2
          %s730 = smul.addr %s729, 16
          %s731 = scalar_lea.hbm %s4, %s730
          %s732 = sshll.u32 %s725, 4
          %s733 = int_to_ptr.vmem [resolvable:$true] %s732
          %738 = dma.hbm_to_vmem [thread:$0]  %s731, 32, %s733, %s722, 16, 16, 1
        $region56: #{tpu_custom_call.1} parent=39 // pred_fallthru
          _
        // Predicated region
        $region57: #{tpu_custom_call.1} parent=39 // pred_check
          %p739 = pneg %p188
        $region58: #{tpu_custom_call.1} parent=39 // pred_check_branch
          %741 = sbr.rel (%p739) target = $region60
        $region59: #{tpu_custom_call.1} parent=39 // pred_region
          %p742 = scmp.lt.s32.totalorder %s43, 1
          %s743 = scalar_select %p742, %s43, 1
          %s744 = smul.addr %s743, 32
          %s745 = smul.addr %s744, 8
          %s746 = scalar_lea.vmem %s5, %s745
        $region60: #{tpu_custom_call.1} parent=39 // pred_fallthru
          _
        // Predicated region
        $region61: #{tpu_custom_call.1} parent=39 // pred_check
          %p747 = pneg %p214
        $region62: #{tpu_custom_call.1} parent=39 // pred_check_branch
          %749 = sbr.rel (%p747) target = $region64
        $region63: #{tpu_custom_call.1} parent=39 // pred_region
          %s750 = sand.u32 %s43, 1
          %s751 = scalar_lea.sflag [#allocation10], %s750
          %s752 = sand.u32 %s204, 1
          %s753 = smul.addr %s752, 2
          %s754 = scalar_lea.vmem [#allocation9], %s753
          %s756 = ssub.s32 32, 32
          %757 = vsyncadd %s751, %s756
          %s758 = smul.addr %s43, 2
          %s759 = smul.addr %s758, 16
          %s760 = scalar_lea.hbm %s6, %s759
          %s761 = sshll.u32 %s754, 4
          %s762 = int_to_ptr.vmem [resolvable:$true] %s761
          %767 = dma.hbm_to_vmem [thread:$0]  %s760, 32, %s762, %s751, 16, 16, 1
        $region64: #{tpu_custom_call.1} parent=39 // pred_fallthru
          _
        // Predicated region
        $region65: #{tpu_custom_call.1} parent=39 // pred_check
          %p768 = pneg %p240
        $region66: #{tpu_custom_call.1} parent=39 // pred_check_branch
          %770 = sbr.rel (%p768) target = $region68
        $region67: #{tpu_custom_call.1} parent=39 // pred_region
          %p771 = scmp.lt.s32.totalorder %s43, 1
          %s772 = scalar_select %p771, %s43, 1
          %s773 = smul.addr %s772, 16
          %s774 = smul.addr %s773, 8
          %s775 = scalar_lea.vmem %s7, %s774
        $region68: #{tpu_custom_call.1} parent=39 // pred_fallthru
          _
        // Predicated region
        $region69: #{tpu_custom_call.1} parent=39 // pred_check
          %p776 = pneg %p266
        $region70: #{tpu_custom_call.1} parent=39 // pred_check_branch
          %778 = sbr.rel (%p776) target = $region72
        $region71: #{tpu_custom_call.1} parent=39 // pred_region
          %s779 = sand.u32 %s43, 1
          %s780 = scalar_lea.sflag [#allocation10], %s779
          %s781 = sand.u32 %s256, 1
          %s782 = scalar_lea.vmem [#allocation11], %s781
          %s784 = ssub.s32 16, 16
          %785 = vsyncadd %s780, %s784
          %s786 = smul.addr %s43, 16
          %s787 = scalar_lea.hbm %s8, %s786
          %s789 = sshll.u32 %s782, 4
          %s790 = int_to_ptr.vmem [resolvable:$true] %s789
          %792 = dma.hbm_to_vmem [thread:$0]  %s787, 16, %s790, %s780
        $region72: #{tpu_custom_call.1} parent=39 // pred_fallthru
          _
        // Predicated region
        $region73: #{tpu_custom_call.1} parent=39 // pred_check
          %p793 = pneg %p292
        $region74: #{tpu_custom_call.1} parent=39 // pred_check_branch
          %795 = sbr.rel (%p793) target = $region76
        $region75: #{tpu_custom_call.1} parent=39 // pred_region
          %s796 = sand.u32 %s43, 1
          %s797 = scalar_lea.sflag [#allocation13], %s796
          %s798 = sand.u32 %s282, 1
          %s799 = scalar_lea.vmem [#allocation12], %s798
          %s801 = ssub.s32 16, 16
          %802 = vsyncadd %s797, %s801
          %s803 = smul.addr %s43, 16
          %s804 = scalar_lea.hbm %s9, %s803
          %s806 = sshll.u32 %s799, 4
          %s807 = int_to_ptr.vmem [resolvable:$true] %s806
          %809 = dma.hbm_to_vmem [thread:$0]  %s804, 16, %s807, %s797
        $region76: #{tpu_custom_call.1} parent=39 // pred_fallthru
          _
        // Predicated region
        $region77: #{tpu_custom_call.1} parent=39 // pred_check
          %p810 = pneg %p318
        $region78: #{tpu_custom_call.1} parent=39 // pred_check_branch
          %812 = sbr.rel (%p810) target = $region80
        $region79: #{tpu_custom_call.1} parent=39 // pred_region
          %s813 = sand.u32 %s43, 1
          %s814 = scalar_lea.sflag [#allocation13], %s813
          %s815 = sand.u32 %s308, 1
          %s816 = scalar_lea.vmem [#allocation14], %s815
          %s818 = ssub.s32 16, 16
          %819 = vsyncadd %s814, %s818
          %s820 = smul.addr %s43, 16
          %s821 = scalar_lea.hbm %s10, %s820
          %s823 = sshll.u32 %s816, 4
          %s824 = int_to_ptr.vmem [resolvable:$true] %s823
          %826 = dma.hbm_to_vmem [thread:$0]  %s821, 16, %s824, %s814
        $region80: #{tpu_custom_call.1} parent=39 // pred_fallthru
          _
        // Predicated region
        $region81: #{tpu_custom_call.1} parent=39 // pred_check
          %p827 = pneg %p344
        $region82: #{tpu_custom_call.1} parent=39 // pred_check_branch
          %829 = sbr.rel (%p827) target = $region84
        $region83: #{tpu_custom_call.1} parent=39 // pred_region
          %p830 = scmp.lt.s32.totalorder %s43, 1
          %s831 = scalar_select %p830, %s43, 1
          %s832 = smul.addr %s831, 64
          %s833 = smul.addr %s832, 8
          %s834 = scalar_lea.vmem %s11, %s833
        $region84: #{tpu_custom_call.1} parent=39 // pred_fallthru
          _
        // Predicated region
        $region85: #{tpu_custom_call.1} parent=39 // pred_check
          %p835 = pneg %p370
        $region86: #{tpu_custom_call.1} parent=39 // pred_check_branch
          %837 = sbr.rel (%p835) target = $region88
        $region87: #{tpu_custom_call.1} parent=39 // pred_region
          %s838 = sand.u32 %s43, 1
          %s839 = scalar_lea.sflag [#allocation16], %s838
          %s840 = sand.u32 %s360, 1
          %s841 = smul.addr %s840, 4
          %s842 = scalar_lea.vmem [#allocation15], %s841
          %s844 = ssub.s32 64, 64
          %845 = vsyncadd %s839, %s844
          %s846 = smul.addr %s43, 4
          %s847 = smul.addr %s846, 16
          %s848 = scalar_lea.hbm %s12, %s847
          %s850 = sshll.u32 %s842, 4
          %s851 = int_to_ptr.vmem [resolvable:$true] %s850
          %853 = dma.hbm_to_vmem [thread:$0]  %s848, 64, %s851, %s839
        $region88: #{tpu_custom_call.1} parent=39 // pred_fallthru
          _
        // Predicated region
        $region89: #{tpu_custom_call.1} parent=39 // pred_check
          %p854 = pneg %p396
        $region90: #{tpu_custom_call.1} parent=39 // pred_check_branch
          %856 = sbr.rel (%p854) target = $region92
        $region91: #{tpu_custom_call.1} parent=39 // pred_region
          %p857 = scmp.lt.s32.totalorder %s43, 1
          %s858 = scalar_select %p857, %s43, 1
          %s859 = smul.addr %s858, 64
          %s860 = smul.addr %s859, 8
          %s861 = scalar_lea.vmem %s13, %s860
        $region92: #{tpu_custom_call.1} parent=39 // pred_fallthru
          _
        // Predicated region
        $region93: #{tpu_custom_call.1} parent=39 // pred_check
          %p862 = pneg %p422
        $region94: #{tpu_custom_call.1} parent=39 // pred_check_branch
          %864 = sbr.rel (%p862) target = $region96
        $region95: #{tpu_custom_call.1} parent=39 // pred_region
          %p865 = scmp.lt.s32.totalorder %s43, 1
          %s866 = scalar_select %p865, %s43, 1
          %s867 = scalar_lea.vmem %s14, %s866
        $region96: #{tpu_custom_call.1} parent=39 // pred_fallthru
          _
        // Predicated region
        $region97: #{tpu_custom_call.1} parent=39 // pred_check
          %p868 = pneg %p448
        $region98: #{tpu_custom_call.1} parent=39 // pred_check_branch
          %870 = sbr.rel (%p868) target = $region100
        $region99: #{tpu_custom_call.1} parent=39 // pred_region
          %p871 = scmp.lt.s32.totalorder %s43, 1
          %s872 = scalar_select %p871, %s43, 1
          %s873 = scalar_lea.vmem %s15, %s872
        $region100: #{tpu_custom_call.1} parent=39 // pred_fallthru
          _
        // Predicated region
        $region101: #{tpu_custom_call.1} parent=39 // pred_check
          %p874 = pneg %p474
        $region102: #{tpu_custom_call.1} parent=39 // pred_check_branch
          %876 = sbr.rel (%p874) target = $region104
        $region103: #{tpu_custom_call.1} parent=39 // pred_region
          %p877 = scmp.lt.s32.totalorder %s43, 1
          %s878 = scalar_select %p877, %s43, 1
          %s879 = scalar_lea.vmem %s16, %s878
        $region104: #{tpu_custom_call.1} parent=39 // pred_fallthru
          _
      $region40: #{tpu_custom_call.1} parent=5 // pred_fallthru
        _
      %p880 = scmp.le.s32.totalorder 1, %s43
      %p881 = scmp.lt.s32.totalorder %s43, 3
      %p882 = pnand %p880, %p881
      %p883 = pneg %p882
      // Predicated region
      $region105: #{tpu_custom_call.1} parent=5 // pred_check
        _
      $region106: #{tpu_custom_call.1} parent=5 // pred_check_branch
        %885 = sbr.rel (%p882) target = $region108
      $region107: #{tpu_custom_call.1} parent=5 // pred_region
        %s886 = ssub.s32 %s43, 1
        // Predicated region
        $region109: #{tpu_custom_call.1} parent=107 // pred_check
          %p887 = pneg %p64
        $region110: #{tpu_custom_call.1} parent=107 // pred_check_branch
          %889 = sbr.rel (%p887) target = $region112
        $region111: #{tpu_custom_call.1} parent=107 // pred_region
          %890 = dma.done [#allocation4], 128
        $region112: #{tpu_custom_call.1} parent=107 // pred_fallthru
          _
        %s891 = sand.u32 %s48, 1
        %s892 = scalar_lea.sflag [#allocation7], %s891
        %s893 = sand.u32 %s103, 1
        %s894 = smul.addr %s893, 2
        %s895 = scalar_lea.vmem [#allocation6], %s894
        // Predicated region
        $region113: #{tpu_custom_call.1} parent=107 // pred_check
          %p896 = pneg %p116
        $region114: #{tpu_custom_call.1} parent=107 // pred_check_branch
          %898 = sbr.rel (%p896) target = $region116
        $region115: #{tpu_custom_call.1} parent=107 // pred_region
          %899 = dma.done %s892, 32
        $region116: #{tpu_custom_call.1} parent=107 // pred_fallthru
          _
        %s900 = sand.u32 %s48, 1
        %s901 = scalar_lea.sflag [#allocation7], %s900
        %s902 = sand.u32 %s155, 1
        %s903 = smul.addr %s902, 2
        %s904 = scalar_lea.vmem [#allocation8], %s903
        // Predicated region
        $region117: #{tpu_custom_call.1} parent=107 // pred_check
          %p905 = pneg %p168
        $region118: #{tpu_custom_call.1} parent=107 // pred_check_branch
          %907 = sbr.rel (%p905) target = $region120
        $region119: #{tpu_custom_call.1} parent=107 // pred_region
          %908 = dma.done %s901, 32
        $region120: #{tpu_custom_call.1} parent=107 // pred_fallthru
          _
        %s909 = sand.u32 %s48, 1
        %s910 = scalar_lea.sflag [#allocation10], %s909
        %s911 = sand.u32 %s207, 1
        %s912 = smul.addr %s911, 2
        %s913 = scalar_lea.vmem [#allocation9], %s912
        // Predicated region
        $region121: #{tpu_custom_call.1} parent=107 // pred_check
          %p914 = pneg %p220
        $region122: #{tpu_custom_call.1} parent=107 // pred_check_branch
          %916 = sbr.rel (%p914) target = $region124
        $region123: #{tpu_custom_call.1} parent=107 // pred_region
          %917 = dma.done %s910, 32
        $region124: #{tpu_custom_call.1} parent=107 // pred_fallthru
          _
        %s918 = sand.u32 %s48, 1
        %s919 = scalar_lea.sflag [#allocation10], %s918
        %s920 = sand.u32 %s259, 1
        %s921 = scalar_lea.vmem [#allocation11], %s920
        // Predicated region
        $region125: #{tpu_custom_call.1} parent=107 // pred_check
          %p922 = pneg %p272
        $region126: #{tpu_custom_call.1} parent=107 // pred_check_branch
          %924 = sbr.rel (%p922) target = $region128
        $region127: #{tpu_custom_call.1} parent=107 // pred_region
          %925 = dma.done %s919, 16
        $region128: #{tpu_custom_call.1} parent=107 // pred_fallthru
          _
        %s926 = sand.u32 %s48, 1
        %s927 = scalar_lea.sflag [#allocation13], %s926
        %s928 = sand.u32 %s285, 1
        %s929 = scalar_lea.vmem [#allocation12], %s928
        // Predicated region
        $region129: #{tpu_custom_call.1} parent=107 // pred_check
          %p930 = pneg %p298
        $region130: #{tpu_custom_call.1} parent=107 // pred_check_branch
          %932 = sbr.rel (%p930) target = $region132
        $region131: #{tpu_custom_call.1} parent=107 // pred_region
          %933 = dma.done %s927, 16
        $region132: #{tpu_custom_call.1} parent=107 // pred_fallthru
          _
        %s934 = sand.u32 %s48, 1
        %s935 = scalar_lea.sflag [#allocation13], %s934
        %s936 = sand.u32 %s311, 1
        %s937 = scalar_lea.vmem [#allocation14], %s936
        // Predicated region
        $region133: #{tpu_custom_call.1} parent=107 // pred_check
          %p938 = pneg %p324
        $region134: #{tpu_custom_call.1} parent=107 // pred_check_branch
          %940 = sbr.rel (%p938) target = $region136
        $region135: #{tpu_custom_call.1} parent=107 // pred_region
          %941 = dma.done %s935, 16
        $region136: #{tpu_custom_call.1} parent=107 // pred_fallthru
          _
        %s942 = sand.u32 %s48, 1
        %s943 = scalar_lea.sflag [#allocation16], %s942
        %s944 = sand.u32 %s363, 1
        %s945 = smul.addr %s944, 4
        %s946 = scalar_lea.vmem [#allocation15], %s945
        // Predicated region
        $region137: #{tpu_custom_call.1} parent=107 // pred_check
          %p947 = pneg %p376
        $region138: #{tpu_custom_call.1} parent=107 // pred_check_branch
          %949 = sbr.rel (%p947) target = $region140
        $region139: #{tpu_custom_call.1} parent=107 // pred_region
          %950 = dma.done %s943, 64
        $region140: #{tpu_custom_call.1} parent=107 // pred_fallthru
          _
        // Predicated region
        $region141: #{tpu_custom_call.1} parent=107 // pred_check
          %p951 = pneg %p501
        $region142: #{tpu_custom_call.1} parent=107 // pred_check_branch
          %953 = sbr.rel (%p951) target = $region144
        $region143: #{tpu_custom_call.1} parent=107 // pred_region
          %954 = dma.done [#allocation16], 2048
        $region144: #{tpu_custom_call.1} parent=107 // pred_fallthru
          _
        // Predicated region
        $region145: #{tpu_custom_call.1} parent=107 // pred_check
          %p955 = pneg %p522
        $region146: #{tpu_custom_call.1} parent=107 // pred_check_branch
          %957 = sbr.rel (%p955) target = $region148
        $region147: #{tpu_custom_call.1} parent=107 // pred_region
          %958 = dma.done [#allocation19], 2048
        $region148: #{tpu_custom_call.1} parent=107 // pred_fallthru
          _
        // Predicated region
        $region149: #{tpu_custom_call.1} parent=107 // pred_check
          %p959 = pneg %p564
        $region150: #{tpu_custom_call.1} parent=107 // pred_check_branch
          %961 = sbr.rel (%p959) target = $region152
        $region151: #{tpu_custom_call.1} parent=107 // pred_region
          %962 = dma.done [#allocation19], 2048
        $region152: #{tpu_custom_call.1} parent=107 // pred_fallthru
          _
        %p963 = pneg %p64
        %p964 = pneg %p61
        %p965 = scmp.lt.s32.totalorder %s48, 1
        %s966 = scalar_select %p965, %s48, 1
        %s967 = smul.addr %s966, 32
        %s968 = smul.addr %s967, 8
        %s969 = scalar_lea.vmem %s1, %s968
        %p970 = pneg %p90
        %p971 = pneg %p87
        %s972 = sand.u32 %s48, 1
        %s973 = scalar_lea.sflag [#allocation7], %s972
        %s974 = sand.u32 %s103, 1
        %s975 = smul.addr %s974, 2
        %s976 = scalar_lea.vmem [#allocation6], %s975
        %p977 = pneg %p116
        %p978 = pneg %p113
        %p979 = scmp.lt.s32.totalorder %s48, 1
        %s980 = scalar_select %p979, %s48, 1
        %s981 = smul.addr %s980, 32
        %s982 = smul.addr %s981, 8
        %s983 = scalar_lea.vmem %s3, %s982
        %p984 = pneg %p142
        %p985 = pneg %p139
        %s986 = sand.u32 %s48, 1
        %s987 = scalar_lea.sflag [#allocation7], %s986
        %s988 = sand.u32 %s155, 1
        %s989 = smul.addr %s988, 2
        %s990 = scalar_lea.vmem [#allocation8], %s989
        %p991 = pneg %p168
        %p992 = pneg %p165
        %p993 = scmp.lt.s32.totalorder %s48, 1
        %s994 = scalar_select %p993, %s48, 1
        %s995 = smul.addr %s994, 32
        %s996 = smul.addr %s995, 8
        %s997 = scalar_lea.vmem %s5, %s996
        %p998 = pneg %p194
        %p999 = pneg %p191
        %s1000 = sand.u32 %s48, 1
        %s1001 = scalar_lea.sflag [#allocation10], %s1000
        %s1002 = sand.u32 %s207, 1
        %s1003 = smul.addr %s1002, 2
        %s1004 = scalar_lea.vmem [#allocation9], %s1003
        %p1005 = pneg %p220
        %p1006 = pneg %p217
        %p1007 = scmp.lt.s32.totalorder %s48, 1
        %s1008 = scalar_select %p1007, %s48, 1
        %s1009 = smul.addr %s1008, 16
        %s1010 = smul.addr %s1009, 8
        %s1011 = scalar_lea.vmem %s7, %s1010
        %p1012 = pneg %p246
        %p1013 = pneg %p243
        %s1014 = sand.u32 %s48, 1
        %s1015 = scalar_lea.sflag [#allocation10], %s1014
        %s1016 = sand.u32 %s259, 1
        %s1017 = scalar_lea.vmem [#allocation11], %s1016
        %p1018 = pneg %p272
        %p1019 = pneg %p269
        %s1020 = sand.u32 %s48, 1
        %s1021 = scalar_lea.sflag [#allocation13], %s1020
        %s1022 = sand.u32 %s285, 1
        %s1023 = scalar_lea.vmem [#allocation12], %s1022
        %p1024 = pneg %p298
        %p1025 = pneg %p295
        %s1026 = sand.u32 %s48, 1
        %s1027 = scalar_lea.sflag [#allocation13], %s1026
        %s1028 = sand.u32 %s311, 1
        %s1029 = scalar_lea.vmem [#allocation14], %s1028
        %p1030 = pneg %p324
        %p1031 = pneg %p321
        %p1032 = scmp.lt.s32.totalorder %s48, 1
        %s1033 = scalar_select %p1032, %s48, 1
        %s1034 = smul.addr %s1033, 64
        %s1035 = smul.addr %s1034, 8
        %s1036 = scalar_lea.vmem %s11, %s1035
        %p1037 = pneg %p350
        %p1038 = pneg %p347
        %s1039 = sand.u32 %s48, 1
        %s1040 = scalar_lea.sflag [#allocation16], %s1039
        %s1041 = sand.u32 %s363, 1
        %s1042 = smul.addr %s1041, 4
        %s1043 = scalar_lea.vmem [#allocation15], %s1042
        %p1044 = pneg %p376
        %p1045 = pneg %p373
        %p1046 = scmp.lt.s32.totalorder %s48, 1
        %s1047 = scalar_select %p1046, %s48, 1
        %s1048 = smul.addr %s1047, 64
        %s1049 = smul.addr %s1048, 8
        %s1050 = scalar_lea.vmem %s13, %s1049
        %p1051 = pneg %p402
        %p1052 = pneg %p399
        %p1053 = scmp.lt.s32.totalorder %s48, 1
        %s1054 = scalar_select %p1053, %s48, 1
        %s1055 = scalar_lea.vmem %s14, %s1054
        %p1056 = pneg %p428
        %p1057 = pneg %p425
        %p1058 = scmp.lt.s32.totalorder %s48, 1
        %s1059 = scalar_select %p1058, %s48, 1
        %s1060 = scalar_lea.vmem %s15, %s1059
        %p1061 = pneg %p454
        %p1062 = pneg %p451
        %p1063 = scmp.lt.s32.totalorder %s48, 1
        %s1064 = scalar_select %p1063, %s48, 1
        %s1065 = scalar_lea.vmem %s16, %s1064
        %p1066 = pneg %p480
        %p1067 = pneg %p477
        %p1068 = pneg %p501
        %p1069 = pneg %p498
        %p1070 = pneg %p522
        %p1071 = pneg %p519
        %p1072 = pneg %p543
        %p1073 = pneg %p540
        %p1074 = pneg %p564
        %p1075 = pneg %p561
        %p1076 = pneg %p585
        %p1077 = pneg %p582
        %p1078 = pneg %p606
        %p1079 = pneg %p603
        %p1080 = scmp.lt.s32.totalorder %s48, 1
        %s1081 = scalar_select %p1080, %s48, 1
        %s1082 = smul.addr %s1081, 32
        %s1083 = smul.addr %s1082, 8
        %s1084 = scalar_lea.vmem %s1, %s1083
        %p1085 = scmp.lt.s32.totalorder %s48, 1
        %s1086 = scalar_select %p1085, %s48, 1
        %s1087 = smul.addr %s1086, 32
        %s1088 = smul.addr %s1087, 8
        %s1089 = scalar_lea.vmem %s3, %s1088
        %p1090 = scmp.lt.s32.totalorder %s48, 1
        %s1091 = scalar_select %p1090, %s48, 1
        %s1092 = smul.addr %s1091, 32
        %s1093 = smul.addr %s1092, 8
        %s1094 = scalar_lea.vmem %s5, %s1093
        %p1095 = scmp.lt.s32.totalorder %s48, 1
        %s1096 = scalar_select %p1095, %s48, 1
        %s1097 = smul.addr %s1096, 16
        %s1098 = smul.addr %s1097, 8
        %s1099 = scalar_lea.vmem %s7, %s1098
        %p1100 = scmp.lt.s32.totalorder %s48, 1
        %s1101 = scalar_select %p1100, %s48, 1
        %s1102 = smul.addr %s1101, 64
        %s1103 = smul.addr %s1102, 8
        %s1104 = scalar_lea.vmem %s11, %s1103
        %p1105 = scmp.lt.s32.totalorder %s48, 1
        %s1106 = scalar_select %p1105, %s48, 1
        %s1107 = smul.addr %s1106, 64
        %s1108 = smul.addr %s1107, 8
        %s1109 = scalar_lea.vmem %s13, %s1108
        %p1110 = scmp.lt.s32.totalorder %s48, 1
        %s1111 = scalar_select %p1110, %s48, 1
        %s1112 = scalar_lea.vmem %s14, %s1111
        %p1113 = scmp.lt.s32.totalorder %s48, 1
        %s1114 = scalar_select %p1113, %s48, 1
        %s1115 = scalar_lea.vmem %s15, %s1114
        %p1116 = scmp.lt.s32.totalorder %s48, 1
        %s1117 = scalar_select %p1116, %s48, 1
        %s1118 = scalar_lea.vmem %s16, %s1117
        %p1119 = scmp.eq.s32.totalorder %s48, 0
        // Predicated region
        $region153: #{tpu_custom_call.1} parent=107 // pred_check
          %p1120 = pneg %p1119
        $region154: #{tpu_custom_call.1} parent=107 // pred_check_branch
          %1122 = sbr.rel (%p1120) target = $region156
        $region155: #{tpu_custom_call.1} parent=107 // pred_region
          %v1123 = vld [vmem:[#allocation3] sm:$0xff]
          %1124 = vst [vmem:[#allocation2] sm:$0xff] %v1123
        $region156: #{tpu_custom_call.1} parent=107 // pred_fallthru
          _
        %v1125 = vld [vmem:[#allocation2] sm:$0xff]
        %v1126 = vld [vmem:[%s1084] sm:$0xff]
        %v1127 = vld [vmem:[%s1084 + $0x8] sm:$0xff]
        %v1128 = vld [vmem:[%s1084 + $0x10] sm:$0xff]
        %v1129 = vld [vmem:[%s1084 + $0x18] sm:$0xff]
        %v1130 = vld [vmem:[%s1084 + $0x20] sm:$0xff]
        %v1131 = vld [vmem:[%s1084 + $0x28] sm:$0xff]
        %v1132 = vld [vmem:[%s1084 + $0x30] sm:$0xff]
        %v1133 = vld [vmem:[%s1084 + $0x38] sm:$0xff]
        %v1134 = vld [vmem:[%s1084 + $0x40] sm:$0xff]
        %v1135 = vld [vmem:[%s1084 + $0x48] sm:$0xff]
        %v1136 = vld [vmem:[%s1084 + $0x50] sm:$0xff]
        %v1137 = vld [vmem:[%s1084 + $0x58] sm:$0xff]
        %v1138 = vld [vmem:[%s1084 + $0x60] sm:$0xff]
        %v1139 = vld [vmem:[%s1084 + $0x68] sm:$0xff]
        %v1140 = vld [vmem:[%s1084 + $0x70] sm:$0xff]
        %v1141 = vld [vmem:[%s1084 + $0x78] sm:$0xff]
        %v1142 = vld [vmem:[%s1084 + $0x80] sm:$0xff]
        %v1143 = vld [vmem:[%s1084 + $0x88] sm:$0xff]
        %v1144 = vld [vmem:[%s1084 + $0x90] sm:$0xff]
        %v1145 = vld [vmem:[%s1084 + $0x98] sm:$0xff]
        %v1146 = vld [vmem:[%s1084 + $0xa0] sm:$0xff]
        %v1147 = vld [vmem:[%s1084 + $0xa8] sm:$0xff]
        %v1148 = vld [vmem:[%s1084 + $0xb0] sm:$0xff]
        %v1149 = vld [vmem:[%s1084 + $0xb8] sm:$0xff]
        %v1150 = vld [vmem:[%s1084 + $0xc0] sm:$0xff]
        %v1151 = vld [vmem:[%s1084 + $0xc8] sm:$0xff]
        %v1152 = vld [vmem:[%s1084 + $0xd0] sm:$0xff]
        %v1153 = vld [vmem:[%s1084 + $0xd8] sm:$0xff]
        %v1154 = vld [vmem:[%s1084 + $0xe0] sm:$0xff]
        %v1155 = vld [vmem:[%s1084 + $0xe8] sm:$0xff]
        %v1156 = vld [vmem:[%s1084 + $0xf0] sm:$0xff]
        %v1157 = vld [vmem:[%s1084 + $0xf8] sm:$0xff]
        %v1158 = vld [vmem:[%s895] sm:$0x1]
        %v1159 = vld [vmem:[%s895 + $0x1] sm:$0x1]
        %v1160 = vld [vmem:[%s1089] sm:$0xff]
        %v1161 = vld [vmem:[%s1089 + $0x8] sm:$0xff]
        %v1162 = vld [vmem:[%s1089 + $0x10] sm:$0xff]
        %v1163 = vld [vmem:[%s1089 + $0x18] sm:$0xff]
        %v1164 = vld [vmem:[%s1089 + $0x20] sm:$0xff]
        %v1165 = vld [vmem:[%s1089 + $0x28] sm:$0xff]
        %v1166 = vld [vmem:[%s1089 + $0x30] sm:$0xff]
        %v1167 = vld [vmem:[%s1089 + $0x38] sm:$0xff]
        %v1168 = vld [vmem:[%s1089 + $0x40] sm:$0xff]
        %v1169 = vld [vmem:[%s1089 + $0x48] sm:$0xff]
        %v1170 = vld [vmem:[%s1089 + $0x50] sm:$0xff]
        %v1171 = vld [vmem:[%s1089 + $0x58] sm:$0xff]
        %v1172 = vld [vmem:[%s1089 + $0x60] sm:$0xff]
        %v1173 = vld [vmem:[%s1089 + $0x68] sm:$0xff]
        %v1174 = vld [vmem:[%s1089 + $0x70] sm:$0xff]
        %v1175 = vld [vmem:[%s1089 + $0x78] sm:$0xff]
        %v1176 = vld [vmem:[%s1089 + $0x80] sm:$0xff]
        %v1177 = vld [vmem:[%s1089 + $0x88] sm:$0xff]
        %v1178 = vld [vmem:[%s1089 + $0x90] sm:$0xff]
        %v1179 = vld [vmem:[%s1089 + $0x98] sm:$0xff]
        %v1180 = vld [vmem:[%s1089 + $0xa0] sm:$0xff]
        %v1181 = vld [vmem:[%s1089 + $0xa8] sm:$0xff]
        %v1182 = vld [vmem:[%s1089 + $0xb0] sm:$0xff]
        %v1183 = vld [vmem:[%s1089 + $0xb8] sm:$0xff]
        %v1184 = vld [vmem:[%s1089 + $0xc0] sm:$0xff]
        %v1185 = vld [vmem:[%s1089 + $0xc8] sm:$0xff]
        %v1186 = vld [vmem:[%s1089 + $0xd0] sm:$0xff]
        %v1187 = vld [vmem:[%s1089 + $0xd8] sm:$0xff]
        %v1188 = vld [vmem:[%s1089 + $0xe0] sm:$0xff]
        %v1189 = vld [vmem:[%s1089 + $0xe8] sm:$0xff]
        %v1190 = vld [vmem:[%s1089 + $0xf0] sm:$0xff]
        %v1191 = vld [vmem:[%s1089 + $0xf8] sm:$0xff]
        %v1192 = vld [vmem:[%s904] sm:$0x1]
        %v1193 = vld [vmem:[%s904 + $0x1] sm:$0x1]
        %v1194 = vld [vmem:[%s1094] sm:$0xff]
        %v1195 = vld [vmem:[%s1094 + $0x8] sm:$0xff]
        %v1196 = vld [vmem:[%s1094 + $0x10] sm:$0xff]
        %v1197 = vld [vmem:[%s1094 + $0x18] sm:$0xff]
        %v1198 = vld [vmem:[%s1094 + $0x20] sm:$0xff]
        %v1199 = vld [vmem:[%s1094 + $0x28] sm:$0xff]
        %v1200 = vld [vmem:[%s1094 + $0x30] sm:$0xff]
        %v1201 = vld [vmem:[%s1094 + $0x38] sm:$0xff]
        %v1202 = vld [vmem:[%s1094 + $0x40] sm:$0xff]
        %v1203 = vld [vmem:[%s1094 + $0x48] sm:$0xff]
        %v1204 = vld [vmem:[%s1094 + $0x50] sm:$0xff]
        %v1205 = vld [vmem:[%s1094 + $0x58] sm:$0xff]
        %v1206 = vld [vmem:[%s1094 + $0x60] sm:$0xff]
        %v1207 = vld [vmem:[%s1094 + $0x68] sm:$0xff]
        %v1208 = vld [vmem:[%s1094 + $0x70] sm:$0xff]
        %v1209 = vld [vmem:[%s1094 + $0x78] sm:$0xff]
        %v1210 = vld [vmem:[%s1094 + $0x80] sm:$0xff]
        %v1211 = vld [vmem:[%s1094 + $0x88] sm:$0xff]
        %v1212 = vld [vmem:[%s1094 + $0x90] sm:$0xff]
        %v1213 = vld [vmem:[%s1094 + $0x98] sm:$0xff]
        %v1214 = vld [vmem:[%s1094 + $0xa0] sm:$0xff]
        %v1215 = vld [vmem:[%s1094 + $0xa8] sm:$0xff]
        %v1216 = vld [vmem:[%s1094 + $0xb0] sm:$0xff]
        %v1217 = vld [vmem:[%s1094 + $0xb8] sm:$0xff]
        %v1218 = vld [vmem:[%s1094 + $0xc0] sm:$0xff]
        %v1219 = vld [vmem:[%s1094 + $0xc8] sm:$0xff]
        %v1220 = vld [vmem:[%s1094 + $0xd0] sm:$0xff]
        %v1221 = vld [vmem:[%s1094 + $0xd8] sm:$0xff]
        %v1222 = vld [vmem:[%s1094 + $0xe0] sm:$0xff]
        %v1223 = vld [vmem:[%s1094 + $0xe8] sm:$0xff]
        %v1224 = vld [vmem:[%s1094 + $0xf0] sm:$0xff]
        %v1225 = vld [vmem:[%s1094 + $0xf8] sm:$0xff]
        %v1226 = vld [vmem:[%s913] sm:$0x1]
        %v1227 = vld [vmem:[%s913 + $0x1] sm:$0x1]
        %v1228 = vld [vmem:[%s1099] sm:$0xff]
        %v1229 = vld [vmem:[%s1099 + $0x8] sm:$0xff]
        %v1230 = vld [vmem:[%s1099 + $0x10] sm:$0xff]
        %v1231 = vld [vmem:[%s1099 + $0x18] sm:$0xff]
        %v1232 = vld [vmem:[%s1099 + $0x20] sm:$0xff]
        %v1233 = vld [vmem:[%s1099 + $0x28] sm:$0xff]
        %v1234 = vld [vmem:[%s1099 + $0x30] sm:$0xff]
        %v1235 = vld [vmem:[%s1099 + $0x38] sm:$0xff]
        %v1236 = vld [vmem:[%s1099 + $0x40] sm:$0xff]
        %v1237 = vld [vmem:[%s1099 + $0x48] sm:$0xff]
        %v1238 = vld [vmem:[%s1099 + $0x50] sm:$0xff]
        %v1239 = vld [vmem:[%s1099 + $0x58] sm:$0xff]
        %v1240 = vld [vmem:[%s1099 + $0x60] sm:$0xff]
        %v1241 = vld [vmem:[%s1099 + $0x68] sm:$0xff]
        %v1242 = vld [vmem:[%s1099 + $0x70] sm:$0xff]
        %v1243 = vld [vmem:[%s1099 + $0x78] sm:$0xff]
        %v1246 = vlaneseq
        %v1247 = vshrl.u32 %v1246, 7
        %v1248 = vsub.s32 0, %v1247
        %v1249 = vrot.slane %v1158, %v1248
        %v1250 = vlaneseq
        %v1251 = vshrl.u32 %v1250, 7
        %v1252 = vsub.s32 0, %v1251
        %v1253 = vrot.slane %v1159, %v1252
        %1256 = vmatprep.subr.mxu0 0.0
        %1257 = vmatpush1.msra.mxu0 %v1141
        %1258 = vmatprep.subr.mxu0 0.0
        %1259 = vmatpush1.msra.mxu0 %v1140
        %1260 = vmatprep.subr.mxu0 0.0
        %1261 = vmatpush1.msra.mxu0 %v1139
        %1262 = vmatprep.subr.mxu0 0.0
        %1263 = vmatpush1.msra.mxu0 %v1138
        %1264 = vmatprep.subr.mxu0 0.0
        %1265 = vmatpush1.msra.mxu0 %v1137
        %1266 = vmatprep.subr.mxu0 0.0
        %1267 = vmatpush1.msra.mxu0 %v1136
        %1268 = vmatprep.subr.mxu0 0.0
        %1269 = vmatpush1.msra.mxu0 %v1135
        %1270 = vmatprep.subr.mxu0 0.0
        %1271 = vmatpush1.msra.mxu0 %v1134
        %1272 = vmatprep.subr.mxu0 0.0
        %1273 = vmatpush1.msra.mxu0 %v1133
        %1274 = vmatprep.subr.mxu0 0.0
        %1275 = vmatpush1.msra.mxu0 %v1132
        %1276 = vmatprep.subr.mxu0 0.0
        %1277 = vmatpush1.msra.mxu0 %v1131
        %1278 = vmatprep.subr.mxu0 0.0
        %1279 = vmatpush1.msra.mxu0 %v1130
        %1280 = vmatprep.subr.mxu0 0.0
        %1281 = vmatpush1.msra.mxu0 %v1129
        %1282 = vmatprep.subr.mxu0 0.0
        %1283 = vmatpush1.msra.mxu0 %v1128
        %1284 = vmatprep.subr.mxu0 0.0
        %1285 = vmatpush1.msra.mxu0 %v1127
        %1286 = vmatprep.subr.mxu0 0.0
        %1287 = vmatpush1.msra.mxu0 %v1126
        %1288 = vmatprep.subr.mxu0 0.0
        %1289 = vmatpush2.msra.mxu0 0.0
        %1290 = vmatprep.subr.mxu0 0.0
        %1291 = vmatpush2.msra.mxu0 0.0
        %1292 = vmatprep.subr.mxu0 0.0
        %1293 = vmatpush2.msra.mxu0 0.0
        %1294 = vmatprep.subr.mxu0 0.0
        %1295 = vmatpush2.msra.mxu0 0.0
        %1296 = vmatprep.subr.mxu0 0.0
        %1297 = vmatpush2.msra.mxu0 0.0
        %1298 = vmatprep.subr.mxu0 0.0
        %1299 = vmatpush2.msra.mxu0 0.0
        %1300 = vmatprep.subr.mxu0 0.0
        %1301 = vmatpush2.msra.mxu0 0.0
        %1302 = vmatprep.subr.mxu0 0.0
        %1303 = vmatpush2.msra.mxu0 0.0
        %1304 = vmatprep.subr.mxu0 0.0
        %1305 = vmatpush2.msra.mxu0 0.0
        %1306 = vmatprep.subr.mxu0 0.0
        %1307 = vmatpush2.msra.mxu0 0.0
        %1308 = vmatprep.subr.mxu0 0.0
        %1309 = vmatpush2.msra.mxu0 0.0
        %1310 = vmatprep.subr.mxu0 0.0
        %1311 = vmatpush2.msra.mxu0 0.0
        %1312 = vmatprep.subr.mxu0 0.0
        %1313 = vmatpush2.msra.mxu0 0.0
        %1314 = vmatprep.subr.mxu0 0.0
        %1315 = vmatpush2.msra.mxu0 0.0
        %1316 = vmatprep.subr.mxu0 0.0
        %1317 = vmatpush2.msra.mxu0 0.0
        %1318 = vmatprep.subr.mxu0 0.0
        %1319 = vmatpush2.msra.mxu0 0.0
        %1320 = vmatprep.mubr.f32.mxu0 0.0
        %1321 = vmatmul.mubr.f32.gmra.mxu0 %v1125
        %v1322 = vpop.f32.mrf.mxu0
        %v1323 = vadd.f32 %v1249, %v1322
        %v1324 = vpop.f32.mrf.mxu0
        %1325 = vdwg.mxu0
        %1326 = vmatprep.subr.mxu0 0.0
        %1327 = vmatpush1.msra.mxu0 %v1157
        %1328 = vmatprep.subr.mxu0 0.0
        %1329 = vmatpush1.msra.mxu0 %v1156
        %1330 = vmatprep.subr.mxu0 0.0
        %1331 = vmatpush1.msra.mxu0 %v1155
        %1332 = vmatprep.subr.mxu0 0.0
        %1333 = vmatpush1.msra.mxu0 %v1154
        %1334 = vmatprep.subr.mxu0 0.0
        %1335 = vmatpush1.msra.mxu0 %v1153
        %1336 = vmatprep.subr.mxu0 0.0
        %1337 = vmatpush1.msra.mxu0 %v1152
        %1338 = vmatprep.subr.mxu0 0.0
        %1339 = vmatpush1.msra.mxu0 %v1151
        %1340 = vmatprep.subr.mxu0 0.0
        %1341 = vmatpush1.msra.mxu0 %v1150
        %1342 = vmatprep.subr.mxu0 0.0
        %1343 = vmatpush1.msra.mxu0 %v1149
        %1344 = vmatprep.subr.mxu0 0.0
        %1345 = vmatpush1.msra.mxu0 %v1148
        %1346 = vmatprep.subr.mxu0 0.0
        %1347 = vmatpush1.msra.mxu0 %v1147
        %1348 = vmatprep.subr.mxu0 0.0
        %1349 = vmatpush1.msra.mxu0 %v1146
        %1350 = vmatprep.subr.mxu0 0.0
        %1351 = vmatpush1.msra.mxu0 %v1145
        %1352 = vmatprep.subr.mxu0 0.0
        %1353 = vmatpush1.msra.mxu0 %v1144
        %1354 = vmatprep.subr.mxu0 0.0
        %1355 = vmatpush1.msra.mxu0 %v1143
        %1356 = vmatprep.subr.mxu0 0.0
        %1357 = vmatpush1.msra.mxu0 %v1142
        %1358 = vmatprep.subr.mxu0 0.0
        %1359 = vmatpush2.msra.mxu0 0.0
        %1360 = vmatprep.subr.mxu0 0.0
        %1361 = vmatpush2.msra.mxu0 0.0
        %1362 = vmatprep.subr.mxu0 0.0
        %1363 = vmatpush2.msra.mxu0 0.0
        %1364 = vmatprep.subr.mxu0 0.0
        %1365 = vmatpush2.msra.mxu0 0.0
        %1366 = vmatprep.subr.mxu0 0.0
        %1367 = vmatpush2.msra.mxu0 0.0
        %1368 = vmatprep.subr.mxu0 0.0
        %1369 = vmatpush2.msra.mxu0 0.0
        %1370 = vmatprep.subr.mxu0 0.0
        %1371 = vmatpush2.msra.mxu0 0.0
        %1372 = vmatprep.subr.mxu0 0.0
        %1373 = vmatpush2.msra.mxu0 0.0
        %1374 = vmatprep.subr.mxu0 0.0
        %1375 = vmatpush2.msra.mxu0 0.0
        %1376 = vmatprep.subr.mxu0 0.0
        %1377 = vmatpush2.msra.mxu0 0.0
        %1378 = vmatprep.subr.mxu0 0.0
        %1379 = vmatpush2.msra.mxu0 0.0
        %1380 = vmatprep.subr.mxu0 0.0
        %1381 = vmatpush2.msra.mxu0 0.0
        %1382 = vmatprep.subr.mxu0 0.0
        %1383 = vmatpush2.msra.mxu0 0.0
        %1384 = vmatprep.subr.mxu0 0.0
        %1385 = vmatpush2.msra.mxu0 0.0
        %1386 = vmatprep.subr.mxu0 0.0
        %1387 = vmatpush2.msra.mxu0 0.0
        %1388 = vmatprep.subr.mxu0 0.0
        %1389 = vmatpush2.msra.mxu0 0.0
        %1390 = vmatprep.mubr.f32.mxu0 0.0
        %1391 = vmatmul.mubr.f32.gmra.mxu0 %v1125
        %v1392 = vpop.f32.mrf.mxu0
        %v1393 = vadd.f32 %v1253, %v1392
        %v1394 = vpop.f32.mrf.mxu0
        %1395 = vdwg.mxu0
        %v1398 = vlaneseq
        %v1399 = vshrl.u32 %v1398, 7
        %v1400 = vsub.s32 0, %v1399
        %v1401 = vrot.slane %v1192, %v1400
        %v1402 = vlaneseq
        %v1403 = vshrl.u32 %v1402, 7
        %v1404 = vsub.s32 0, %v1403
        %v1405 = vrot.slane %v1193, %v1404
        %1408 = vmatprep.subr.mxu0 0.0
        %1409 = vmatpush1.msra.mxu0 %v1175
        %1410 = vmatprep.subr.mxu0 0.0
        %1411 = vmatpush1.msra.mxu0 %v1174
        %1412 = vmatprep.subr.mxu0 0.0
        %1413 = vmatpush1.msra.mxu0 %v1173
        %1414 = vmatprep.subr.mxu0 0.0
        %1415 = vmatpush1.msra.mxu0 %v1172
        %1416 = vmatprep.subr.mxu0 0.0
        %1417 = vmatpush1.msra.mxu0 %v1171
        %1418 = vmatprep.subr.mxu0 0.0
        %1419 = vmatpush1.msra.mxu0 %v1170
        %1420 = vmatprep.subr.mxu0 0.0
        %1421 = vmatpush1.msra.mxu0 %v1169
        %1422 = vmatprep.subr.mxu0 0.0
        %1423 = vmatpush1.msra.mxu0 %v1168
        %1424 = vmatprep.subr.mxu0 0.0
        %1425 = vmatpush1.msra.mxu0 %v1167
        %1426 = vmatprep.subr.mxu0 0.0
        %1427 = vmatpush1.msra.mxu0 %v1166
        %1428 = vmatprep.subr.mxu0 0.0
        %1429 = vmatpush1.msra.mxu0 %v1165
        %1430 = vmatprep.subr.mxu0 0.0
        %1431 = vmatpush1.msra.mxu0 %v1164
        %1432 = vmatprep.subr.mxu0 0.0
        %1433 = vmatpush1.msra.mxu0 %v1163
        %1434 = vmatprep.subr.mxu0 0.0
        %1435 = vmatpush1.msra.mxu0 %v1162
        %1436 = vmatprep.subr.mxu0 0.0
        %1437 = vmatpush1.msra.mxu0 %v1161
        %1438 = vmatprep.subr.mxu0 0.0
        %1439 = vmatpush1.msra.mxu0 %v1160
        %1440 = vmatprep.subr.mxu0 0.0
        %1441 = vmatpush2.msra.mxu0 0.0
        %1442 = vmatprep.subr.mxu0 0.0
        %1443 = vmatpush2.msra.mxu0 0.0
        %1444 = vmatprep.subr.mxu0 0.0
        %1445 = vmatpush2.msra.mxu0 0.0
        %1446 = vmatprep.subr.mxu0 0.0
        %1447 = vmatpush2.msra.mxu0 0.0
        %1448 = vmatprep.subr.mxu0 0.0
        %1449 = vmatpush2.msra.mxu0 0.0
        %1450 = vmatprep.subr.mxu0 0.0
        %1451 = vmatpush2.msra.mxu0 0.0
        %1452 = vmatprep.subr.mxu0 0.0
        %1453 = vmatpush2.msra.mxu0 0.0
        %1454 = vmatprep.subr.mxu0 0.0
        %1455 = vmatpush2.msra.mxu0 0.0
        %1456 = vmatprep.subr.mxu0 0.0
        %1457 = vmatpush2.msra.mxu0 0.0
        %1458 = vmatprep.subr.mxu0 0.0
        %1459 = vmatpush2.msra.mxu0 0.0
        %1460 = vmatprep.subr.mxu0 0.0
        %1461 = vmatpush2.msra.mxu0 0.0
        %1462 = vmatprep.subr.mxu0 0.0
        %1463 = vmatpush2.msra.mxu0 0.0
        %1464 = vmatprep.subr.mxu0 0.0
        %1465 = vmatpush2.msra.mxu0 0.0
        %1466 = vmatprep.subr.mxu0 0.0
        %1467 = vmatpush2.msra.mxu0 0.0
        %1468 = vmatprep.subr.mxu0 0.0
        %1469 = vmatpush2.msra.mxu0 0.0
        %1470 = vmatprep.subr.mxu0 0.0
        %1471 = vmatpush2.msra.mxu0 0.0
        %1472 = vmatprep.mubr.f32.mxu0 0.0
        %1473 = vmatmul.mubr.f32.gmra.mxu0 %v1125
        %v1474 = vpop.f32.mrf.mxu0
        %v1475 = vadd.f32 %v1401, %v1474
        %v1476 = vpop.f32.mrf.mxu0
        %1477 = vdwg.mxu0
        %1478 = vmatprep.subr.mxu0 0.0
        %1479 = vmatpush1.msra.mxu0 %v1191
        %1480 = vmatprep.subr.mxu0 0.0
        %1481 = vmatpush1.msra.mxu0 %v1190
        %1482 = vmatprep.subr.mxu0 0.0
        %1483 = vmatpush1.msra.mxu0 %v1189
        %1484 = vmatprep.subr.mxu0 0.0
        %1485 = vmatpush1.msra.mxu0 %v1188
        %1486 = vmatprep.subr.mxu0 0.0
        %1487 = vmatpush1.msra.mxu0 %v1187
        %1488 = vmatprep.subr.mxu0 0.0
        %1489 = vmatpush1.msra.mxu0 %v1186
        %1490 = vmatprep.subr.mxu0 0.0
        %1491 = vmatpush1.msra.mxu0 %v1185
        %1492 = vmatprep.subr.mxu0 0.0
        %1493 = vmatpush1.msra.mxu0 %v1184
        %1494 = vmatprep.subr.mxu0 0.0
        %1495 = vmatpush1.msra.mxu0 %v1183
        %1496 = vmatprep.subr.mxu0 0.0
        %1497 = vmatpush1.msra.mxu0 %v1182
        %1498 = vmatprep.subr.mxu0 0.0
        %1499 = vmatpush1.msra.mxu0 %v1181
        %1500 = vmatprep.subr.mxu0 0.0
        %1501 = vmatpush1.msra.mxu0 %v1180
        %1502 = vmatprep.subr.mxu0 0.0
        %1503 = vmatpush1.msra.mxu0 %v1179
        %1504 = vmatprep.subr.mxu0 0.0
        %1505 = vmatpush1.msra.mxu0 %v1178
        %1506 = vmatprep.subr.mxu0 0.0
        %1507 = vmatpush1.msra.mxu0 %v1177
        %1508 = vmatprep.subr.mxu0 0.0
        %1509 = vmatpush1.msra.mxu0 %v1176
        %1510 = vmatprep.subr.mxu0 0.0
        %1511 = vmatpush2.msra.mxu0 0.0
        %1512 = vmatprep.subr.mxu0 0.0
        %1513 = vmatpush2.msra.mxu0 0.0
        %1514 = vmatprep.subr.mxu0 0.0
        %1515 = vmatpush2.msra.mxu0 0.0
        %1516 = vmatprep.subr.mxu0 0.0
        %1517 = vmatpush2.msra.mxu0 0.0
        %1518 = vmatprep.subr.mxu0 0.0
        %1519 = vmatpush2.msra.mxu0 0.0
        %1520 = vmatprep.subr.mxu0 0.0
        %1521 = vmatpush2.msra.mxu0 0.0
        %1522 = vmatprep.subr.mxu0 0.0
        %1523 = vmatpush2.msra.mxu0 0.0
        %1524 = vmatprep.subr.mxu0 0.0
        %1525 = vmatpush2.msra.mxu0 0.0
        %1526 = vmatprep.subr.mxu0 0.0
        %1527 = vmatpush2.msra.mxu0 0.0
        %1528 = vmatprep.subr.mxu0 0.0
        %1529 = vmatpush2.msra.mxu0 0.0
        %1530 = vmatprep.subr.mxu0 0.0
        %1531 = vmatpush2.msra.mxu0 0.0
        %1532 = vmatprep.subr.mxu0 0.0
        %1533 = vmatpush2.msra.mxu0 0.0
        %1534 = vmatprep.subr.mxu0 0.0
        %1535 = vmatpush2.msra.mxu0 0.0
        %1536 = vmatprep.subr.mxu0 0.0
        %1537 = vmatpush2.msra.mxu0 0.0
        %1538 = vmatprep.subr.mxu0 0.0
        %1539 = vmatpush2.msra.mxu0 0.0
        %1540 = vmatprep.subr.mxu0 0.0
        %1541 = vmatpush2.msra.mxu0 0.0
        %1542 = vmatprep.mubr.f32.mxu0 0.0
        %1543 = vmatmul.mubr.f32.gmra.mxu0 %v1125
        %v1544 = vpop.f32.mrf.mxu0
        %v1545 = vadd.f32 %v1405, %v1544
        %v1546 = vpop.f32.mrf.mxu0
        %1547 = vdwg.mxu0
        %v1550 = vlaneseq
        %v1551 = vshrl.u32 %v1550, 7
        %v1552 = vsub.s32 0, %v1551
        %v1553 = vrot.slane %v1226, %v1552
        %v1554 = vlaneseq
        %v1555 = vshrl.u32 %v1554, 7
        %v1556 = vsub.s32 0, %v1555
        %v1557 = vrot.slane %v1227, %v1556
        %1560 = vmatprep.subr.mxu0 0.0
        %1561 = vmatpush1.msra.mxu0 %v1209
        %1562 = vmatprep.subr.mxu0 0.0
        %1563 = vmatpush1.msra.mxu0 %v1208
        %1564 = vmatprep.subr.mxu0 0.0
        %1565 = vmatpush1.msra.mxu0 %v1207
        %1566 = vmatprep.subr.mxu0 0.0
        %1567 = vmatpush1.msra.mxu0 %v1206
        %1568 = vmatprep.subr.mxu0 0.0
        %1569 = vmatpush1.msra.mxu0 %v1205
        %1570 = vmatprep.subr.mxu0 0.0
        %1571 = vmatpush1.msra.mxu0 %v1204
        %1572 = vmatprep.subr.mxu0 0.0
        %1573 = vmatpush1.msra.mxu0 %v1203
        %1574 = vmatprep.subr.mxu0 0.0
        %1575 = vmatpush1.msra.mxu0 %v1202
        %1576 = vmatprep.subr.mxu0 0.0
        %1577 = vmatpush1.msra.mxu0 %v1201
        %1578 = vmatprep.subr.mxu0 0.0
        %1579 = vmatpush1.msra.mxu0 %v1200
        %1580 = vmatprep.subr.mxu0 0.0
        %1581 = vmatpush1.msra.mxu0 %v1199
        %1582 = vmatprep.subr.mxu0 0.0
        %1583 = vmatpush1.msra.mxu0 %v1198
        %1584 = vmatprep.subr.mxu0 0.0
        %1585 = vmatpush1.msra.mxu0 %v1197
        %1586 = vmatprep.subr.mxu0 0.0
        %1587 = vmatpush1.msra.mxu0 %v1196
        %1588 = vmatprep.subr.mxu0 0.0
        %1589 = vmatpush1.msra.mxu0 %v1195
        %1590 = vmatprep.subr.mxu0 0.0
        %1591 = vmatpush1.msra.mxu0 %v1194
        %1592 = vmatprep.subr.mxu0 0.0
        %1593 = vmatpush2.msra.mxu0 0.0
        %1594 = vmatprep.subr.mxu0 0.0
        %1595 = vmatpush2.msra.mxu0 0.0
        %1596 = vmatprep.subr.mxu0 0.0
        %1597 = vmatpush2.msra.mxu0 0.0
        %1598 = vmatprep.subr.mxu0 0.0
        %1599 = vmatpush2.msra.mxu0 0.0
        %1600 = vmatprep.subr.mxu0 0.0
        %1601 = vmatpush2.msra.mxu0 0.0
        %1602 = vmatprep.subr.mxu0 0.0
        %1603 = vmatpush2.msra.mxu0 0.0
        %1604 = vmatprep.subr.mxu0 0.0
        %1605 = vmatpush2.msra.mxu0 0.0
        %1606 = vmatprep.subr.mxu0 0.0
        %1607 = vmatpush2.msra.mxu0 0.0
        %1608 = vmatprep.subr.mxu0 0.0
        %1609 = vmatpush2.msra.mxu0 0.0
        %1610 = vmatprep.subr.mxu0 0.0
        %1611 = vmatpush2.msra.mxu0 0.0
        %1612 = vmatprep.subr.mxu0 0.0
        %1613 = vmatpush2.msra.mxu0 0.0
        %1614 = vmatprep.subr.mxu0 0.0
        %1615 = vmatpush2.msra.mxu0 0.0
        %1616 = vmatprep.subr.mxu0 0.0
        %1617 = vmatpush2.msra.mxu0 0.0
        %1618 = vmatprep.subr.mxu0 0.0
        %1619 = vmatpush2.msra.mxu0 0.0
        %1620 = vmatprep.subr.mxu0 0.0
        %1621 = vmatpush2.msra.mxu0 0.0
        %1622 = vmatprep.subr.mxu0 0.0
        %1623 = vmatpush2.msra.mxu0 0.0
        %1624 = vmatprep.mubr.f32.mxu0 0.0
        %1625 = vmatmul.mubr.f32.gmra.mxu0 %v1125
        %v1626 = vpop.f32.mrf.mxu0
        %v1627 = vadd.f32 %v1553, %v1626
        %v1628 = vpop.f32.mrf.mxu0
        %1629 = vdwg.mxu0
        %1630 = vmatprep.subr.mxu0 0.0
        %1631 = vmatpush1.msra.mxu0 %v1225
        %1632 = vmatprep.subr.mxu0 0.0
        %1633 = vmatpush1.msra.mxu0 %v1224
        %1634 = vmatprep.subr.mxu0 0.0
        %1635 = vmatpush1.msra.mxu0 %v1223
        %1636 = vmatprep.subr.mxu0 0.0
        %1637 = vmatpush1.msra.mxu0 %v1222
        %1638 = vmatprep.subr.mxu0 0.0
        %1639 = vmatpush1.msra.mxu0 %v1221
        %1640 = vmatprep.subr.mxu0 0.0
        %1641 = vmatpush1.msra.mxu0 %v1220
        %1642 = vmatprep.subr.mxu0 0.0
        %1643 = vmatpush1.msra.mxu0 %v1219
        %1644 = vmatprep.subr.mxu0 0.0
        %1645 = vmatpush1.msra.mxu0 %v1218
        %1646 = vmatprep.subr.mxu0 0.0
        %1647 = vmatpush1.msra.mxu0 %v1217
        %1648 = vmatprep.subr.mxu0 0.0
        %1649 = vmatpush1.msra.mxu0 %v1216
        %1650 = vmatprep.subr.mxu0 0.0
        %1651 = vmatpush1.msra.mxu0 %v1215
        %1652 = vmatprep.subr.mxu0 0.0
        %1653 = vmatpush1.msra.mxu0 %v1214
        %1654 = vmatprep.subr.mxu0 0.0
        %1655 = vmatpush1.msra.mxu0 %v1213
        %1656 = vmatprep.subr.mxu0 0.0
        %1657 = vmatpush1.msra.mxu0 %v1212
        %1658 = vmatprep.subr.mxu0 0.0
        %1659 = vmatpush1.msra.mxu0 %v1211
        %1660 = vmatprep.subr.mxu0 0.0
        %1661 = vmatpush1.msra.mxu0 %v1210
        %1662 = vmatprep.subr.mxu0 0.0
        %1663 = vmatpush2.msra.mxu0 0.0
        %1664 = vmatprep.subr.mxu0 0.0
        %1665 = vmatpush2.msra.mxu0 0.0
        %1666 = vmatprep.subr.mxu0 0.0
        %1667 = vmatpush2.msra.mxu0 0.0
        %1668 = vmatprep.subr.mxu0 0.0
        %1669 = vmatpush2.msra.mxu0 0.0
        %1670 = vmatprep.subr.mxu0 0.0
        %1671 = vmatpush2.msra.mxu0 0.0
        %1672 = vmatprep.subr.mxu0 0.0
        %1673 = vmatpush2.msra.mxu0 0.0
        %1674 = vmatprep.subr.mxu0 0.0
        %1675 = vmatpush2.msra.mxu0 0.0
        %1676 = vmatprep.subr.mxu0 0.0
        %1677 = vmatpush2.msra.mxu0 0.0
        %1678 = vmatprep.subr.mxu0 0.0
        %1679 = vmatpush2.msra.mxu0 0.0
        %1680 = vmatprep.subr.mxu0 0.0
        %1681 = vmatpush2.msra.mxu0 0.0
        %1682 = vmatprep.subr.mxu0 0.0
        %1683 = vmatpush2.msra.mxu0 0.0
        %1684 = vmatprep.subr.mxu0 0.0
        %1685 = vmatpush2.msra.mxu0 0.0
        %1686 = vmatprep.subr.mxu0 0.0
        %1687 = vmatpush2.msra.mxu0 0.0
        %1688 = vmatprep.subr.mxu0 0.0
        %1689 = vmatpush2.msra.mxu0 0.0
        %1690 = vmatprep.subr.mxu0 0.0
        %1691 = vmatpush2.msra.mxu0 0.0
        %1692 = vmatprep.subr.mxu0 0.0
        %1693 = vmatpush2.msra.mxu0 0.0
        %1694 = vmatprep.mubr.f32.mxu0 0.0
        %1695 = vmatmul.mubr.f32.gmra.mxu0 %v1125
        %v1696 = vpop.f32.mrf.mxu0
        %v1697 = vadd.f32 %v1557, %v1696
        %v1698 = vpop.f32.mrf.mxu0
        %1699 = vdwg.mxu0
        %vm1700 = vcmask 523264
        %v1702 = vsel %vm1700, %v1323, 0
        %v1705 = vsel %vm1700, %v1475, 0
        %1707 = vmatprep.subr.mxu0 0.0
        %1708 = vmatpush1.xpose.msra.mxu0 0.0
        %1709 = vmatprep.subr.mxu0 0.0
        %1710 = vmatpush1.xpose.msra.mxu0 0.0
        %1711 = vmatprep.subr.mxu0 0.0
        %1712 = vmatpush1.xpose.msra.mxu0 0.0
        %1713 = vmatprep.subr.mxu0 0.0
        %1714 = vmatpush1.xpose.msra.mxu0 0.0
        %1715 = vmatprep.subr.mxu0 0.0
        %1716 = vmatpush1.xpose.msra.mxu0 0.0
        %1717 = vmatprep.subr.mxu0 0.0
        %1718 = vmatpush1.xpose.msra.mxu0 0.0
        %1719 = vmatprep.subr.mxu0 0.0
        %1720 = vmatpush1.xpose.msra.mxu0 0.0
        %1721 = vmatprep.subr.mxu0 0.0
        %1722 = vmatpush1.xpose.msra.mxu0 0.0
        %1723 = vmatprep.subr.mxu0 0.0
        %1724 = vmatpush1.xpose.msra.mxu0 0.0
        %1725 = vmatprep.subr.mxu0 0.0
        %1726 = vmatpush1.xpose.msra.mxu0 0.0
        %1727 = vmatprep.subr.mxu0 0.0
        %1728 = vmatpush1.xpose.msra.mxu0 0.0
        %1729 = vmatprep.subr.mxu0 0.0
        %1730 = vmatpush1.xpose.msra.mxu0 0.0
        %1731 = vmatprep.subr.mxu0 0.0
        %1732 = vmatpush1.xpose.msra.mxu0 0.0
        %1733 = vmatprep.subr.mxu0 0.0
        %1734 = vmatpush1.xpose.msra.mxu0 0.0
        %1735 = vmatprep.subr.mxu0 0.0
        %1736 = vmatpush1.xpose.msra.mxu0 0.0
        %1737 = vmatprep.subr.mxu0 0.0
        %1738 = vmatpush1.xpose.msra.mxu0 %v1705
        %1739 = vmatprep.subr.mxu0 0.0
        %1740 = vmatpush2.xpose.msra.mxu0 0.0
        %1741 = vmatprep.subr.mxu0 0.0
        %1742 = vmatpush2.xpose.msra.mxu0 0.0
        %1743 = vmatprep.subr.mxu0 0.0
        %1744 = vmatpush2.xpose.msra.mxu0 0.0
        %1745 = vmatprep.subr.mxu0 0.0
        %1746 = vmatpush2.xpose.msra.mxu0 0.0
        %1747 = vmatprep.subr.mxu0 0.0
        %1748 = vmatpush2.xpose.msra.mxu0 0.0
        %1749 = vmatprep.subr.mxu0 0.0
        %1750 = vmatpush2.xpose.msra.mxu0 0.0
        %1751 = vmatprep.subr.mxu0 0.0
        %1752 = vmatpush2.xpose.msra.mxu0 0.0
        %1753 = vmatprep.subr.mxu0 0.0
        %1754 = vmatpush2.xpose.msra.mxu0 0.0
        %1755 = vmatprep.subr.mxu0 0.0
        %1756 = vmatpush2.xpose.msra.mxu0 0.0
        %1757 = vmatprep.subr.mxu0 0.0
        %1758 = vmatpush2.xpose.msra.mxu0 0.0
        %1759 = vmatprep.subr.mxu0 0.0
        %1760 = vmatpush2.xpose.msra.mxu0 0.0
        %1761 = vmatprep.subr.mxu0 0.0
        %1762 = vmatpush2.xpose.msra.mxu0 0.0
        %1763 = vmatprep.subr.mxu0 0.0
        %1764 = vmatpush2.xpose.msra.mxu0 0.0
        %1765 = vmatprep.subr.mxu0 0.0
        %1766 = vmatpush2.xpose.msra.mxu0 0.0
        %1767 = vmatprep.subr.mxu0 0.0
        %1768 = vmatpush2.xpose.msra.mxu0 0.0
        %1769 = vmatprep.subr.mxu0 0.0
        %1770 = vmatpush2.xpose.msra.mxu0 0.0
        %1771 = vmatprep.mubr.f32.mxu0 0.0
        %1772 = vmatmul.mubr.f32.gmra.mxu0 %v1702
        %v1773 = vpop.f32.mrf.mxu0
        %v1774 = vadd.f32 0.0, %v1773
        %v1775 = vpop.f32.mrf.mxu0
        %1776 = vdwg.mxu0
        %v1778 = vsel %vm1700, %v1393, 0
        %v1781 = vsel %vm1700, %v1545, 0
        %1783 = vmatprep.subr.mxu0 0.0
        %1784 = vmatpush1.xpose.msra.mxu0 0.0
        %1785 = vmatprep.subr.mxu0 0.0
        %1786 = vmatpush1.xpose.msra.mxu0 0.0
        %1787 = vmatprep.subr.mxu0 0.0
        %1788 = vmatpush1.xpose.msra.mxu0 0.0
        %1789 = vmatprep.subr.mxu0 0.0
        %1790 = vmatpush1.xpose.msra.mxu0 0.0
        %1791 = vmatprep.subr.mxu0 0.0
        %1792 = vmatpush1.xpose.msra.mxu0 0.0
        %1793 = vmatprep.subr.mxu0 0.0
        %1794 = vmatpush1.xpose.msra.mxu0 0.0
        %1795 = vmatprep.subr.mxu0 0.0
        %1796 = vmatpush1.xpose.msra.mxu0 0.0
        %1797 = vmatprep.subr.mxu0 0.0
        %1798 = vmatpush1.xpose.msra.mxu0 0.0
        %1799 = vmatprep.subr.mxu0 0.0
        %1800 = vmatpush1.xpose.msra.mxu0 0.0
        %1801 = vmatprep.subr.mxu0 0.0
        %1802 = vmatpush1.xpose.msra.mxu0 0.0
        %1803 = vmatprep.subr.mxu0 0.0
        %1804 = vmatpush1.xpose.msra.mxu0 0.0
        %1805 = vmatprep.subr.mxu0 0.0
        %1806 = vmatpush1.xpose.msra.mxu0 0.0
        %1807 = vmatprep.subr.mxu0 0.0
        %1808 = vmatpush1.xpose.msra.mxu0 0.0
        %1809 = vmatprep.subr.mxu0 0.0
        %1810 = vmatpush1.xpose.msra.mxu0 0.0
        %1811 = vmatprep.subr.mxu0 0.0
        %1812 = vmatpush1.xpose.msra.mxu0 0.0
        %1813 = vmatprep.subr.mxu0 0.0
        %1814 = vmatpush1.xpose.msra.mxu0 %v1781
        %1815 = vmatprep.subr.mxu0 0.0
        %1816 = vmatpush2.xpose.msra.mxu0 0.0
        %1817 = vmatprep.subr.mxu0 0.0
        %1818 = vmatpush2.xpose.msra.mxu0 0.0
        %1819 = vmatprep.subr.mxu0 0.0
        %1820 = vmatpush2.xpose.msra.mxu0 0.0
        %1821 = vmatprep.subr.mxu0 0.0
        %1822 = vmatpush2.xpose.msra.mxu0 0.0
        %1823 = vmatprep.subr.mxu0 0.0
        %1824 = vmatpush2.xpose.msra.mxu0 0.0
        %1825 = vmatprep.subr.mxu0 0.0
        %1826 = vmatpush2.xpose.msra.mxu0 0.0
        %1827 = vmatprep.subr.mxu0 0.0
        %1828 = vmatpush2.xpose.msra.mxu0 0.0
        %1829 = vmatprep.subr.mxu0 0.0
        %1830 = vmatpush2.xpose.msra.mxu0 0.0
        %1831 = vmatprep.subr.mxu0 0.0
        %1832 = vmatpush2.xpose.msra.mxu0 0.0
        %1833 = vmatprep.subr.mxu0 0.0
        %1834 = vmatpush2.xpose.msra.mxu0 0.0
        %1835 = vmatprep.subr.mxu0 0.0
        %1836 = vmatpush2.xpose.msra.mxu0 0.0
        %1837 = vmatprep.subr.mxu0 0.0
        %1838 = vmatpush2.xpose.msra.mxu0 0.0
        %1839 = vmatprep.subr.mxu0 0.0
        %1840 = vmatpush2.xpose.msra.mxu0 0.0
        %1841 = vmatprep.subr.mxu0 0.0
        %1842 = vmatpush2.xpose.msra.mxu0 0.0
        %1843 = vmatprep.subr.mxu0 0.0
        %1844 = vmatpush2.xpose.msra.mxu0 0.0
        %1845 = vmatprep.subr.mxu0 0.0
        %1846 = vmatpush2.xpose.msra.mxu0 0.0
        %1847 = vmatprep.mubr.f32.mxu0 0.0
        %1848 = vmatmul.mubr.f32.gmra.mxu0 %v1778
        %v1849 = vpop.f32.mrf.mxu0
        %v1850 = vadd.f32 0.0, %v1849
        %v1851 = vpop.f32.mrf.mxu0
        %1852 = vdwg.mxu0
        %v1853 = vmul.f32 %v1774, 0.125
        %v1854 = vmul.f32 %v1850, 0.125
        %vm1855 = vcmask 64512
        %v1856 = vsel %vm1855, %v1853, -inf
        %1857 = vmax.xlane.f32.xlu0 %v1856
        %v1858 = vpop.xlane.xlu0 %1857
        %v1859 = vsel %vm1855, %v1854, -inf
        %1860 = vmax.xlane.f32.xlu0 %v1859
        %v1861 = vpop.xlane.xlu0 %1860
        %v1862 = vsub.f32 %v1853, %v1858
        %v1863 = vsub.f32 %v1854, %v1861
        %v1864 = vmul.f32 %v1862, 1.442695
        %v1865 = vpow.pop %v1864
        %v1866 = vmul.f32 %v1863, 1.442695
        %v1867 = vpow.pop %v1866
        %v1868 = vsel %vm1855, %v1865, 0.0
        %1869 = vadd.xlane.f32.xlu0 %v1868
        %v1870 = vpop.xlane.xlu0 %1869
        %v1871 = vsel %vm1855, %v1867, 0.0
        %1872 = vadd.xlane.f32.xlu0 %v1871
        %v1873 = vpop.xlane.xlu0 %1872
        %v1874 = vrcp.pop %v1870
        %v1875 = vrcp.pop %v1873
        %v1876 = vmul.f32 %v1865, %v1874
        %v1877 = vmul.f32 %v1867, %v1875
        %v1879 = vsel %vm1855, %v1876, 0
        %1881 = vmatprep.subr.mxu0 0.0
        %1882 = vmatpush1.msra.mxu0 0.0
        %1883 = vmatprep.subr.mxu0 0.0
        %1884 = vmatpush1.msra.mxu0 0.0
        %1885 = vmatprep.subr.mxu0 0.0
        %1886 = vmatpush1.msra.mxu0 0.0
        %1887 = vmatprep.subr.mxu0 0.0
        %1888 = vmatpush1.msra.mxu0 0.0
        %1889 = vmatprep.subr.mxu0 0.0
        %1890 = vmatpush1.msra.mxu0 0.0
        %1891 = vmatprep.subr.mxu0 0.0
        %1892 = vmatpush1.msra.mxu0 0.0
        %1893 = vmatprep.subr.mxu0 0.0
        %1894 = vmatpush1.msra.mxu0 0.0
        %1895 = vmatprep.subr.mxu0 0.0
        %1896 = vmatpush1.msra.mxu0 0.0
        %1897 = vmatprep.subr.mxu0 0.0
        %1898 = vmatpush1.msra.mxu0 0.0
        %1899 = vmatprep.subr.mxu0 0.0
        %1900 = vmatpush1.msra.mxu0 0.0
        %1901 = vmatprep.subr.mxu0 0.0
        %1902 = vmatpush1.msra.mxu0 0.0
        %1903 = vmatprep.subr.mxu0 0.0
        %1904 = vmatpush1.msra.mxu0 0.0
        %1905 = vmatprep.subr.mxu0 0.0
        %1906 = vmatpush1.msra.mxu0 0.0
        %1907 = vmatprep.subr.mxu0 0.0
        %1908 = vmatpush1.msra.mxu0 0.0
        %1909 = vmatprep.subr.mxu0 0.0
        %1910 = vmatpush1.msra.mxu0 0.0
        %1911 = vmatprep.subr.mxu0 0.0
        %1912 = vmatpush1.msra.mxu0 %v1627
        %1913 = vmatprep.subr.mxu0 0.0
        %1914 = vmatpush2.msra.mxu0 0.0
        %1915 = vmatprep.subr.mxu0 0.0
        %1916 = vmatpush2.msra.mxu0 0.0
        %1917 = vmatprep.subr.mxu0 0.0
        %1918 = vmatpush2.msra.mxu0 0.0
        %1919 = vmatprep.subr.mxu0 0.0
        %1920 = vmatpush2.msra.mxu0 0.0
        %1921 = vmatprep.subr.mxu0 0.0
        %1922 = vmatpush2.msra.mxu0 0.0
        %1923 = vmatprep.subr.mxu0 0.0
        %1924 = vmatpush2.msra.mxu0 0.0
        %1925 = vmatprep.subr.mxu0 0.0
        %1926 = vmatpush2.msra.mxu0 0.0
        %1927 = vmatprep.subr.mxu0 0.0
        %1928 = vmatpush2.msra.mxu0 0.0
        %1929 = vmatprep.subr.mxu0 0.0
        %1930 = vmatpush2.msra.mxu0 0.0
        %1931 = vmatprep.subr.mxu0 0.0
        %1932 = vmatpush2.msra.mxu0 0.0
        %1933 = vmatprep.subr.mxu0 0.0
        %1934 = vmatpush2.msra.mxu0 0.0
        %1935 = vmatprep.subr.mxu0 0.0
        %1936 = vmatpush2.msra.mxu0 0.0
        %1937 = vmatprep.subr.mxu0 0.0
        %1938 = vmatpush2.msra.mxu0 0.0
        %1939 = vmatprep.subr.mxu0 0.0
        %1940 = vmatpush2.msra.mxu0 0.0
        %1941 = vmatprep.subr.mxu0 0.0
        %1942 = vmatpush2.msra.mxu0 0.0
        %1943 = vmatprep.subr.mxu0 0.0
        %1944 = vmatpush2.msra.mxu0 0.0
        %1945 = vmatprep.mubr.f32.mxu0 0.0
        %1946 = vmatmul.mubr.f32.gmra.mxu0 %v1879
        %v1947 = vpop.f32.mrf.mxu0
        %v1948 = vadd.f32 0.0, %v1947
        %v1949 = vpop.f32.mrf.mxu0
        %1950 = vdwg.mxu0
        %v1952 = vsel %vm1855, %v1877, 0
        %1954 = vmatprep.subr.mxu0 0.0
        %1955 = vmatpush1.msra.mxu0 0.0
        %1956 = vmatprep.subr.mxu0 0.0
        %1957 = vmatpush1.msra.mxu0 0.0
        %1958 = vmatprep.subr.mxu0 0.0
        %1959 = vmatpush1.msra.mxu0 0.0
        %1960 = vmatprep.subr.mxu0 0.0
        %1961 = vmatpush1.msra.mxu0 0.0
        %1962 = vmatprep.subr.mxu0 0.0
        %1963 = vmatpush1.msra.mxu0 0.0
        %1964 = vmatprep.subr.mxu0 0.0
        %1965 = vmatpush1.msra.mxu0 0.0
        %1966 = vmatprep.subr.mxu0 0.0
        %1967 = vmatpush1.msra.mxu0 0.0
        %1968 = vmatprep.subr.mxu0 0.0
        %1969 = vmatpush1.msra.mxu0 0.0
        %1970 = vmatprep.subr.mxu0 0.0
        %1971 = vmatpush1.msra.mxu0 0.0
        %1972 = vmatprep.subr.mxu0 0.0
        %1973 = vmatpush1.msra.mxu0 0.0
        %1974 = vmatprep.subr.mxu0 0.0
        %1975 = vmatpush1.msra.mxu0 0.0
        %1976 = vmatprep.subr.mxu0 0.0
        %1977 = vmatpush1.msra.mxu0 0.0
        %1978 = vmatprep.subr.mxu0 0.0
        %1979 = vmatpush1.msra.mxu0 0.0
        %1980 = vmatprep.subr.mxu0 0.0
        %1981 = vmatpush1.msra.mxu0 0.0
        %1982 = vmatprep.subr.mxu0 0.0
        %1983 = vmatpush1.msra.mxu0 0.0
        %1984 = vmatprep.subr.mxu0 0.0
        %1985 = vmatpush1.msra.mxu0 %v1697
        %1986 = vmatprep.subr.mxu0 0.0
        %1987 = vmatpush2.msra.mxu0 0.0
        %1988 = vmatprep.subr.mxu0 0.0
        %1989 = vmatpush2.msra.mxu0 0.0
        %1990 = vmatprep.subr.mxu0 0.0
        %1991 = vmatpush2.msra.mxu0 0.0
        %1992 = vmatprep.subr.mxu0 0.0
        %1993 = vmatpush2.msra.mxu0 0.0
        %1994 = vmatprep.subr.mxu0 0.0
        %1995 = vmatpush2.msra.mxu0 0.0
        %1996 = vmatprep.subr.mxu0 0.0
        %1997 = vmatpush2.msra.mxu0 0.0
        %1998 = vmatprep.subr.mxu0 0.0
        %1999 = vmatpush2.msra.mxu0 0.0
        %2000 = vmatprep.subr.mxu0 0.0
        %2001 = vmatpush2.msra.mxu0 0.0
        %2002 = vmatprep.subr.mxu0 0.0
        %2003 = vmatpush2.msra.mxu0 0.0
        %2004 = vmatprep.subr.mxu0 0.0
        %2005 = vmatpush2.msra.mxu0 0.0
        %2006 = vmatprep.subr.mxu0 0.0
        %2007 = vmatpush2.msra.mxu0 0.0
        %2008 = vmatprep.subr.mxu0 0.0
        %2009 = vmatpush2.msra.mxu0 0.0
        %2010 = vmatprep.subr.mxu0 0.0
        %2011 = vmatpush2.msra.mxu0 0.0
        %2012 = vmatprep.subr.mxu0 0.0
        %2013 = vmatpush2.msra.mxu0 0.0
        %2014 = vmatprep.subr.mxu0 0.0
        %2015 = vmatpush2.msra.mxu0 0.0
        %2016 = vmatprep.subr.mxu0 0.0
        %2017 = vmatpush2.msra.mxu0 0.0
        %2018 = vmatprep.mubr.f32.mxu0 0.0
        %2019 = vmatmul.mubr.f32.gmra.mxu0 %v1952
        %v2020 = vpop.f32.mrf.mxu0
        %v2021 = vadd.f32 0.0, %v2020
        %v2022 = vpop.f32.mrf.mxu0
        %2023 = vdwg.mxu0
        %v2025 = vsel %vm1700, %v1948, 0
        %2027 = vmatprep.subr.mxu0 0.0
        %2028 = vmatpush1.msra.mxu0 0.0
        %2029 = vmatprep.subr.mxu0 0.0
        %2030 = vmatpush1.msra.mxu0 0.0
        %2031 = vmatprep.subr.mxu0 0.0
        %2032 = vmatpush1.msra.mxu0 0.0
        %2033 = vmatprep.subr.mxu0 0.0
        %2034 = vmatpush1.msra.mxu0 0.0
        %2035 = vmatprep.subr.mxu0 0.0
        %2036 = vmatpush1.msra.mxu0 0.0
        %2037 = vmatprep.subr.mxu0 0.0
        %2038 = vmatpush1.msra.mxu0 0.0
        %2039 = vmatprep.subr.mxu0 0.0
        %2040 = vmatpush1.msra.mxu0 0.0
        %2041 = vmatprep.subr.mxu0 0.0
        %2042 = vmatpush1.msra.mxu0 0.0
        %2043 = vmatprep.subr.mxu0 0.0
        %2044 = vmatpush1.msra.mxu0 %v1235
        %2045 = vmatprep.subr.mxu0 0.0
        %2046 = vmatpush1.msra.mxu0 %v1234
        %2047 = vmatprep.subr.mxu0 0.0
        %2048 = vmatpush1.msra.mxu0 %v1233
        %2049 = vmatprep.subr.mxu0 0.0
        %2050 = vmatpush1.msra.mxu0 %v1232
        %2051 = vmatprep.subr.mxu0 0.0
        %2052 = vmatpush1.msra.mxu0 %v1231
        %2053 = vmatprep.subr.mxu0 0.0
        %2054 = vmatpush1.msra.mxu0 %v1230
        %2055 = vmatprep.subr.mxu0 0.0
        %2056 = vmatpush1.msra.mxu0 %v1229
        %2057 = vmatprep.subr.mxu0 0.0
        %2058 = vmatpush1.msra.mxu0 %v1228
        %2059 = vmatprep.subr.mxu0 0.0
        %2060 = vmatpush2.msra.mxu0 0.0
        %2061 = vmatprep.subr.mxu0 0.0
        %2062 = vmatpush2.msra.mxu0 0.0
        %2063 = vmatprep.subr.mxu0 0.0
        %2064 = vmatpush2.msra.mxu0 0.0
        %2065 = vmatprep.subr.mxu0 0.0
        %2066 = vmatpush2.msra.mxu0 0.0
        %2067 = vmatprep.subr.mxu0 0.0
        %2068 = vmatpush2.msra.mxu0 0.0
        %2069 = vmatprep.subr.mxu0 0.0
        %2070 = vmatpush2.msra.mxu0 0.0
        %2071 = vmatprep.subr.mxu0 0.0
        %2072 = vmatpush2.msra.mxu0 0.0
        %2073 = vmatprep.subr.mxu0 0.0
        %2074 = vmatpush2.msra.mxu0 0.0
        %2075 = vmatprep.subr.mxu0 0.0
        %2076 = vmatpush2.msra.mxu0 0.0
        %2077 = vmatprep.subr.mxu0 0.0
        %2078 = vmatpush2.msra.mxu0 0.0
        %2079 = vmatprep.subr.mxu0 0.0
        %2080 = vmatpush2.msra.mxu0 0.0
        %2081 = vmatprep.subr.mxu0 0.0
        %2082 = vmatpush2.msra.mxu0 0.0
        %2083 = vmatprep.subr.mxu0 0.0
        %2084 = vmatpush2.msra.mxu0 0.0
        %2085 = vmatprep.subr.mxu0 0.0
        %2086 = vmatpush2.msra.mxu0 0.0
        %2087 = vmatprep.subr.mxu0 0.0
        %2088 = vmatpush2.msra.mxu0 0.0
        %2089 = vmatprep.subr.mxu0 0.0
        %2090 = vmatpush2.msra.mxu0 0.0
        %2091 = vmatprep.mubr.f32.mxu0 0.0
        %2092 = vmatmul.mubr.f32.gmra.mxu0 %v2025
        %v2093 = vpop.f32.mrf.mxu0
        %v2094 = vadd.f32 0.0, %v2093
        %v2095 = vpop.f32.mrf.mxu0
        %2096 = vdwg.mxu0
        %v2098 = vsel %vm1700, %v2021, 0
        %2100 = vmatprep.subr.mxu0 0.0
        %2101 = vmatpush1.msra.mxu0 0.0
        %2102 = vmatprep.subr.mxu0 0.0
        %2103 = vmatpush1.msra.mxu0 0.0
        %2104 = vmatprep.subr.mxu0 0.0
        %2105 = vmatpush1.msra.mxu0 0.0
        %2106 = vmatprep.subr.mxu0 0.0
        %2107 = vmatpush1.msra.mxu0 0.0
        %2108 = vmatprep.subr.mxu0 0.0
        %2109 = vmatpush1.msra.mxu0 0.0
        %2110 = vmatprep.subr.mxu0 0.0
        %2111 = vmatpush1.msra.mxu0 0.0
        %2112 = vmatprep.subr.mxu0 0.0
        %2113 = vmatpush1.msra.mxu0 0.0
        %2114 = vmatprep.subr.mxu0 0.0
        %2115 = vmatpush1.msra.mxu0 0.0
        %2116 = vmatprep.subr.mxu0 0.0
        %2117 = vmatpush1.msra.mxu0 %v1243
        %2118 = vmatprep.subr.mxu0 0.0
        %2119 = vmatpush1.msra.mxu0 %v1242
        %2120 = vmatprep.subr.mxu0 0.0
        %2121 = vmatpush1.msra.mxu0 %v1241
        %2122 = vmatprep.subr.mxu0 0.0
        %2123 = vmatpush1.msra.mxu0 %v1240
        %2124 = vmatprep.subr.mxu0 0.0
        %2125 = vmatpush1.msra.mxu0 %v1239
        %2126 = vmatprep.subr.mxu0 0.0
        %2127 = vmatpush1.msra.mxu0 %v1238
        %2128 = vmatprep.subr.mxu0 0.0
        %2129 = vmatpush1.msra.mxu0 %v1237
        %2130 = vmatprep.subr.mxu0 0.0
        %2131 = vmatpush1.msra.mxu0 %v1236
        %2132 = vmatprep.subr.mxu0 0.0
        %2133 = vmatpush2.msra.mxu0 0.0
        %2134 = vmatprep.subr.mxu0 0.0
        %2135 = vmatpush2.msra.mxu0 0.0
        %2136 = vmatprep.subr.mxu0 0.0
        %2137 = vmatpush2.msra.mxu0 0.0
        %2138 = vmatprep.subr.mxu0 0.0
        %2139 = vmatpush2.msra.mxu0 0.0
        %2140 = vmatprep.subr.mxu0 0.0
        %2141 = vmatpush2.msra.mxu0 0.0
        %2142 = vmatprep.subr.mxu0 0.0
        %2143 = vmatpush2.msra.mxu0 0.0
        %2144 = vmatprep.subr.mxu0 0.0
        %2145 = vmatpush2.msra.mxu0 0.0
        %2146 = vmatprep.subr.mxu0 0.0
        %2147 = vmatpush2.msra.mxu0 0.0
        %2148 = vmatprep.subr.mxu0 0.0
        %2149 = vmatpush2.msra.mxu0 0.0
        %2150 = vmatprep.subr.mxu0 0.0
        %2151 = vmatpush2.msra.mxu0 0.0
        %2152 = vmatprep.subr.mxu0 0.0
        %2153 = vmatpush2.msra.mxu0 0.0
        %2154 = vmatprep.subr.mxu0 0.0
        %2155 = vmatpush2.msra.mxu0 0.0
        %2156 = vmatprep.subr.mxu0 0.0
        %2157 = vmatpush2.msra.mxu0 0.0
        %2158 = vmatprep.subr.mxu0 0.0
        %2159 = vmatpush2.msra.mxu0 0.0
        %2160 = vmatprep.subr.mxu0 0.0
        %2161 = vmatpush2.msra.mxu0 0.0
        %2162 = vmatprep.subr.mxu0 0.0
        %2163 = vmatpush2.msra.mxu0 0.0
        %2164 = vmatprep.mubr.f32.mxu0 0.0
        %2165 = vmatmul.mubr.f32.gmra.mxu0 %v2098
        %v2166 = vpop.f32.mrf.mxu0
        %v2167 = vadd.f32 0.0, %v2166
        %v2168 = vpop.f32.mrf.mxu0
        %2169 = vdwg.mxu0
        %v2170 = vadd.f32 %v2094, %v2167
        %v2171 = vld [vmem:[%s921] sm:$0x1]
        %v2173 = vlaneseq
        %v2174 = vshrl.u32 %v2173, 7
        %v2175 = vsub.s32 0, %v2174
        %v2176 = vrot.slane %v2171, %v2175
        %v2178 = vadd.f32 %v2170, %v2176
        %v2179 = vadd.f32 %v1125, %v2178
        %v2180 = vld [vmem:[%s929] sm:$0x1]
        %v2181 = vld [vmem:[%s937] sm:$0x1]
        %2182 = vadd.xlane.f32.xlu0 %v2179
        %v2183 = vpop.xlane.xlu0 %2182
        %v2184 = vrcp.pop 128.0
        %v2185 = vmul.f32 %v2183, %v2184
        %v2186 = vsub.f32 %v2179, %v2185
        %v2187 = vmul.f32 %v2186, %v2186
        %2188 = vadd.xlane.f32.xlu0 %v2187
        %v2189 = vpop.xlane.xlu0 %2188
        %v2190 = vmul.f32 %v2189, %v2184
        %v2191 = vadd.f32 %v2190, 1e-12
        %v2192 = vrsqrt.pop %v2191
        %v2193 = vmul.f32 %v2186, %v2192
        %v2195 = vlaneseq
        %v2196 = vshrl.u32 %v2195, 7
        %v2197 = vsub.s32 0, %v2196
        %v2198 = vrot.slane %v2180, %v2197
        %v2200 = vmul.f32 %v2193, %v2198
        %v2202 = vlaneseq
        %v2203 = vshrl.u32 %v2202, 7
        %v2204 = vsub.s32 0, %v2203
        %v2205 = vrot.slane %v2181, %v2204
        %v2207 = vadd.f32 %v2200, %v2205
        %v2208 = vld [vmem:[%s1104] sm:$0xff]
        %v2209 = vld [vmem:[%s1104 + $0x8] sm:$0xff]
        %v2210 = vld [vmem:[%s1104 + $0x10] sm:$0xff]
        %v2211 = vld [vmem:[%s1104 + $0x18] sm:$0xff]
        %v2212 = vld [vmem:[%s1104 + $0x20] sm:$0xff]
        %v2213 = vld [vmem:[%s1104 + $0x28] sm:$0xff]
        %v2214 = vld [vmem:[%s1104 + $0x30] sm:$0xff]
        %v2215 = vld [vmem:[%s1104 + $0x38] sm:$0xff]
        %v2216 = vld [vmem:[%s1104 + $0x40] sm:$0xff]
        %v2217 = vld [vmem:[%s1104 + $0x48] sm:$0xff]
        %v2218 = vld [vmem:[%s1104 + $0x50] sm:$0xff]
        %v2219 = vld [vmem:[%s1104 + $0x58] sm:$0xff]
        %v2220 = vld [vmem:[%s1104 + $0x60] sm:$0xff]
        %v2221 = vld [vmem:[%s1104 + $0x68] sm:$0xff]
        %v2222 = vld [vmem:[%s1104 + $0x70] sm:$0xff]
        %v2223 = vld [vmem:[%s1104 + $0x78] sm:$0xff]
        %v2224 = vld [vmem:[%s1104 + $0x80] sm:$0xff]
        %v2225 = vld [vmem:[%s1104 + $0x88] sm:$0xff]
        %v2226 = vld [vmem:[%s1104 + $0x90] sm:$0xff]
        %v2227 = vld [vmem:[%s1104 + $0x98] sm:$0xff]
        %v2228 = vld [vmem:[%s1104 + $0xa0] sm:$0xff]
        %v2229 = vld [vmem:[%s1104 + $0xa8] sm:$0xff]
        %v2230 = vld [vmem:[%s1104 + $0xb0] sm:$0xff]
        %v2231 = vld [vmem:[%s1104 + $0xb8] sm:$0xff]
        %v2232 = vld [vmem:[%s1104 + $0xc0] sm:$0xff]
        %v2233 = vld [vmem:[%s1104 + $0xc8] sm:$0xff]
        %v2234 = vld [vmem:[%s1104 + $0xd0] sm:$0xff]
        %v2235 = vld [vmem:[%s1104 + $0xd8] sm:$0xff]
        %v2236 = vld [vmem:[%s1104 + $0xe0] sm:$0xff]
        %v2237 = vld [vmem:[%s1104 + $0xe8] sm:$0xff]
        %v2238 = vld [vmem:[%s1104 + $0xf0] sm:$0xff]
        %v2239 = vld [vmem:[%s1104 + $0xf8] sm:$0xff]
        %v2240 = vld [vmem:[%s1104 + $0x100] sm:$0xff]
        %v2241 = vld [vmem:[%s1104 + $0x108] sm:$0xff]
        %v2242 = vld [vmem:[%s1104 + $0x110] sm:$0xff]
        %v2243 = vld [vmem:[%s1104 + $0x118] sm:$0xff]
        %v2244 = vld [vmem:[%s1104 + $0x120] sm:$0xff]
        %v2245 = vld [vmem:[%s1104 + $0x128] sm:$0xff]
        %v2246 = vld [vmem:[%s1104 + $0x130] sm:$0xff]
        %v2247 = vld [vmem:[%s1104 + $0x138] sm:$0xff]
        %v2248 = vld [vmem:[%s1104 + $0x140] sm:$0xff]
        %v2249 = vld [vmem:[%s1104 + $0x148] sm:$0xff]
        %v2250 = vld [vmem:[%s1104 + $0x150] sm:$0xff]
        %v2251 = vld [vmem:[%s1104 + $0x158] sm:$0xff]
        %v2252 = vld [vmem:[%s1104 + $0x160] sm:$0xff]
        %v2253 = vld [vmem:[%s1104 + $0x168] sm:$0xff]
        %v2254 = vld [vmem:[%s1104 + $0x170] sm:$0xff]
        %v2255 = vld [vmem:[%s1104 + $0x178] sm:$0xff]
        %v2256 = vld [vmem:[%s1104 + $0x180] sm:$0xff]
        %v2257 = vld [vmem:[%s1104 + $0x188] sm:$0xff]
        %v2258 = vld [vmem:[%s1104 + $0x190] sm:$0xff]
        %v2259 = vld [vmem:[%s1104 + $0x198] sm:$0xff]
        %v2260 = vld [vmem:[%s1104 + $0x1a0] sm:$0xff]
        %v2261 = vld [vmem:[%s1104 + $0x1a8] sm:$0xff]
        %v2262 = vld [vmem:[%s1104 + $0x1b0] sm:$0xff]
        %v2263 = vld [vmem:[%s1104 + $0x1b8] sm:$0xff]
        %v2264 = vld [vmem:[%s1104 + $0x1c0] sm:$0xff]
        %v2265 = vld [vmem:[%s1104 + $0x1c8] sm:$0xff]
        %v2266 = vld [vmem:[%s1104 + $0x1d0] sm:$0xff]
        %v2267 = vld [vmem:[%s1104 + $0x1d8] sm:$0xff]
        %v2268 = vld [vmem:[%s1104 + $0x1e0] sm:$0xff]
        %v2269 = vld [vmem:[%s1104 + $0x1e8] sm:$0xff]
        %v2270 = vld [vmem:[%s1104 + $0x1f0] sm:$0xff]
        %v2271 = vld [vmem:[%s1104 + $0x1f8] sm:$0xff]
        %v2272 = vld [vmem:[%s946] sm:$0xf]
        %v2274 = vlaneseq
        %v2275 = vshrl.u32 %v2274, 7
        %v2276 = vsub.s32 0, %v2275
        %v2277 = vrot.slane %v2272, %v2276
        %v2278 = vlaneseq
        %v2279 = vshrl.u32 %v2278, 7
        %v2280 = vsub.s32 1, %v2279
        %v2281 = vrot.slane %v2272, %v2280
        %v2282 = vlaneseq
        %v2283 = vshrl.u32 %v2282, 7
        %v2284 = vsub.s32 2, %v2283
        %v2285 = vrot.slane %v2272, %v2284
        %v2286 = vlaneseq
        %v2287 = vshrl.u32 %v2286, 7
        %v2288 = vsub.s32 3, %v2287
        %v2289 = vrot.slane %v2272, %v2288
        %2294 = vmatprep.subr.mxu0 %v2269
        %2295 = vmatpush1.msra.mxu0 %v2268
        %2296 = vmatprep.subr.mxu0 %v2265
        %2297 = vmatpush1.msra.mxu0 %v2264
        %2298 = vmatprep.subr.mxu0 %v2261
        %2299 = vmatpush1.msra.mxu0 %v2260
        %2300 = vmatprep.subr.mxu0 %v2257
        %2301 = vmatpush1.msra.mxu0 %v2256
        %2302 = vmatprep.subr.mxu0 %v2253
        %2303 = vmatpush1.msra.mxu0 %v2252
        %2304 = vmatprep.subr.mxu0 %v2249
        %2305 = vmatpush1.msra.mxu0 %v2248
        %2306 = vmatprep.subr.mxu0 %v2245
        %2307 = vmatpush1.msra.mxu0 %v2244
        %2308 = vmatprep.subr.mxu0 %v2241
        %2309 = vmatpush1.msra.mxu0 %v2240
        %2310 = vmatprep.subr.mxu0 %v2237
        %2311 = vmatpush1.msra.mxu0 %v2236
        %2312 = vmatprep.subr.mxu0 %v2233
        %2313 = vmatpush1.msra.mxu0 %v2232
        %2314 = vmatprep.subr.mxu0 %v2229
        %2315 = vmatpush1.msra.mxu0 %v2228
        %2316 = vmatprep.subr.mxu0 %v2225
        %2317 = vmatpush1.msra.mxu0 %v2224
        %2318 = vmatprep.subr.mxu0 %v2221
        %2319 = vmatpush1.msra.mxu0 %v2220
        %2320 = vmatprep.subr.mxu0 %v2217
        %2321 = vmatpush1.msra.mxu0 %v2216
        %2322 = vmatprep.subr.mxu0 %v2213
        %2323 = vmatpush1.msra.mxu0 %v2212
        %2324 = vmatprep.subr.mxu0 %v2209
        %2325 = vmatpush1.msra.mxu0 %v2208
        %2326 = vmatprep.subr.mxu0 0.0
        %2327 = vmatpush2.msra.mxu0 0.0
        %2328 = vmatprep.subr.mxu0 0.0
        %2329 = vmatpush2.msra.mxu0 0.0
        %2330 = vmatprep.subr.mxu0 0.0
        %2331 = vmatpush2.msra.mxu0 0.0
        %2332 = vmatprep.subr.mxu0 0.0
        %2333 = vmatpush2.msra.mxu0 0.0
        %2334 = vmatprep.subr.mxu0 0.0
        %2335 = vmatpush2.msra.mxu0 0.0
        %2336 = vmatprep.subr.mxu0 0.0
        %2337 = vmatpush2.msra.mxu0 0.0
        %2338 = vmatprep.subr.mxu0 0.0
        %2339 = vmatpush2.msra.mxu0 0.0
        %2340 = vmatprep.subr.mxu0 0.0
        %2341 = vmatpush2.msra.mxu0 0.0
        %2342 = vmatprep.subr.mxu0 0.0
        %2343 = vmatpush2.msra.mxu0 0.0
        %2344 = vmatprep.subr.mxu0 0.0
        %2345 = vmatpush2.msra.mxu0 0.0
        %2346 = vmatprep.subr.mxu0 0.0
        %2347 = vmatpush2.msra.mxu0 0.0
        %2348 = vmatprep.subr.mxu0 0.0
        %2349 = vmatpush2.msra.mxu0 0.0
        %2350 = vmatprep.subr.mxu0 0.0
        %2351 = vmatpush2.msra.mxu0 0.0
        %2352 = vmatprep.subr.mxu0 0.0
        %2353 = vmatpush2.msra.mxu0 0.0
        %2354 = vmatprep.subr.mxu0 0.0
        %2355 = vmatpush2.msra.mxu0 0.0
        %2356 = vmatprep.subr.mxu0 0.0
        %2357 = vmatpush2.msra.mxu0 0.0
        %2358 = vmatprep.mubr.f32.mxu0 0.0
        %2359 = vmatmul.mubr.f32.gmra.mxu0 %v2207
        %v2360 = vpop.f32.mrf.mxu0
        %v2361 = vadd.f32 %v2277, %v2360
        %v2362 = vpop.f32.mrf.mxu0
        %v2363 = vadd.f32 %v2281, %v2362
        %2364 = vdwg.mxu0
        %2365 = vmatprep.subr.mxu0 %v2271
        %2366 = vmatpush1.msra.mxu0 %v2270
        %2367 = vmatprep.subr.mxu0 %v2267
        %2368 = vmatpush1.msra.mxu0 %v2266
        %2369 = vmatprep.subr.mxu0 %v2263
        %2370 = vmatpush1.msra.mxu0 %v2262
        %2371 = vmatprep.subr.mxu0 %v2259
        %2372 = vmatpush1.msra.mxu0 %v2258
        %2373 = vmatprep.subr.mxu0 %v2255
        %2374 = vmatpush1.msra.mxu0 %v2254
        %2375 = vmatprep.subr.mxu0 %v2251
        %2376 = vmatpush1.msra.mxu0 %v2250
        %2377 = vmatprep.subr.mxu0 %v2247
        %2378 = vmatpush1.msra.mxu0 %v2246
        %2379 = vmatprep.subr.mxu0 %v2243
        %2380 = vmatpush1.msra.mxu0 %v2242
        %2381 = vmatprep.subr.mxu0 %v2239
        %2382 = vmatpush1.msra.mxu0 %v2238
        %2383 = vmatprep.subr.mxu0 %v2235
        %2384 = vmatpush1.msra.mxu0 %v2234
        %2385 = vmatprep.subr.mxu0 %v2231
        %2386 = vmatpush1.msra.mxu0 %v2230
        %2387 = vmatprep.subr.mxu0 %v2227
        %2388 = vmatpush1.msra.mxu0 %v2226
        %2389 = vmatprep.subr.mxu0 %v2223
        %2390 = vmatpush1.msra.mxu0 %v2222
        %2391 = vmatprep.subr.mxu0 %v2219
        %2392 = vmatpush1.msra.mxu0 %v2218
        %2393 = vmatprep.subr.mxu0 %v2215
        %2394 = vmatpush1.msra.mxu0 %v2214
        %2395 = vmatprep.subr.mxu0 %v2211
        %2396 = vmatpush1.msra.mxu0 %v2210
        %2397 = vmatprep.subr.mxu0 0.0
        %2398 = vmatpush2.msra.mxu0 0.0
        %2399 = vmatprep.subr.mxu0 0.0
        %2400 = vmatpush2.msra.mxu0 0.0
        %2401 = vmatprep.subr.mxu0 0.0
        %2402 = vmatpush2.msra.mxu0 0.0
        %2403 = vmatprep.subr.mxu0 0.0
        %2404 = vmatpush2.msra.mxu0 0.0
        %2405 = vmatprep.subr.mxu0 0.0
        %2406 = vmatpush2.msra.mxu0 0.0
        %2407 = vmatprep.subr.mxu0 0.0
        %2408 = vmatpush2.msra.mxu0 0.0
        %2409 = vmatprep.subr.mxu0 0.0
        %2410 = vmatpush2.msra.mxu0 0.0
        %2411 = vmatprep.subr.mxu0 0.0
        %2412 = vmatpush2.msra.mxu0 0.0
        %2413 = vmatprep.subr.mxu0 0.0
        %2414 = vmatpush2.msra.mxu0 0.0
        %2415 = vmatprep.subr.mxu0 0.0
        %2416 = vmatpush2.msra.mxu0 0.0
        %2417 = vmatprep.subr.mxu0 0.0
        %2418 = vmatpush2.msra.mxu0 0.0
        %2419 = vmatprep.subr.mxu0 0.0
        %2420 = vmatpush2.msra.mxu0 0.0
        %2421 = vmatprep.subr.mxu0 0.0
        %2422 = vmatpush2.msra.mxu0 0.0
        %2423 = vmatprep.subr.mxu0 0.0
        %2424 = vmatpush2.msra.mxu0 0.0
        %2425 = vmatprep.subr.mxu0 0.0
        %2426 = vmatpush2.msra.mxu0 0.0
        %2427 = vmatprep.subr.mxu0 0.0
        %2428 = vmatpush2.msra.mxu0 0.0
        %2429 = vmatprep.mubr.f32.mxu0 0.0
        %2430 = vmatmul.mubr.f32.gmra.mxu0 %v2207
        %v2431 = vpop.f32.mrf.mxu0
        %v2432 = vadd.f32 %v2285, %v2431
        %v2433 = vpop.f32.mrf.mxu0
        %v2434 = vadd.f32 %v2289, %v2433
        %2435 = vdwg.mxu0
        %v2436 = vmul.f32 %v2361, 0.5
        %v2437 = vmul.f32 %v2363, 0.5
        %v2438 = vmul.f32 %v2432, 0.5
        %v2439 = vmul.f32 %v2434, 0.5
        %v2440 = vmul.f32 %v2361, 0.044715
        %v2441 = vmul.f32 %v2363, 0.044715
        %v2442 = vmul.f32 %v2432, 0.044715
        %v2443 = vmul.f32 %v2434, 0.044715
        %v2444 = vmul.f32 %v2440, %v2361
        %v2445 = vmul.f32 %v2441, %v2363
        %v2446 = vmul.f32 %v2442, %v2432
        %v2447 = vmul.f32 %v2443, %v2434
        %v2448 = vmul.f32 %v2444, %v2361
        %v2449 = vmul.f32 %v2445, %v2363
        %v2450 = vmul.f32 %v2446, %v2432
        %v2451 = vmul.f32 %v2447, %v2434
        %v2452 = vadd.f32 %v2361, %v2448
        %v2453 = vadd.f32 %v2363, %v2449
        %v2454 = vadd.f32 %v2432, %v2450
        %v2455 = vadd.f32 %v2434, %v2451
        %v2456 = vmul.f32 %v2452, 0.7978846
        %v2457 = vmul.f32 %v2453, 0.7978846
        %v2458 = vmul.f32 %v2454, 0.7978846
        %v2459 = vmul.f32 %v2455, 0.7978846
        %v2460 = vtanh.pop %v2456
        %v2461 = vtanh.pop %v2457
        %v2462 = vtanh.pop %v2458
        %v2463 = vtanh.pop %v2459
        %v2464 = vadd.f32 %v2460, 1.0
        %v2465 = vadd.f32 %v2461, 1.0
        %v2466 = vadd.f32 %v2462, 1.0
        %v2467 = vadd.f32 %v2463, 1.0
        %v2468 = vmul.f32 %v2436, %v2464
        %v2469 = vmul.f32 %v2437, %v2465
        %v2470 = vmul.f32 %v2438, %v2466
        %v2471 = vmul.f32 %v2439, %v2467
        %v2472 = vld [vmem:[%s1109] sm:$0xff]
        %v2473 = vld [vmem:[%s1109 + $0x8] sm:$0xff]
        %v2474 = vld [vmem:[%s1109 + $0x10] sm:$0xff]
        %v2475 = vld [vmem:[%s1109 + $0x18] sm:$0xff]
        %v2476 = vld [vmem:[%s1109 + $0x20] sm:$0xff]
        %v2477 = vld [vmem:[%s1109 + $0x28] sm:$0xff]
        %v2478 = vld [vmem:[%s1109 + $0x30] sm:$0xff]
        %v2479 = vld [vmem:[%s1109 + $0x38] sm:$0xff]
        %v2480 = vld [vmem:[%s1109 + $0x40] sm:$0xff]
        %v2481 = vld [vmem:[%s1109 + $0x48] sm:$0xff]
        %v2482 = vld [vmem:[%s1109 + $0x50] sm:$0xff]
        %v2483 = vld [vmem:[%s1109 + $0x58] sm:$0xff]
        %v2484 = vld [vmem:[%s1109 + $0x60] sm:$0xff]
        %v2485 = vld [vmem:[%s1109 + $0x68] sm:$0xff]
        %v2486 = vld [vmem:[%s1109 + $0x70] sm:$0xff]
        %v2487 = vld [vmem:[%s1109 + $0x78] sm:$0xff]
        %v2488 = vld [vmem:[%s1109 + $0x80] sm:$0xff]
        %v2489 = vld [vmem:[%s1109 + $0x88] sm:$0xff]
        %v2490 = vld [vmem:[%s1109 + $0x90] sm:$0xff]
        %v2491 = vld [vmem:[%s1109 + $0x98] sm:$0xff]
        %v2492 = vld [vmem:[%s1109 + $0xa0] sm:$0xff]
        %v2493 = vld [vmem:[%s1109 + $0xa8] sm:$0xff]
        %v2494 = vld [vmem:[%s1109 + $0xb0] sm:$0xff]
        %v2495 = vld [vmem:[%s1109 + $0xb8] sm:$0xff]
        %v2496 = vld [vmem:[%s1109 + $0xc0] sm:$0xff]
        %v2497 = vld [vmem:[%s1109 + $0xc8] sm:$0xff]
        %v2498 = vld [vmem:[%s1109 + $0xd0] sm:$0xff]
        %v2499 = vld [vmem:[%s1109 + $0xd8] sm:$0xff]
        %v2500 = vld [vmem:[%s1109 + $0xe0] sm:$0xff]
        %v2501 = vld [vmem:[%s1109 + $0xe8] sm:$0xff]
        %v2502 = vld [vmem:[%s1109 + $0xf0] sm:$0xff]
        %v2503 = vld [vmem:[%s1109 + $0xf8] sm:$0xff]
        %v2504 = vld [vmem:[%s1109 + $0x100] sm:$0xff]
        %v2505 = vld [vmem:[%s1109 + $0x108] sm:$0xff]
        %v2506 = vld [vmem:[%s1109 + $0x110] sm:$0xff]
        %v2507 = vld [vmem:[%s1109 + $0x118] sm:$0xff]
        %v2508 = vld [vmem:[%s1109 + $0x120] sm:$0xff]
        %v2509 = vld [vmem:[%s1109 + $0x128] sm:$0xff]
        %v2510 = vld [vmem:[%s1109 + $0x130] sm:$0xff]
        %v2511 = vld [vmem:[%s1109 + $0x138] sm:$0xff]
        %v2512 = vld [vmem:[%s1109 + $0x140] sm:$0xff]
        %v2513 = vld [vmem:[%s1109 + $0x148] sm:$0xff]
        %v2514 = vld [vmem:[%s1109 + $0x150] sm:$0xff]
        %v2515 = vld [vmem:[%s1109 + $0x158] sm:$0xff]
        %v2516 = vld [vmem:[%s1109 + $0x160] sm:$0xff]
        %v2517 = vld [vmem:[%s1109 + $0x168] sm:$0xff]
        %v2518 = vld [vmem:[%s1109 + $0x170] sm:$0xff]
        %v2519 = vld [vmem:[%s1109 + $0x178] sm:$0xff]
        %v2520 = vld [vmem:[%s1109 + $0x180] sm:$0xff]
        %v2521 = vld [vmem:[%s1109 + $0x188] sm:$0xff]
        %v2522 = vld [vmem:[%s1109 + $0x190] sm:$0xff]
        %v2523 = vld [vmem:[%s1109 + $0x198] sm:$0xff]
        %v2524 = vld [vmem:[%s1109 + $0x1a0] sm:$0xff]
        %v2525 = vld [vmem:[%s1109 + $0x1a8] sm:$0xff]
        %v2526 = vld [vmem:[%s1109 + $0x1b0] sm:$0xff]
        %v2527 = vld [vmem:[%s1109 + $0x1b8] sm:$0xff]
        %v2528 = vld [vmem:[%s1109 + $0x1c0] sm:$0xff]
        %v2529 = vld [vmem:[%s1109 + $0x1c8] sm:$0xff]
        %v2530 = vld [vmem:[%s1109 + $0x1d0] sm:$0xff]
        %v2531 = vld [vmem:[%s1109 + $0x1d8] sm:$0xff]
        %v2532 = vld [vmem:[%s1109 + $0x1e0] sm:$0xff]
        %v2533 = vld [vmem:[%s1109 + $0x1e8] sm:$0xff]
        %v2534 = vld [vmem:[%s1109 + $0x1f0] sm:$0xff]
        %v2535 = vld [vmem:[%s1109 + $0x1f8] sm:$0xff]
        %v2536 = vld [vmem:[%s1112] sm:$0x1]
        %v2538 = vlaneseq
        %v2539 = vshrl.u32 %v2538, 7
        %v2540 = vsub.s32 0, %v2539
        %v2541 = vrot.slane %v2536, %v2540
        %2543 = vmatprep.subr.mxu0 0.0
        %2544 = vmatpush1.msra.mxu0 %v2487
        %2545 = vmatprep.subr.mxu0 0.0
        %2546 = vmatpush1.msra.mxu0 %v2486
        %2547 = vmatprep.subr.mxu0 0.0
        %2548 = vmatpush1.msra.mxu0 %v2485
        %2549 = vmatprep.subr.mxu0 0.0
        %2550 = vmatpush1.msra.mxu0 %v2484
        %2551 = vmatprep.subr.mxu0 0.0
        %2552 = vmatpush1.msra.mxu0 %v2483
        %2553 = vmatprep.subr.mxu0 0.0
        %2554 = vmatpush1.msra.mxu0 %v2482
        %2555 = vmatprep.subr.mxu0 0.0
        %2556 = vmatpush1.msra.mxu0 %v2481
        %2557 = vmatprep.subr.mxu0 0.0
        %2558 = vmatpush1.msra.mxu0 %v2480
        %2559 = vmatprep.subr.mxu0 0.0
        %2560 = vmatpush1.msra.mxu0 %v2479
        %2561 = vmatprep.subr.mxu0 0.0
        %2562 = vmatpush1.msra.mxu0 %v2478
        %2563 = vmatprep.subr.mxu0 0.0
        %2564 = vmatpush1.msra.mxu0 %v2477
        %2565 = vmatprep.subr.mxu0 0.0
        %2566 = vmatpush1.msra.mxu0 %v2476
        %2567 = vmatprep.subr.mxu0 0.0
        %2568 = vmatpush1.msra.mxu0 %v2475
        %2569 = vmatprep.subr.mxu0 0.0
        %2570 = vmatpush1.msra.mxu0 %v2474
        %2571 = vmatprep.subr.mxu0 0.0
        %2572 = vmatpush1.msra.mxu0 %v2473
        %2573 = vmatprep.subr.mxu0 0.0
        %2574 = vmatpush1.msra.mxu0 %v2472
        %2575 = vmatprep.subr.mxu0 0.0
        %2576 = vmatpush2.msra.mxu0 %v2503
        %2577 = vmatprep.subr.mxu0 0.0
        %2578 = vmatpush2.msra.mxu0 %v2502
        %2579 = vmatprep.subr.mxu0 0.0
        %2580 = vmatpush2.msra.mxu0 %v2501
        %2581 = vmatprep.subr.mxu0 0.0
        %2582 = vmatpush2.msra.mxu0 %v2500
        %2583 = vmatprep.subr.mxu0 0.0
        %2584 = vmatpush2.msra.mxu0 %v2499
        %2585 = vmatprep.subr.mxu0 0.0
        %2586 = vmatpush2.msra.mxu0 %v2498
        %2587 = vmatprep.subr.mxu0 0.0
        %2588 = vmatpush2.msra.mxu0 %v2497
        %2589 = vmatprep.subr.mxu0 0.0
        %2590 = vmatpush2.msra.mxu0 %v2496
        %2591 = vmatprep.subr.mxu0 0.0
        %2592 = vmatpush2.msra.mxu0 %v2495
        %2593 = vmatprep.subr.mxu0 0.0
        %2594 = vmatpush2.msra.mxu0 %v2494
        %2595 = vmatprep.subr.mxu0 0.0
        %2596 = vmatpush2.msra.mxu0 %v2493
        %2597 = vmatprep.subr.mxu0 0.0
        %2598 = vmatpush2.msra.mxu0 %v2492
        %2599 = vmatprep.subr.mxu0 0.0
        %2600 = vmatpush2.msra.mxu0 %v2491
        %2601 = vmatprep.subr.mxu0 0.0
        %2602 = vmatpush2.msra.mxu0 %v2490
        %2603 = vmatprep.subr.mxu0 0.0
        %2604 = vmatpush2.msra.mxu0 %v2489
        %2605 = vmatprep.subr.mxu0 0.0
        %2606 = vmatpush2.msra.mxu0 %v2488
        %2607 = vmatprep.mubr.f32.mxu0 %v2469
        %2608 = vmatmul.mubr.f32.gmra.mxu0 %v2468
        %v2609 = vpop.f32.mrf.mxu0
        %v2610 = vadd.f32 %v2541, %v2609
        %v2611 = vpop.f32.mrf.mxu0
        %2612 = vdwg.mxu0
        %2613 = vmatprep.subr.mxu0 0.0
        %2614 = vmatpush1.msra.mxu0 %v2519
        %2615 = vmatprep.subr.mxu0 0.0
        %2616 = vmatpush1.msra.mxu0 %v2518
        %2617 = vmatprep.subr.mxu0 0.0
        %2618 = vmatpush1.msra.mxu0 %v2517
        %2619 = vmatprep.subr.mxu0 0.0
        %2620 = vmatpush1.msra.mxu0 %v2516
        %2621 = vmatprep.subr.mxu0 0.0
        %2622 = vmatpush1.msra.mxu0 %v2515
        %2623 = vmatprep.subr.mxu0 0.0
        %2624 = vmatpush1.msra.mxu0 %v2514
        %2625 = vmatprep.subr.mxu0 0.0
        %2626 = vmatpush1.msra.mxu0 %v2513
        %2627 = vmatprep.subr.mxu0 0.0
        %2628 = vmatpush1.msra.mxu0 %v2512
        %2629 = vmatprep.subr.mxu0 0.0
        %2630 = vmatpush1.msra.mxu0 %v2511
        %2631 = vmatprep.subr.mxu0 0.0
        %2632 = vmatpush1.msra.mxu0 %v2510
        %2633 = vmatprep.subr.mxu0 0.0
        %2634 = vmatpush1.msra.mxu0 %v2509
        %2635 = vmatprep.subr.mxu0 0.0
        %2636 = vmatpush1.msra.mxu0 %v2508
        %2637 = vmatprep.subr.mxu0 0.0
        %2638 = vmatpush1.msra.mxu0 %v2507
        %2639 = vmatprep.subr.mxu0 0.0
        %2640 = vmatpush1.msra.mxu0 %v2506
        %2641 = vmatprep.subr.mxu0 0.0
        %2642 = vmatpush1.msra.mxu0 %v2505
        %2643 = vmatprep.subr.mxu0 0.0
        %2644 = vmatpush1.msra.mxu0 %v2504
        %2645 = vmatprep.subr.mxu0 0.0
        %2646 = vmatpush2.msra.mxu0 %v2535
        %2647 = vmatprep.subr.mxu0 0.0
        %2648 = vmatpush2.msra.mxu0 %v2534
        %2649 = vmatprep.subr.mxu0 0.0
        %2650 = vmatpush2.msra.mxu0 %v2533
        %2651 = vmatprep.subr.mxu0 0.0
        %2652 = vmatpush2.msra.mxu0 %v2532
        %2653 = vmatprep.subr.mxu0 0.0
        %2654 = vmatpush2.msra.mxu0 %v2531
        %2655 = vmatprep.subr.mxu0 0.0
        %2656 = vmatpush2.msra.mxu0 %v2530
        %2657 = vmatprep.subr.mxu0 0.0
        %2658 = vmatpush2.msra.mxu0 %v2529
        %2659 = vmatprep.subr.mxu0 0.0
        %2660 = vmatpush2.msra.mxu0 %v2528
        %2661 = vmatprep.subr.mxu0 0.0
        %2662 = vmatpush2.msra.mxu0 %v2527
        %2663 = vmatprep.subr.mxu0 0.0
        %2664 = vmatpush2.msra.mxu0 %v2526
        %2665 = vmatprep.subr.mxu0 0.0
        %2666 = vmatpush2.msra.mxu0 %v2525
        %2667 = vmatprep.subr.mxu0 0.0
        %2668 = vmatpush2.msra.mxu0 %v2524
        %2669 = vmatprep.subr.mxu0 0.0
        %2670 = vmatpush2.msra.mxu0 %v2523
        %2671 = vmatprep.subr.mxu0 0.0
        %2672 = vmatpush2.msra.mxu0 %v2522
        %2673 = vmatprep.subr.mxu0 0.0
        %2674 = vmatpush2.msra.mxu0 %v2521
        %2675 = vmatprep.subr.mxu0 0.0
        %2676 = vmatpush2.msra.mxu0 %v2520
        %2677 = vmatprep.mubr.f32.mxu0 %v2471
        %2678 = vmatmul.mubr.f32.gmra.mxu0 %v2470
        %v2679 = vpop.f32.mrf.mxu0
        %v2680 = vadd.f32 %v2610, %v2679
        %v2681 = vpop.f32.mrf.mxu0
        %2682 = vdwg.mxu0
        %v2683 = vadd.f32 %v2207, %v2680
        %v2684 = vld [vmem:[%s1115] sm:$0x1]
        %v2685 = vld [vmem:[%s1118] sm:$0x1]
        %2686 = vadd.xlane.f32.xlu0 %v2683
        %v2687 = vpop.xlane.xlu0 %2686
        %v2688 = vmul.f32 %v2687, %v2184
        %v2689 = vsub.f32 %v2683, %v2688
        %v2690 = vmul.f32 %v2689, %v2689
        %2691 = vadd.xlane.f32.xlu0 %v2690
        %v2692 = vpop.xlane.xlu0 %2691
        %v2693 = vmul.f32 %v2692, %v2184
        %v2694 = vadd.f32 %v2693, 1e-12
        %v2695 = vrsqrt.pop %v2694
        %v2696 = vmul.f32 %v2689, %v2695
        %v2698 = vlaneseq
        %v2699 = vshrl.u32 %v2698, 7
        %v2700 = vsub.s32 0, %v2699
        %v2701 = vrot.slane %v2684, %v2700
        %v2703 = vmul.f32 %v2696, %v2701
        %v2705 = vlaneseq
        %v2706 = vshrl.u32 %v2705, 7
        %v2707 = vsub.s32 0, %v2706
        %v2708 = vrot.slane %v2685, %v2707
        %v2710 = vadd.f32 %v2703, %v2708
        %2711 = vst [vmem:[#allocation2] sm:$0xff] %v2710
        %p2712 = scmp.eq.s32.totalorder %s48, 1
        // Predicated region
        $region157: #{tpu_custom_call.1} parent=107 // pred_check
          %p2713 = pneg %p2712
        $region158: #{tpu_custom_call.1} parent=107 // pred_check_branch
          %2715 = sbr.rel (%p2713) target = $region160
        $region159: #{tpu_custom_call.1} parent=107 // pred_region
          %v2716 = vld [vmem:[#allocation17] sm:$0xff]
          %v2717 = vld [vmem:[#allocation17 + $0x8] sm:$0xff]
          %v2718 = vld [vmem:[#allocation17 + $0x10] sm:$0xff]
          %v2719 = vld [vmem:[#allocation17 + $0x18] sm:$0xff]
          %v2720 = vld [vmem:[#allocation17 + $0x20] sm:$0xff]
          %v2721 = vld [vmem:[#allocation17 + $0x28] sm:$0xff]
          %v2722 = vld [vmem:[#allocation17 + $0x30] sm:$0xff]
          %v2723 = vld [vmem:[#allocation17 + $0x38] sm:$0xff]
          %v2724 = vld [vmem:[#allocation17 + $0x40] sm:$0xff]
          %v2725 = vld [vmem:[#allocation17 + $0x48] sm:$0xff]
          %v2726 = vld [vmem:[#allocation17 + $0x50] sm:$0xff]
          %v2727 = vld [vmem:[#allocation17 + $0x58] sm:$0xff]
          %v2728 = vld [vmem:[#allocation17 + $0x60] sm:$0xff]
          %v2729 = vld [vmem:[#allocation17 + $0x68] sm:$0xff]
          %v2730 = vld [vmem:[#allocation17 + $0x70] sm:$0xff]
          %v2731 = vld [vmem:[#allocation17 + $0x78] sm:$0xff]
          %v2732 = vld [vmem:[#allocation18] sm:$0xff]
          %v2733 = vld [vmem:[#allocation18 + $0x8] sm:$0xff]
          %v2734 = vld [vmem:[#allocation18 + $0x10] sm:$0xff]
          %v2735 = vld [vmem:[#allocation18 + $0x18] sm:$0xff]
          %v2736 = vld [vmem:[#allocation18 + $0x20] sm:$0xff]
          %v2737 = vld [vmem:[#allocation18 + $0x28] sm:$0xff]
          %v2738 = vld [vmem:[#allocation18 + $0x30] sm:$0xff]
          %v2739 = vld [vmem:[#allocation18 + $0x38] sm:$0xff]
          %v2740 = vld [vmem:[#allocation18 + $0x40] sm:$0xff]
          %v2741 = vld [vmem:[#allocation18 + $0x48] sm:$0xff]
          %v2742 = vld [vmem:[#allocation18 + $0x50] sm:$0xff]
          %v2743 = vld [vmem:[#allocation18 + $0x58] sm:$0xff]
          %v2744 = vld [vmem:[#allocation18 + $0x60] sm:$0xff]
          %v2745 = vld [vmem:[#allocation18 + $0x68] sm:$0xff]
          %v2746 = vld [vmem:[#allocation18 + $0x70] sm:$0xff]
          %v2747 = vld [vmem:[#allocation18 + $0x78] sm:$0xff]
          %v2749 = vrot.slane %v2710, 1
          %2751 = vmatprep.subr.mxu0 0.0
          %2752 = vmatpush1.msra.mxu0 %v2747
          %2753 = vmatprep.subr.mxu0 0.0
          %2754 = vmatpush1.msra.mxu0 %v2746
          %2755 = vmatprep.subr.mxu0 0.0
          %2756 = vmatpush1.msra.mxu0 %v2745
          %2757 = vmatprep.subr.mxu0 0.0
          %2758 = vmatpush1.msra.mxu0 %v2744
          %2759 = vmatprep.subr.mxu0 0.0
          %2760 = vmatpush1.msra.mxu0 %v2743
          %2761 = vmatprep.subr.mxu0 0.0
          %2762 = vmatpush1.msra.mxu0 %v2742
          %2763 = vmatprep.subr.mxu0 0.0
          %2764 = vmatpush1.msra.mxu0 %v2741
          %2765 = vmatprep.subr.mxu0 0.0
          %2766 = vmatpush1.msra.mxu0 %v2740
          %2767 = vmatprep.subr.mxu0 0.0
          %2768 = vmatpush1.msra.mxu0 %v2739
          %2769 = vmatprep.subr.mxu0 0.0
          %2770 = vmatpush1.msra.mxu0 %v2738
          %2771 = vmatprep.subr.mxu0 0.0
          %2772 = vmatpush1.msra.mxu0 %v2737
          %2773 = vmatprep.subr.mxu0 0.0
          %2774 = vmatpush1.msra.mxu0 %v2736
          %2775 = vmatprep.subr.mxu0 0.0
          %2776 = vmatpush1.msra.mxu0 %v2735
          %2777 = vmatprep.subr.mxu0 0.0
          %2778 = vmatpush1.msra.mxu0 %v2734
          %2779 = vmatprep.subr.mxu0 0.0
          %2780 = vmatpush1.msra.mxu0 %v2733
          %2781 = vmatprep.subr.mxu0 0.0
          %2782 = vmatpush1.msra.mxu0 %v2732
          %2783 = vmatprep.subr.mxu0 0.0
          %2784 = vmatpush2.msra.mxu0 0.0
          %2785 = vmatprep.subr.mxu0 0.0
          %2786 = vmatpush2.msra.mxu0 0.0
          %2787 = vmatprep.subr.mxu0 0.0
          %2788 = vmatpush2.msra.mxu0 0.0
          %2789 = vmatprep.subr.mxu0 0.0
          %2790 = vmatpush2.msra.mxu0 0.0
          %2791 = vmatprep.subr.mxu0 0.0
          %2792 = vmatpush2.msra.mxu0 0.0
          %2793 = vmatprep.subr.mxu0 0.0
          %2794 = vmatpush2.msra.mxu0 0.0
          %2795 = vmatprep.subr.mxu0 0.0
          %2796 = vmatpush2.msra.mxu0 0.0
          %2797 = vmatprep.subr.mxu0 0.0
          %2798 = vmatpush2.msra.mxu0 0.0
          %2799 = vmatprep.subr.mxu0 0.0
          %2800 = vmatpush2.msra.mxu0 0.0
          %2801 = vmatprep.subr.mxu0 0.0
          %2802 = vmatpush2.msra.mxu0 0.0
          %2803 = vmatprep.subr.mxu0 0.0
          %2804 = vmatpush2.msra.mxu0 0.0
          %2805 = vmatprep.subr.mxu0 0.0
          %2806 = vmatpush2.msra.mxu0 0.0
          %2807 = vmatprep.subr.mxu0 0.0
          %2808 = vmatpush2.msra.mxu0 0.0
          %2809 = vmatprep.subr.mxu0 0.0
          %2810 = vmatpush2.msra.mxu0 0.0
          %2811 = vmatprep.subr.mxu0 0.0
          %2812 = vmatpush2.msra.mxu0 0.0
          %2813 = vmatprep.subr.mxu0 0.0
          %2814 = vmatpush2.msra.mxu0 0.0
          %2815 = vmatprep.mubr.f32.mxu0 0.0
          %2816 = vmatmul.mubr.f32.gmra.mxu0 %v2749
          %v2817 = vpop.f32.mrf.mxu0
          %v2818 = vadd.f32 0.0, %v2817
          %v2819 = vpop.f32.mrf.mxu0
          %2820 = vdwg.mxu0
          %2821 = vmatprep.subr.mxu0 0.0
          %2822 = vmatpush1.msra.mxu0 %v2731
          %2823 = vmatprep.subr.mxu0 0.0
          %2824 = vmatpush1.msra.mxu0 %v2730
          %2825 = vmatprep.subr.mxu0 0.0
          %2826 = vmatpush1.msra.mxu0 %v2729
          %2827 = vmatprep.subr.mxu0 0.0
          %2828 = vmatpush1.msra.mxu0 %v2728
          %2829 = vmatprep.subr.mxu0 0.0
          %2830 = vmatpush1.msra.mxu0 %v2727
          %2831 = vmatprep.subr.mxu0 0.0
          %2832 = vmatpush1.msra.mxu0 %v2726
          %2833 = vmatprep.subr.mxu0 0.0
          %2834 = vmatpush1.msra.mxu0 %v2725
          %2835 = vmatprep.subr.mxu0 0.0
          %2836 = vmatpush1.msra.mxu0 %v2724
          %2837 = vmatprep.subr.mxu0 0.0
          %2838 = vmatpush1.msra.mxu0 %v2723
          %2839 = vmatprep.subr.mxu0 0.0
          %2840 = vmatpush1.msra.mxu0 %v2722
          %2841 = vmatprep.subr.mxu0 0.0
          %2842 = vmatpush1.msra.mxu0 %v2721
          %2843 = vmatprep.subr.mxu0 0.0
          %2844 = vmatpush1.msra.mxu0 %v2720
          %2845 = vmatprep.subr.mxu0 0.0
          %2846 = vmatpush1.msra.mxu0 %v2719
          %2847 = vmatprep.subr.mxu0 0.0
          %2848 = vmatpush1.msra.mxu0 %v2718
          %2849 = vmatprep.subr.mxu0 0.0
          %2850 = vmatpush1.msra.mxu0 %v2717
          %2851 = vmatprep.subr.mxu0 0.0
          %2852 = vmatpush1.msra.mxu0 %v2716
          %2853 = vmatprep.subr.mxu0 0.0
          %2854 = vmatpush2.msra.mxu0 0.0
          %2855 = vmatprep.subr.mxu0 0.0
          %2856 = vmatpush2.msra.mxu0 0.0
          %2857 = vmatprep.subr.mxu0 0.0
          %2858 = vmatpush2.msra.mxu0 0.0
          %2859 = vmatprep.subr.mxu0 0.0
          %2860 = vmatpush2.msra.mxu0 0.0
          %2861 = vmatprep.subr.mxu0 0.0
          %2862 = vmatpush2.msra.mxu0 0.0
          %2863 = vmatprep.subr.mxu0 0.0
          %2864 = vmatpush2.msra.mxu0 0.0
          %2865 = vmatprep.subr.mxu0 0.0
          %2866 = vmatpush2.msra.mxu0 0.0
          %2867 = vmatprep.subr.mxu0 0.0
          %2868 = vmatpush2.msra.mxu0 0.0
          %2869 = vmatprep.subr.mxu0 0.0
          %2870 = vmatpush2.msra.mxu0 0.0
          %2871 = vmatprep.subr.mxu0 0.0
          %2872 = vmatpush2.msra.mxu0 0.0
          %2873 = vmatprep.subr.mxu0 0.0
          %2874 = vmatpush2.msra.mxu0 0.0
          %2875 = vmatprep.subr.mxu0 0.0
          %2876 = vmatpush2.msra.mxu0 0.0
          %2877 = vmatprep.subr.mxu0 0.0
          %2878 = vmatpush2.msra.mxu0 0.0
          %2879 = vmatprep.subr.mxu0 0.0
          %2880 = vmatpush2.msra.mxu0 0.0
          %2881 = vmatprep.subr.mxu0 0.0
          %2882 = vmatpush2.msra.mxu0 0.0
          %2883 = vmatprep.subr.mxu0 0.0
          %2884 = vmatpush2.msra.mxu0 0.0
          %2885 = vmatprep.mubr.f32.mxu0 0.0
          %2886 = vmatmul.mubr.f32.gmra.mxu0 %v2710
          %v2887 = vpop.f32.mrf.mxu0
          %v2888 = vadd.f32 %v2818, %v2887
          %v2889 = vpop.f32.mrf.mxu0
          %2890 = vdwg.mxu0
          %v2891 = vld [vmem:[%s19] sm:$0x1]
          %v2893 = vlaneseq
          %v2894 = vshrl.u32 %v2893, 7
          %v2895 = vsub.s32 0, %v2894
          %v2896 = vrot.slane %v2891, %v2895
          %v2898 = vadd.f32 %v2888, %v2896
          %v2899 = vmax.f32 %v2898, 0.0
          %v2900 = vld [vmem:[#allocation20] sm:$0xff]
          %v2901 = vld [vmem:[#allocation20 + $0x8] sm:$0xff]
          %v2902 = vld [vmem:[#allocation20 + $0x10] sm:$0xff]
          %v2903 = vld [vmem:[#allocation20 + $0x18] sm:$0xff]
          %v2904 = vld [vmem:[#allocation20 + $0x20] sm:$0xff]
          %v2905 = vld [vmem:[#allocation20 + $0x28] sm:$0xff]
          %v2906 = vld [vmem:[#allocation20 + $0x30] sm:$0xff]
          %v2907 = vld [vmem:[#allocation20 + $0x38] sm:$0xff]
          %v2908 = vld [vmem:[#allocation20 + $0x40] sm:$0xff]
          %v2909 = vld [vmem:[#allocation20 + $0x48] sm:$0xff]
          %v2910 = vld [vmem:[#allocation20 + $0x50] sm:$0xff]
          %v2911 = vld [vmem:[#allocation20 + $0x58] sm:$0xff]
          %v2912 = vld [vmem:[#allocation20 + $0x60] sm:$0xff]
          %v2913 = vld [vmem:[#allocation20 + $0x68] sm:$0xff]
          %v2914 = vld [vmem:[#allocation20 + $0x70] sm:$0xff]
          %v2915 = vld [vmem:[#allocation20 + $0x78] sm:$0xff]
          %v2916 = vld [vmem:[%s21] sm:$0x1]
          %v2918 = vlaneseq
          %v2919 = vshrl.u32 %v2918, 7
          %v2920 = vsub.s32 0, %v2919
          %v2921 = vrot.slane %v2916, %v2920
          %2923 = vmatprep.subr.mxu0 0.0
          %2924 = vmatpush1.msra.mxu0 %v2915
          %2925 = vmatprep.subr.mxu0 0.0
          %2926 = vmatpush1.msra.mxu0 %v2914
          %2927 = vmatprep.subr.mxu0 0.0
          %2928 = vmatpush1.msra.mxu0 %v2913
          %2929 = vmatprep.subr.mxu0 0.0
          %2930 = vmatpush1.msra.mxu0 %v2912
          %2931 = vmatprep.subr.mxu0 0.0
          %2932 = vmatpush1.msra.mxu0 %v2911
          %2933 = vmatprep.subr.mxu0 0.0
          %2934 = vmatpush1.msra.mxu0 %v2910
          %2935 = vmatprep.subr.mxu0 0.0
          %2936 = vmatpush1.msra.mxu0 %v2909
          %2937 = vmatprep.subr.mxu0 0.0
          %2938 = vmatpush1.msra.mxu0 %v2908
          %2939 = vmatprep.subr.mxu0 0.0
          %2940 = vmatpush1.msra.mxu0 %v2907
          %2941 = vmatprep.subr.mxu0 0.0
          %2942 = vmatpush1.msra.mxu0 %v2906
          %2943 = vmatprep.subr.mxu0 0.0
          %2944 = vmatpush1.msra.mxu0 %v2905
          %2945 = vmatprep.subr.mxu0 0.0
          %2946 = vmatpush1.msra.mxu0 %v2904
          %2947 = vmatprep.subr.mxu0 0.0
          %2948 = vmatpush1.msra.mxu0 %v2903
          %2949 = vmatprep.subr.mxu0 0.0
          %2950 = vmatpush1.msra.mxu0 %v2902
          %2951 = vmatprep.subr.mxu0 0.0
          %2952 = vmatpush1.msra.mxu0 %v2901
          %2953 = vmatprep.subr.mxu0 0.0
          %2954 = vmatpush1.msra.mxu0 %v2900
          %2955 = vmatprep.subr.mxu0 0.0
          %2956 = vmatpush2.msra.mxu0 0.0
          %2957 = vmatprep.subr.mxu0 0.0
          %2958 = vmatpush2.msra.mxu0 0.0
          %2959 = vmatprep.subr.mxu0 0.0
          %2960 = vmatpush2.msra.mxu0 0.0
          %2961 = vmatprep.subr.mxu0 0.0
          %2962 = vmatpush2.msra.mxu0 0.0
          %2963 = vmatprep.subr.mxu0 0.0
          %2964 = vmatpush2.msra.mxu0 0.0
          %2965 = vmatprep.subr.mxu0 0.0
          %2966 = vmatpush2.msra.mxu0 0.0
          %2967 = vmatprep.subr.mxu0 0.0
          %2968 = vmatpush2.msra.mxu0 0.0
          %2969 = vmatprep.subr.mxu0 0.0
          %2970 = vmatpush2.msra.mxu0 0.0
          %2971 = vmatprep.subr.mxu0 0.0
          %2972 = vmatpush2.msra.mxu0 0.0
          %2973 = vmatprep.subr.mxu0 0.0
          %2974 = vmatpush2.msra.mxu0 0.0
          %2975 = vmatprep.subr.mxu0 0.0
          %2976 = vmatpush2.msra.mxu0 0.0
          %2977 = vmatprep.subr.mxu0 0.0
          %2978 = vmatpush2.msra.mxu0 0.0
          %2979 = vmatprep.subr.mxu0 0.0
          %2980 = vmatpush2.msra.mxu0 0.0
          %2981 = vmatprep.subr.mxu0 0.0
          %2982 = vmatpush2.msra.mxu0 0.0
          %2983 = vmatprep.subr.mxu0 0.0
          %2984 = vmatpush2.msra.mxu0 0.0
          %2985 = vmatprep.subr.mxu0 0.0
          %2986 = vmatpush2.msra.mxu0 0.0
          %2987 = vmatprep.mubr.f32.mxu0 0.0
          %2988 = vmatmul.mubr.f32.gmra.mxu0 %v2899
          %v2989 = vpop.f32.mrf.mxu0
          %v2990 = vadd.f32 %v2921, %v2989
          %v2991 = vpop.f32.mrf.mxu0
          %2992 = vdwg.mxu0
          %2993 = vst [vmem:[#allocation21] sm:$0x7f] %v2990
        $region160: #{tpu_custom_call.1} parent=107 // pred_fallthru
          _
        // Predicated region
        $region161: #{tpu_custom_call.1} parent=107 // pred_check
          %p2994 = pneg %p603
        $region162: #{tpu_custom_call.1} parent=107 // pred_check_branch
          %2996 = sbr.rel (%p2994) target = $region164
        $region163: #{tpu_custom_call.1} parent=107 // pred_region
          %s2998 = ssub.s32 128, 128
          %2999 = vsyncadd [#allocation5], %s2998
          %s3001 = sshll.u32 [#allocation21], 4
          %s3002 = int_to_ptr.vmem [resolvable:$true] %s3001
          %3004 = dma.vmem_to_hbm [thread:$0]  %s3002, 128, %s22, [#allocation5]
        $region164: #{tpu_custom_call.1} parent=107 // pred_fallthru
          _
        // Predicated region
        $region165: #{tpu_custom_call.1} parent=107 // pred_check
          %p3005 = pneg %p603
        $region166: #{tpu_custom_call.1} parent=107 // pred_check_branch
          %3007 = sbr.rel (%p3005) target = $region168
        $region167: #{tpu_custom_call.1} parent=107 // pred_region
          %3008 = dma.done [#allocation5], 128
        $region168: #{tpu_custom_call.1} parent=107 // pred_fallthru
          _
      $region108: #{tpu_custom_call.1} parent=5 // pred_fallthru
        _
      %p3009 = scmp.le.s32.totalorder 2, %s43
      // Predicated region
      $region169: #{tpu_custom_call.1} parent=5 // pred_check
        %p3010 = pneg %p3009
      $region170: #{tpu_custom_call.1} parent=5 // pred_check_branch
        %3012 = sbr.rel (%p3010) target = $region172
      $region171: #{tpu_custom_call.1} parent=5 // pred_region
        %s3013 = ssub.s32 %s43, 2
      $region172: #{tpu_custom_call.1} parent=5 // pred_fallthru
        _
    $region6: #{tpu_custom_call.1} parent=1 // loop_footer
      %s47 = sadd.s32 1, %s43
    $region7: #{tpu_custom_call.1} parent=1 // loop_footer_branch
      %42 = sbr.rel target = $region3
    $region8: #{tpu_custom_call.1} parent=1 // loop_exit
      _
    %3014 = vsyncpa [#allocation4], 1
    %s3015 = scalar_lea.sflag [#allocation4], 1
    %3016 = vsyncpa %s3015, 1
    %3017 = vsyncpa [#allocation7], 1
    %s3018 = scalar_lea.sflag [#allocation7], 1
    %3019 = vsyncpa %s3018, 1
    %3020 = vsyncpa [#allocation10], 1
    %s3021 = scalar_lea.sflag [#allocation10], 1
    %3022 = vsyncpa %s3021, 1
    %3023 = vsyncpa [#allocation13], 1
    %s3024 = scalar_lea.sflag [#allocation13], 1
    %3025 = vsyncpa %s3024, 1
    %3026 = vsyncpa [#allocation16], 1
    %s3027 = scalar_lea.sflag [#allocation16], 1
    %3028 = vsyncpa %s3027, 1
    %3029 = vsyncpa [#allocation19], 1
    %3030 = vsyncpa [#allocation5], 1
    %s3031 = scalar_lea.sflag [#allocation5], 1
    %3032 = vsyncpa %s3031, 1

</llo_original>
